<compile_context>
chip_gen: v7x
topology: tpu7x:2x2x1
jax: 0.10.0
libtpu: 0.0.40
codegen_flags: <defaults>
</compile_context>

<pallas_src>
import functools
import numpy as np
import jax
import jax.numpy as jnp
from jax.experimental import pallas as pl
from jax.experimental.pallas import tpu as pltpu

# ----------------------------- configuration -------------------------------
B = 2
L1 = 32                      # query (video token) sequence length
L2 = 16                      # text context length
LI = 8                       # clip image-embedding context length
DIM = 64                     # model dim C
NUM_HEADS = 4
HEAD_DIM = DIM // NUM_HEADS  # 16
EPS_RMS = 1e-6
LANE = 128


# ------------------------------- fused kernel --------------------------------
def _wan_i2v_cross_attn_kernel(
        x_ref, ctx_ref, img_ref,
        qw_ref, qb_ref, kvw_ref, kvb_ref, kviw_ref, kvib_ref,
        ow_ref, ob_ref, nq_ref, nk_ref, nki_ref,
        o_ref, *, num_heads, head_dim):
    bb, l1, C = x_ref.shape
    l2 = ctx_ref.shape[1]
    li = img_ref.shape[1]
    c_pad = o_ref.shape[-1]
    H, D = num_heads, head_dim
    f32, bf16 = jnp.float32, jnp.bfloat16

    def rms(h, w):                               # f32 RMSNorm (VPU/EUP)
        ms = jnp.mean(h * h, axis=-1, keepdims=True)
        return h * jax.lax.rsqrt(ms + EPS_RMS) * w

    # ---- fused projections on flattened (bb*L, C) slabs; bf16 MXU, f32 acc ----
    x2 = x_ref[...].reshape(bb * l1, C).astype(bf16)
    c2 = ctx_ref[...].reshape(bb * l2, C).astype(bf16)
    i2 = img_ref[...].reshape(bb * li, C).astype(bf16)

    # softmax scale (1/sqrt(head_dim)) is pre-folded into nq_ref in the wrapper.
    q = rms(jnp.dot(x2, qw_ref[...], preferred_element_type=f32) + qb_ref[...],
            nq_ref[...])                                          # (bb*L1, C)
    kv = jnp.dot(c2, kvw_ref[...], preferred_element_type=f32) + kvb_ref[...]
    kvi = jnp.dot(i2, kviw_ref[...], preferred_element_type=f32) + kvib_ref[...]

    k = rms(kv[:, :C], nk_ref[...])                               # (bb*L2, C)
    v = kv[:, C:]
    ki = rms(kvi[:, :C], nki_ref[...])                            # (bb*LI, C)
    vi = kvi[:, C:]

    # back to batched (bb, L, C); text + image keys fused along the key axis so
    # each head does ONE scores matmul and ONE p@v matmul.
    q3 = q.reshape(bb, l1, C).astype(bf16)
    kall = jnp.concatenate([k.reshape(bb, l2, C), ki.reshape(bb, li, C)],
                           axis=1).astype(bf16)                   # (bb, L2+LI, C)
    vall = jnp.concatenate([v.reshape(bb, l2, C), vi.reshape(bb, li, C)],
                           axis=1).astype(bf16)                   # (bb, L2+LI, C)

    dn_scores = (((2,), (2,)), ((0,), (0,)))   # (bb,L1,D) x (bb,LK,D) -> (bb,L1,LK)
    dn_pv = (((2,), (1,)), ((0,), (0,)))       # (bb,L1,LK) x (bb,LK,D) -> (bb,L1,D)

    # output projection accumulated per head into a lane-dense f32 accumulator.
    acc = jnp.broadcast_to(ob_ref[...], (bb * l1, c_pad))

    # TODO(synk): at production dims (head_dim == 128) fold the heads into the
    # dot_general batch axis instead of this statically unrolled loop, and add
    # context_lens / k_lens key masking (full-length contexts assumed here).
    for h in range(H):
        sl = slice(h * D, (h + 1) * D)
        s = jax.lax.dot_general(q3[:, :, sl], kall[:, :, sl], dn_scores,
                                preferred_element_type=f32)       # (bb,L1,LK)
        # two softmaxes with separate max/denominator statistics
        s_t, s_i = s[:, :, :l2], s[:, :, l2:]
        p_t = jnp.exp(s_t - jnp.max(s_t, axis=-1, keepdims=True))
        p_i = jnp.exp(s_i - jnp.max(s_i, axis=-1, keepdims=True))
        inv_t = pl.reciprocal(jnp.sum(p_t, axis=-1, keepdims=True), approx=True)
        inv_i = pl.reciprocal(jnp.sum(p_i, axis=-1, keepdims=True), approx=True)
        # [p_t/l_t | p_i/l_i] @ [v ; v_img]  ==  softmax(txt)@v + softmax(img)@v_img
        p = jnp.concatenate([p_t * inv_t, p_i * inv_i], axis=-1).astype(bf16)
        oh = jax.lax.dot_general(p, vall[:, :, sl], dn_pv,
                                 preferred_element_type=f32)      # (bb,L1,D)
        acc = acc + jnp.dot(oh.reshape(bb * l1, D).astype(bf16), ow_ref[h],
                            preferred_element_type=f32)

    o_ref[...] = acc.reshape(bb, l1, c_pad)


# ----------------------- one-time parameter preparation -----------------------
def prepare_params(params, num_heads=NUM_HEADS, head_dim=HEAD_DIM):
    """Hoisted out of the per-call path: weight concats, bf16 casts, padding."""
    C = num_heads * head_dim
    c_pad = ((C + LANE - 1) // LANE) * LANE
    scale = 1.0 / float(np.sqrt(head_dim))
    bf16 = jnp.bfloat16

    kv_w = jnp.concatenate([params['k_w'], params['v_w']], axis=1).astype(bf16)
    kv_b = jnp.concatenate([params['k_b'], params['v_b']])[None, :]
    kvi_w = jnp.concatenate([params['k_img_w'], params['v_img_w']],
                            axis=1).astype(bf16)
    kvi_b = jnp.concatenate([params['k_img_b'], params['v_img_b']])[None, :]

    # pad output projection to a 128-lane boundary (zero columns) -> unmasked
    # stores; reshape into per-head (D, c_pad) slabs for per-head accumulation.
    o_w = jnp.pad(params['o_w'], ((0, 0), (0, c_pad - C)))
    o_b = jnp.pad(params['o_b'], (0, c_pad - C))
    o_w = o_w.reshape(num_heads, head_dim, c_pad).astype(bf16)

    return dict(
        q_w=params['q_w'].astype(bf16), q_b=params['q_b'][None, :],
        kv_w=kv_w, kv_b=kv_b, kvi_w=kvi_w, kvi_b=kvi_b,
        o_w=o_w, o_b=o_b[None, :],
        nq=params['norm_q'] * scale,        # softmax scale folded in (exact)
        nk=params['norm_k'], nki=params['norm_k_img'])


def _default_batch_block(batch):
    """v5e/v6e: 1 TensorCore -> fold whole batch into one grid step.
    v7x: 2 TensorCores -> keep a >=2-wide parallel grid over the batch."""
    try:
        kind = jax.devices()[0].device_kind.lower()
    except Exception:
        return batch
    if '7' in kind:                          # v7x-style chips: 2 TCs share HBM
        bb = max(1, batch // 2)
        return bb if batch % bb == 0 else 1
    return batch


# ------------------------------- wrapper --------------------------------------
def wan_i2v_cross_attention(prep, x, context, clip_embed, batch_block=None):
    Bb, l1, C = x.shape
    l2 = context.shape[1]
    li = clip_embed.shape[1]
    c_pad = prep['o_w'].shape[-1]

    bb = batch_block if batch_block is not None else _default_batch_block(Bb)
    if Bb % bb != 0:
        bb = 1
    grid = (Bb // bb,)

    kernel = functools.partial(_wan_i2v_cross_attn_kernel,
                               num_heads=NUM_HEADS, head_dim=HEAD_DIM)

    def full(arr):
        shape = arr.shape
        return pl.BlockSpec(shape, lambda g: (0,) * len(shape))

    out_pad = pl.pallas_call(
        kernel,
        grid=grid,
        in_specs=[
            pl.BlockSpec((bb, l1, C), lambda g: (g, 0, 0)),   # x
            pl.BlockSpec((bb, l2, C), lambda g: (g, 0, 0)),   # context
            pl.BlockSpec((bb, li, C), lambda g: (g, 0, 0)),   # clip_embed
            full(prep['q_w']), full(prep['q_b']),
            full(prep['kv_w']), full(prep['kv_b']),
            full(prep['kvi_w']), full(prep['kvi_b']),
            full(prep['o_w']), full(prep['o_b']),
            full(prep['nq']), full(prep['nk']), full(prep['nki']),
        ],
        out_specs=pl.BlockSpec((bb, l1, c_pad), lambda g: (g, 0, 0)),
        out_shape=jax.ShapeDtypeStruct((Bb, l1, c_pad), jnp.float32),
        compiler_params=pltpu.CompilerParams(
            dimension_semantics=("parallel",)),
    )(x, context, clip_embed,
      prep['q_w'], prep['q_b'], prep['kv_w'], prep['kv_b'],
      prep['kvi_w'], prep['kvi_b'], prep['o_w'], prep['o_b'],
      prep['nq'], prep['nk'], prep['nki'])

    return out_pad[:, :, :C] if c_pad != C else out_pad


# ------------------------------- parameters -----------------------------------
def init_params(key):
    keys = list(jax.random.split(key, 16))
    it = iter(keys)

    def lin_init(in_d, out_d):
        w = jax.random.normal(next(it), (in_d, out_d), jnp.float32) / np.sqrt(in_d)
        b_ = jax.random.normal(next(it), (out_d,), jnp.float32) * 0.02
        return w, b_

    params = {}
    for name in ('q', 'k', 'v', 'k_img', 'v_img', 'o'):
        w, b_ = lin_init(DIM, DIM)
        params[name + '_w'] = w
        params[name + '_b'] = b_
    # WanRMSNorm weights initialize to ones (nn.Parameter(torch.ones(dim)))
    params['norm_q'] = jnp.ones((1, DIM), jnp.float32)
    params['norm_k'] = jnp.ones((1, DIM), jnp.float32)
    params['norm_k_img'] = jnp.ones((1, DIM), jnp.float32)
    return params


# ------------------------------ pure-JAX reference -----------------------------
def ref_forward(params, x, context, clip_embed):
    P = jax.lax.Precision.HIGHEST

    def lin(h, w, b):
        return jnp.dot(h, w, precision=P) + b

    def rms(h, w):
        return h * jax.lax.rsqrt(jnp.mean(h * h, -1, keepdims=True) + EPS_RMS) * w

    def attn(q, k, v):
        scale = 1.0 / np.sqrt(q.shape[-1])
        s = jnp.einsum('bqnd,bknd->bnqk', q, k, precision=P) * scale
        p = jax.nn.softmax(s, -1)
        return jnp.einsum('bnqk,bknd->bqnd', p, v, precision=P)

    b, n, d = x.shape[0], NUM_HEADS, HEAD_DIM
    q = rms(lin(x, params['q_w'], params['q_b']), params['norm_q']).reshape(b, -1, n, d)
    k = rms(lin(context, params['k_w'], params['k_b']), params['norm_k']).reshape(b, -1, n, d)
    v = lin(context, params['v_w'], params['v_b']).reshape(b, -1, n, d)
    out = attn(q, k, v).reshape(b, -1, n * d)

    k_img = rms(lin(clip_embed, params['k_img_w'], params['k_img_b']),
                params['norm_k_img']).reshape(b, -1, n, d)
    v_img = lin(clip_embed, params['v_img_w'], params['v_img_b']).reshape(b, -1, n, d)
    img_x = attn(q, k_img, v_img).reshape(b, -1, n * d)

    return lin(out + img_x, params['o_w'], params['o_b'])


# ----------------------------------- main --------------------------------------
if __name__ == "__main__":
    key = jax.random.PRNGKey(0)
    kp, kx, kc, ki = jax.random.split(key, 4)
    params = init_params(kp)
    prep = prepare_params(params)

    x = jax.random.normal(kx, (B, L1, DIM), jnp.float32) * 0.5
    context = jax.random.normal(kc, (B, L2, DIM), jnp.float32) * 0.5
    clip_embed = jax.random.normal(ki, (B, LI, DIM), jnp.float32) * 0.5

    fwd = jax.jit(wan_i2v_cross_attention)
    out = fwd(prep, x, context, clip_embed)
    out = jax.block_until_ready(out)

    # tolerance reflects bf16 MXU operands + approx reciprocal vs. an f32
    # HIGHEST-precision reference
    ref = ref_forward(params, x, context, clip_embed)
    np.testing.assert_allclose(np.asarray(out), np.asarray(ref),
                               rtol=5e-2, atol=5e-2)

    print("KERNEL_OK")
</pallas_src>

<mosaic_0001>
module attributes {stable_mosaic.version = 11 : i64} {
  func.func @_wan_i2v_cross_attn_kernel(%arg0: i32, %arg1: memref<2x32x64xf32, #tpu.memory_space<vmem>>, %arg2: memref<2x16x64xf32, #tpu.memory_space<vmem>>, %arg3: memref<2x8x64xf32, #tpu.memory_space<vmem>>, %arg4: memref<64x64xbf16, #tpu.memory_space<vmem>>, %arg5: memref<1x64xf32, #tpu.memory_space<vmem>>, %arg6: memref<64x128xbf16, #tpu.memory_space<vmem>>, %arg7: memref<1x128xf32, #tpu.memory_space<vmem>>, %arg8: memref<64x128xbf16, #tpu.memory_space<vmem>>, %arg9: memref<1x128xf32, #tpu.memory_space<vmem>>, %arg10: memref<4x16x128xbf16, #tpu.memory_space<vmem>>, %arg11: memref<1x128xf32, #tpu.memory_space<vmem>>, %arg12: memref<1x64xf32, #tpu.memory_space<vmem>>, %arg13: memref<1x64xf32, #tpu.memory_space<vmem>>, %arg14: memref<1x64xf32, #tpu.memory_space<vmem>>, %arg15: memref<2x32x128xf32, #tpu.memory_space<vmem>>) attributes {dimension_semantics = [#tpu.dimension_semantics<parallel>], iteration_bounds = array<i64: 1>, scalar_prefetch = 0 : i64, scratch_operands = 0 : i64, tpu.core_type = #tpu.core_type<tc>, window_params = [{transform_indices = @transform_0, window_bounds = array<i64: 2, 32, 64>}, {transform_indices = @transform_1, window_bounds = array<i64: 2, 16, 64>}, {transform_indices = @transform_2, window_bounds = array<i64: 2, 8, 64>}, {pipeline_mode = #tpu.pipeline_mode<synchronous>, transform_indices = @transform_3, window_bounds = array<i64: 64, 64>}, {pipeline_mode = #tpu.pipeline_mode<synchronous>, transform_indices = @transform_4, window_bounds = array<i64: 1, 64>}, {pipeline_mode = #tpu.pipeline_mode<synchronous>, transform_indices = @transform_5, window_bounds = array<i64: 64, 128>}, {pipeline_mode = #tpu.pipeline_mode<synchronous>, transform_indices = @transform_6, window_bounds = array<i64: 1, 128>}, {pipeline_mode = #tpu.pipeline_mode<synchronous>, transform_indices = @transform_7, window_bounds = array<i64: 64, 128>}, {pipeline_mode = #tpu.pipeline_mode<synchronous>, transform_indices = @transform_8, window_bounds = array<i64: 1, 128>}, {pipeline_mode = #tpu.pipeline_mode<synchronous>, transform_indices = @transform_9, window_bounds = array<i64: 4, 16, 128>}, {pipeline_mode = #tpu.pipeline_mode<synchronous>, transform_indices = @transform_10, window_bounds = array<i64: 1, 128>}, {pipeline_mode = #tpu.pipeline_mode<synchronous>, transform_indices = @transform_11, window_bounds = array<i64: 1, 64>}, {pipeline_mode = #tpu.pipeline_mode<synchronous>, transform_indices = @transform_12, window_bounds = array<i64: 1, 64>}, {pipeline_mode = #tpu.pipeline_mode<synchronous>, transform_indices = @transform_13, window_bounds = array<i64: 1, 64>}, {transform_indices = @transform_14, window_bounds = array<i64: 2, 32, 128>}]} {
    %c0 = arith.constant 0 : index
    %c0_0 = arith.constant 0 : index
    %c0_1 = arith.constant 0 : index
    %0 = vector.load %arg1[%c0, %c0_0, %c0_1] : memref<2x32x64xf32, #tpu.memory_space<vmem>>, vector<2x32x64xf32>
    %1 = vector.shape_cast %0 : vector<2x32x64xf32> to vector<64x64xf32>
    %2 = arith.truncf %1 : vector<64x64xf32> to vector<64x64xbf16>
    %c0_2 = arith.constant 0 : index
    %c0_3 = arith.constant 0 : index
    %c0_4 = arith.constant 0 : index
    %3 = vector.load %arg2[%c0_2, %c0_3, %c0_4] : memref<2x16x64xf32, #tpu.memory_space<vmem>>, vector<2x16x64xf32>
    %4 = vector.shape_cast %3 : vector<2x16x64xf32> to vector<32x64xf32>
    %5 = arith.truncf %4 : vector<32x64xf32> to vector<32x64xbf16>
    %c0_5 = arith.constant 0 : index
    %c0_6 = arith.constant 0 : index
    %c0_7 = arith.constant 0 : index
    %6 = vector.load %arg3[%c0_5, %c0_6, %c0_7] : memref<2x8x64xf32, #tpu.memory_space<vmem>>, vector<2x8x64xf32>
    %7 = vector.shape_cast %6 : vector<2x8x64xf32> to vector<16x64xf32>
    %8 = arith.truncf %7 : vector<16x64xf32> to vector<16x64xbf16>
    %c0_8 = arith.constant 0 : index
    %c0_9 = arith.constant 0 : index
    %9 = vector.load %arg4[%c0_8, %c0_9] : memref<64x64xbf16, #tpu.memory_space<vmem>>, vector<64x64xbf16>
    %cst = arith.constant dense<0.000000e+00> : vector<64x64xf32>
    %10 = tpu.matmul %2, %9, %cst {dimension_numbers = #tpu.dot_dimension_numbers<[1], [0], [0], [1], [0, 0, 1, 1], [], []>} : vector<64x64xbf16>, vector<64x64xbf16>, vector<64x64xf32> -> vector<64x64xf32>
    %c0_10 = arith.constant 0 : index
    %c0_11 = arith.constant 0 : index
    %11 = vector.load %arg5[%c0_10, %c0_11] : memref<1x64xf32, #tpu.memory_space<vmem>>, vector<1x64xf32>
    %12 = vector.broadcast %11 : vector<1x64xf32> to vector<64x64xf32>
    %13 = arith.addf %10, %12 : vector<64x64xf32>
    %c0_12 = arith.constant 0 : index
    %c0_13 = arith.constant 0 : index
    %14 = vector.load %arg12[%c0_12, %c0_13] : memref<1x64xf32, #tpu.memory_space<vmem>>, vector<1x64xf32>
    %15 = arith.mulf %13, %13 : vector<64x64xf32>
    %cst_14 = arith.constant dense<0.000000e+00> : vector<64xf32>
    %16 = vector.multi_reduction <add>, %15, %cst_14 [1] : vector<64x64xf32> to vector<64xf32>
    %17 = vector.shape_cast %16 : vector<64xf32> to vector<64x1xf32>
    %cst_15 = arith.constant 6.400000e+01 : f32
    %18 = vector.broadcast %cst_15 : f32 to vector<64x1xf32>
    %19 = arith.divf %17, %18 : vector<64x1xf32>
    %cst_16 = arith.constant 9.99999997E-7 : f32
    %20 = vector.broadcast %cst_16 : f32 to vector<64x1xf32>
    %21 = arith.addf %19, %20 : vector<64x1xf32>
    %22 = math.rsqrt %21 : vector<64x1xf32>
    %23 = vector.broadcast %22 : vector<64x1xf32> to vector<64x64xf32>
    %24 = arith.mulf %13, %23 : vector<64x64xf32>
    %25 = vector.broadcast %14 : vector<1x64xf32> to vector<64x64xf32>
    %26 = arith.mulf %24, %25 : vector<64x64xf32>
    %c0_17 = arith.constant 0 : index
    %c0_18 = arith.constant 0 : index
    %27 = vector.load %arg6[%c0_17, %c0_18] : memref<64x128xbf16, #tpu.memory_space<vmem>>, vector<64x128xbf16>
    %cst_19 = arith.constant dense<0.000000e+00> : vector<32x128xf32>
    %28 = tpu.matmul %5, %27, %cst_19 {dimension_numbers = #tpu.dot_dimension_numbers<[1], [0], [0], [1], [0, 0, 1, 1], [], []>} : vector<32x64xbf16>, vector<64x128xbf16>, vector<32x128xf32> -> vector<32x128xf32>
    %c0_20 = arith.constant 0 : index
    %c0_21 = arith.constant 0 : index
    %29 = vector.load %arg7[%c0_20, %c0_21] : memref<1x128xf32, #tpu.memory_space<vmem>>, vector<1x128xf32>
    %30 = vector.broadcast %29 : vector<1x128xf32> to vector<32x128xf32>
    %31 = arith.addf %28, %30 : vector<32x128xf32>
    %c0_22 = arith.constant 0 : index
    %c0_23 = arith.constant 0 : index
    %32 = vector.load %arg8[%c0_22, %c0_23] : memref<64x128xbf16, #tpu.memory_space<vmem>>, vector<64x128xbf16>
    %cst_24 = arith.constant dense<0.000000e+00> : vector<16x128xf32>
    %33 = tpu.matmul %8, %32, %cst_24 {dimension_numbers = #tpu.dot_dimension_numbers<[1], [0], [0], [1], [0, 0, 1, 1], [], []>} : vector<16x64xbf16>, vector<64x128xbf16>, vector<16x128xf32> -> vector<16x128xf32>
    %c0_25 = arith.constant 0 : index
    %c0_26 = arith.constant 0 : index
    %34 = vector.load %arg9[%c0_25, %c0_26] : memref<1x128xf32, #tpu.memory_space<vmem>>, vector<1x128xf32>
    %35 = vector.broadcast %34 : vector<1x128xf32> to vector<16x128xf32>
    %36 = arith.addf %33, %35 : vector<16x128xf32>
    %37 = vector.extract_strided_slice %31 {offsets = [0, 0], sizes = [32, 64], strides = [1, 1]} : vector<32x128xf32> to vector<32x64xf32>
    %c0_27 = arith.constant 0 : index
    %c0_28 = arith.constant 0 : index
    %38 = vector.load %arg13[%c0_27, %c0_28] : memref<1x64xf32, #tpu.memory_space<vmem>>, vector<1x64xf32>
    %39 = arith.mulf %37, %37 : vector<32x64xf32>
    %cst_29 = arith.constant dense<0.000000e+00> : vector<32xf32>
    %40 = vector.multi_reduction <add>, %39, %cst_29 [1] : vector<32x64xf32> to vector<32xf32>
    %41 = vector.shape_cast %40 : vector<32xf32> to vector<32x1xf32>
    %cst_30 = arith.constant 6.400000e+01 : f32
    %42 = vector.broadcast %cst_30 : f32 to vector<32x1xf32>
    %43 = arith.divf %41, %42 : vector<32x1xf32>
    %cst_31 = arith.constant 9.99999997E-7 : f32
    %44 = vector.broadcast %cst_31 : f32 to vector<32x1xf32>
    %45 = arith.addf %43, %44 : vector<32x1xf32>
    %46 = math.rsqrt %45 : vector<32x1xf32>
    %47 = vector.broadcast %46 : vector<32x1xf32> to vector<32x64xf32>
    %48 = arith.mulf %37, %47 : vector<32x64xf32>
    %49 = vector.broadcast %38 : vector<1x64xf32> to vector<32x64xf32>
    %50 = arith.mulf %48, %49 : vector<32x64xf32>
    %51 = vector.extract_strided_slice %31 {offsets = [0, 64], sizes = [32, 64], strides = [1, 1]} : vector<32x128xf32> to vector<32x64xf32>
    %52 = vector.extract_strided_slice %36 {offsets = [0, 0], sizes = [16, 64], strides = [1, 1]} : vector<16x128xf32> to vector<16x64xf32>
    %c0_32 = arith.constant 0 : index
    %c0_33 = arith.constant 0 : index
    %53 = vector.load %arg14[%c0_32, %c0_33] : memref<1x64xf32, #tpu.memory_space<vmem>>, vector<1x64xf32>
    %54 = arith.mulf %52, %52 : vector<16x64xf32>
    %cst_34 = arith.constant dense<0.000000e+00> : vector<16xf32>
    %55 = vector.multi_reduction <add>, %54, %cst_34 [1] : vector<16x64xf32> to vector<16xf32>
    %56 = vector.shape_cast %55 : vector<16xf32> to vector<16x1xf32>
    %cst_35 = arith.constant 6.400000e+01 : f32
    %57 = vector.broadcast %cst_35 : f32 to vector<16x1xf32>
    %58 = arith.divf %56, %57 : vector<16x1xf32>
    %cst_36 = arith.constant 9.99999997E-7 : f32
    %59 = vector.broadcast %cst_36 : f32 to vector<16x1xf32>
    %60 = arith.addf %58, %59 : vector<16x1xf32>
    %61 = math.rsqrt %60 : vector<16x1xf32>
    %62 = vector.broadcast %61 : vector<16x1xf32> to vector<16x64xf32>
    %63 = arith.mulf %52, %62 : vector<16x64xf32>
    %64 = vector.broadcast %53 : vector<1x64xf32> to vector<16x64xf32>
    %65 = arith.mulf %63, %64 : vector<16x64xf32>
    %66 = vector.extract_strided_slice %36 {offsets = [0, 64], sizes = [16, 64], strides = [1, 1]} : vector<16x128xf32> to vector<16x64xf32>
    %67 = vector.shape_cast %26 : vector<64x64xf32> to vector<2x32x64xf32>
    %68 = arith.truncf %67 : vector<2x32x64xf32> to vector<2x32x64xbf16>
    %69 = vector.shape_cast %50 : vector<32x64xf32> to vector<2x16x64xf32>
    %70 = vector.shape_cast %65 : vector<16x64xf32> to vector<2x8x64xf32>
    %71 = tpu.concatenate %69, %70 in 1 : vector<2x16x64xf32>, vector<2x8x64xf32> -> vector<2x24x64xf32>
    %72 = arith.truncf %71 : vector<2x24x64xf32> to vector<2x24x64xbf16>
    %73 = vector.shape_cast %51 : vector<32x64xf32> to vector<2x16x64xf32>
    %74 = vector.shape_cast %66 : vector<16x64xf32> to vector<2x8x64xf32>
    %75 = tpu.concatenate %73, %74 in 1 : vector<2x16x64xf32>, vector<2x8x64xf32> -> vector<2x24x64xf32>
    %76 = arith.truncf %75 : vector<2x24x64xf32> to vector<2x24x64xbf16>
    %c0_37 = arith.constant 0 : index
    %c0_38 = arith.constant 0 : index
    %77 = vector.load %arg11[%c0_37, %c0_38] : memref<1x128xf32, #tpu.memory_space<vmem>>, vector<1x128xf32>
    %78 = vector.shape_cast %77 : vector<1x128xf32> to vector<1x128xf32>
    %79 = vector.broadcast %78 : vector<1x128xf32> to vector<64x128xf32>
    %80 = vector.extract_strided_slice %68 {offsets = [0, 0, 0], sizes = [2, 32, 16], strides = [1, 1, 1]} : vector<2x32x64xbf16> to vector<2x32x16xbf16>
    %81 = vector.extract_strided_slice %72 {offsets = [0, 0, 0], sizes = [2, 24, 16], strides = [1, 1, 1]} : vector<2x24x64xbf16> to vector<2x24x16xbf16>
    %cst_39 = arith.constant dense<0.000000e+00> : vector<2x32x24xf32>
    %82 = tpu.matmul %80, %81, %cst_39 {dimension_numbers = #tpu.dot_dimension_numbers<[2], [2], [1], [1], [0, 0, 0, 1, 1, 1], [0], [0]>} : vector<2x32x16xbf16>, vector<2x24x16xbf16>, vector<2x32x24xf32> -> vector<2x32x24xf32>
    %83 = vector.extract_strided_slice %82 {offsets = [0, 0, 0], sizes = [2, 32, 16], strides = [1, 1, 1]} : vector<2x32x24xf32> to vector<2x32x16xf32>
    %84 = vector.extract_strided_slice %82 {offsets = [0, 0, 16], sizes = [2, 32, 8], strides = [1, 1, 1]} : vector<2x32x24xf32> to vector<2x32x8xf32>
    %cst_40 = arith.constant dense<0xFF800000> : vector<2x32xf32>
    %85 = vector.multi_reduction <maximumf>, %83, %cst_40 [2] : vector<2x32x16xf32> to vector<2x32xf32>
    %86 = vector.shape_cast %85 : vector<2x32xf32> to vector<2x32x1xf32>
    %87 = vector.broadcast %86 : vector<2x32x1xf32> to vector<2x32x16xf32>
    %88 = arith.subf %83, %87 : vector<2x32x16xf32>
    %89 = math.exp %88 : vector<2x32x16xf32>
    %cst_41 = arith.constant dense<0xFF800000> : vector<2x32xf32>
    %90 = vector.multi_reduction <maximumf>, %84, %cst_41 [2] : vector<2x32x8xf32> to vector<2x32xf32>
    %91 = vector.shape_cast %90 : vector<2x32xf32> to vector<2x32x1xf32>
    %92 = vector.broadcast %91 : vector<2x32x1xf32> to vector<2x32x8xf32>
    %93 = arith.subf %84, %92 : vector<2x32x8xf32>
    %94 = math.exp %93 : vector<2x32x8xf32>
    %cst_42 = arith.constant dense<0.000000e+00> : vector<2x32xf32>
    %95 = vector.multi_reduction <add>, %89, %cst_42 [2] : vector<2x32x16xf32> to vector<2x32xf32>
    %96 = vector.shape_cast %95 : vector<2x32xf32> to vector<2x32x1xf32>
    %97 = tpu.reciprocal %96 {approx = true} : vector<2x32x1xf32> -> vector<2x32x1xf32>
    %cst_43 = arith.constant dense<0.000000e+00> : vector<2x32xf32>
    %98 = vector.multi_reduction <add>, %94, %cst_43 [2] : vector<2x32x8xf32> to vector<2x32xf32>
    %99 = vector.shape_cast %98 : vector<2x32xf32> to vector<2x32x1xf32>
    %100 = tpu.reciprocal %99 {approx = true} : vector<2x32x1xf32> -> vector<2x32x1xf32>
    %101 = vector.broadcast %97 : vector<2x32x1xf32> to vector<2x32x16xf32>
    %102 = arith.mulf %89, %101 : vector<2x32x16xf32>
    %103 = vector.broadcast %100 : vector<2x32x1xf32> to vector<2x32x8xf32>
    %104 = arith.mulf %94, %103 : vector<2x32x8xf32>
    %105 = tpu.concatenate %102, %104 in 2 : vector<2x32x16xf32>, vector<2x32x8xf32> -> vector<2x32x24xf32>
    %106 = arith.truncf %105 : vector<2x32x24xf32> to vector<2x32x24xbf16>
    %107 = vector.extract_strided_slice %76 {offsets = [0, 0, 0], sizes = [2, 24, 16], strides = [1, 1, 1]} : vector<2x24x64xbf16> to vector<2x24x16xbf16>
    %cst_44 = arith.constant dense<0.000000e+00> : vector<2x32x16xf32>
    %108 = tpu.matmul %106, %107, %cst_44 {dimension_numbers = #tpu.dot_dimension_numbers<[2], [1], [1], [2], [0, 0, 0, 1, 1, 2], [0], [0]>} : vector<2x32x24xbf16>, vector<2x24x16xbf16>, vector<2x32x16xf32> -> vector<2x32x16xf32>
    %109 = vector.shape_cast %108 : vector<2x32x16xf32> to vector<64x16xf32>
    %110 = arith.truncf %109 : vector<64x16xf32> to vector<64x16xbf16>
    %c0_45 = arith.constant 0 : index
    %c0_46 = arith.constant 0 : index
    %c0_47 = arith.constant 0 : index
    %111 = vector.load %arg10[%c0_45, %c0_46, %c0_47] : memref<4x16x128xbf16, #tpu.memory_space<vmem>>, vector<1x16x128xbf16>
    %112 = vector.shape_cast %111 : vector<1x16x128xbf16> to vector<16x128xbf16>
    %cst_48 = arith.constant dense<0.000000e+00> : vector<64x128xf32>
    %113 = tpu.matmul %110, %112, %cst_48 {dimension_numbers = #tpu.dot_dimension_numbers<[1], [0], [0], [1], [0, 0, 1, 1], [], []>} : vector<64x16xbf16>, vector<16x128xbf16>, vector<64x128xf32> -> vector<64x128xf32>
    %114 = arith.addf %79, %113 : vector<64x128xf32>
    %115 = vector.extract_strided_slice %68 {offsets = [0, 0, 16], sizes = [2, 32, 16], strides = [1, 1, 1]} : vector<2x32x64xbf16> to vector<2x32x16xbf16>
    %116 = vector.extract_strided_slice %72 {offsets = [0, 0, 16], sizes = [2, 24, 16], strides = [1, 1, 1]} : vector<2x24x64xbf16> to vector<2x24x16xbf16>
    %cst_49 = arith.constant dense<0.000000e+00> : vector<2x32x24xf32>
    %117 = tpu.matmul %115, %116, %cst_49 {dimension_numbers = #tpu.dot_dimension_numbers<[2], [2], [1], [1], [0, 0, 0, 1, 1, 1], [0], [0]>} : vector<2x32x16xbf16>, vector<2x24x16xbf16>, vector<2x32x24xf32> -> vector<2x32x24xf32>
    %118 = vector.extract_strided_slice %117 {offsets = [0, 0, 0], sizes = [2, 32, 16], strides = [1, 1, 1]} : vector<2x32x24xf32> to vector<2x32x16xf32>
    %119 = vector.extract_strided_slice %117 {offsets = [0, 0, 16], sizes = [2, 32, 8], strides = [1, 1, 1]} : vector<2x32x24xf32> to vector<2x32x8xf32>
    %cst_50 = arith.constant dense<0xFF800000> : vector<2x32xf32>
    %120 = vector.multi_reduction <maximumf>, %118, %cst_50 [2] : vector<2x32x16xf32> to vector<2x32xf32>
    %121 = vector.shape_cast %120 : vector<2x32xf32> to vector<2x32x1xf32>
    %122 = vector.broadcast %121 : vector<2x32x1xf32> to vector<2x32x16xf32>
    %123 = arith.subf %118, %122 : vector<2x32x16xf32>
    %124 = math.exp %123 : vector<2x32x16xf32>
    %cst_51 = arith.constant dense<0xFF800000> : vector<2x32xf32>
    %125 = vector.multi_reduction <maximumf>, %119, %cst_51 [2] : vector<2x32x8xf32> to vector<2x32xf32>
    %126 = vector.shape_cast %125 : vector<2x32xf32> to vector<2x32x1xf32>
    %127 = vector.broadcast %126 : vector<2x32x1xf32> to vector<2x32x8xf32>
    %128 = arith.subf %119, %127 : vector<2x32x8xf32>
    %129 = math.exp %128 : vector<2x32x8xf32>
    %cst_52 = arith.constant dense<0.000000e+00> : vector<2x32xf32>
    %130 = vector.multi_reduction <add>, %124, %cst_52 [2] : vector<2x32x16xf32> to vector<2x32xf32>
    %131 = vector.shape_cast %130 : vector<2x32xf32> to vector<2x32x1xf32>
    %132 = tpu.reciprocal %131 {approx = true} : vector<2x32x1xf32> -> vector<2x32x1xf32>
    %cst_53 = arith.constant dense<0.000000e+00> : vector<2x32xf32>
    %133 = vector.multi_reduction <add>, %129, %cst_53 [2] : vector<2x32x8xf32> to vector<2x32xf32>
    %134 = vector.shape_cast %133 : vector<2x32xf32> to vector<2x32x1xf32>
    %135 = tpu.reciprocal %134 {approx = true} : vector<2x32x1xf32> -> vector<2x32x1xf32>
    %136 = vector.broadcast %132 : vector<2x32x1xf32> to vector<2x32x16xf32>
    %137 = arith.mulf %124, %136 : vector<2x32x16xf32>
    %138 = vector.broadcast %135 : vector<2x32x1xf32> to vector<2x32x8xf32>
    %139 = arith.mulf %129, %138 : vector<2x32x8xf32>
    %140 = tpu.concatenate %137, %139 in 2 : vector<2x32x16xf32>, vector<2x32x8xf32> -> vector<2x32x24xf32>
    %141 = arith.truncf %140 : vector<2x32x24xf32> to vector<2x32x24xbf16>
    %142 = vector.extract_strided_slice %76 {offsets = [0, 0, 16], sizes = [2, 24, 16], strides = [1, 1, 1]} : vector<2x24x64xbf16> to vector<2x24x16xbf16>
    %cst_54 = arith.constant dense<0.000000e+00> : vector<2x32x16xf32>
    %143 = tpu.matmul %141, %142, %cst_54 {dimension_numbers = #tpu.dot_dimension_numbers<[2], [1], [1], [2], [0, 0, 0, 1, 1, 2], [0], [0]>} : vector<2x32x24xbf16>, vector<2x24x16xbf16>, vector<2x32x16xf32> -> vector<2x32x16xf32>
    %144 = vector.shape_cast %143 : vector<2x32x16xf32> to vector<64x16xf32>
    %145 = arith.truncf %144 : vector<64x16xf32> to vector<64x16xbf16>
    %c1 = arith.constant 1 : index
    %c0_55 = arith.constant 0 : index
    %c0_56 = arith.constant 0 : index
    %146 = vector.load %arg10[%c1, %c0_55, %c0_56] : memref<4x16x128xbf16, #tpu.memory_space<vmem>>, vector<1x16x128xbf16>
    %147 = vector.shape_cast %146 : vector<1x16x128xbf16> to vector<16x128xbf16>
    %cst_57 = arith.constant dense<0.000000e+00> : vector<64x128xf32>
    %148 = tpu.matmul %145, %147, %cst_57 {dimension_numbers = #tpu.dot_dimension_numbers<[1], [0], [0], [1], [0, 0, 1, 1], [], []>} : vector<64x16xbf16>, vector<16x128xbf16>, vector<64x128xf32> -> vector<64x128xf32>
    %149 = arith.addf %114, %148 : vector<64x128xf32>
    %150 = vector.extract_strided_slice %68 {offsets = [0, 0, 32], sizes = [2, 32, 16], strides = [1, 1, 1]} : vector<2x32x64xbf16> to vector<2x32x16xbf16>
    %151 = vector.extract_strided_slice %72 {offsets = [0, 0, 32], sizes = [2, 24, 16], strides = [1, 1, 1]} : vector<2x24x64xbf16> to vector<2x24x16xbf16>
    %cst_58 = arith.constant dense<0.000000e+00> : vector<2x32x24xf32>
    %152 = tpu.matmul %150, %151, %cst_58 {dimension_numbers = #tpu.dot_dimension_numbers<[2], [2], [1], [1], [0, 0, 0, 1, 1, 1], [0], [0]>} : vector<2x32x16xbf16>, vector<2x24x16xbf16>, vector<2x32x24xf32> -> vector<2x32x24xf32>
    %153 = vector.extract_strided_slice %152 {offsets = [0, 0, 0], sizes = [2, 32, 16], strides = [1, 1, 1]} : vector<2x32x24xf32> to vector<2x32x16xf32>
    %154 = vector.extract_strided_slice %152 {offsets = [0, 0, 16], sizes = [2, 32, 8], strides = [1, 1, 1]} : vector<2x32x24xf32> to vector<2x32x8xf32>
    %cst_59 = arith.constant dense<0xFF800000> : vector<2x32xf32>
    %155 = vector.multi_reduction <maximumf>, %153, %cst_59 [2] : vector<2x32x16xf32> to vector<2x32xf32>
    %156 = vector.shape_cast %155 : vector<2x32xf32> to vector<2x32x1xf32>
    %157 = vector.broadcast %156 : vector<2x32x1xf32> to vector<2x32x16xf32>
    %158 = arith.subf %153, %157 : vector<2x32x16xf32>
    %159 = math.exp %158 : vector<2x32x16xf32>
    %cst_60 = arith.constant dense<0xFF800000> : vector<2x32xf32>
    %160 = vector.multi_reduction <maximumf>, %154, %cst_60 [2] : vector<2x32x8xf32> to vector<2x32xf32>
    %161 = vector.shape_cast %160 : vector<2x32xf32> to vector<2x32x1xf32>
    %162 = vector.broadcast %161 : vector<2x32x1xf32> to vector<2x32x8xf32>
    %163 = arith.subf %154, %162 : vector<2x32x8xf32>
    %164 = math.exp %163 : vector<2x32x8xf32>
    %cst_61 = arith.constant dense<0.000000e+00> : vector<2x32xf32>
    %165 = vector.multi_reduction <add>, %159, %cst_61 [2] : vector<2x32x16xf32> to vector<2x32xf32>
    %166 = vector.shape_cast %165 : vector<2x32xf32> to vector<2x32x1xf32>
    %167 = tpu.reciprocal %166 {approx = true} : vector<2x32x1xf32> -> vector<2x32x1xf32>
    %cst_62 = arith.constant dense<0.000000e+00> : vector<2x32xf32>
    %168 = vector.multi_reduction <add>, %164, %cst_62 [2] : vector<2x32x8xf32> to vector<2x32xf32>
    %169 = vector.shape_cast %168 : vector<2x32xf32> to vector<2x32x1xf32>
    %170 = tpu.reciprocal %169 {approx = true} : vector<2x32x1xf32> -> vector<2x32x1xf32>
    %171 = vector.broadcast %167 : vector<2x32x1xf32> to vector<2x32x16xf32>
    %172 = arith.mulf %159, %171 : vector<2x32x16xf32>
    %173 = vector.broadcast %170 : vector<2x32x1xf32> to vector<2x32x8xf32>
    %174 = arith.mulf %164, %173 : vector<2x32x8xf32>
    %175 = tpu.concatenate %172, %174 in 2 : vector<2x32x16xf32>, vector<2x32x8xf32> -> vector<2x32x24xf32>
    %176 = arith.truncf %175 : vector<2x32x24xf32> to vector<2x32x24xbf16>
    %177 = vector.extract_strided_slice %76 {offsets = [0, 0, 32], sizes = [2, 24, 16], strides = [1, 1, 1]} : vector<2x24x64xbf16> to vector<2x24x16xbf16>
    %cst_63 = arith.constant dense<0.000000e+00> : vector<2x32x16xf32>
    %178 = tpu.matmul %176, %177, %cst_63 {dimension_numbers = #tpu.dot_dimension_numbers<[2], [1], [1], [2], [0, 0, 0, 1, 1, 2], [0], [0]>} : vector<2x32x24xbf16>, vector<2x24x16xbf16>, vector<2x32x16xf32> -> vector<2x32x16xf32>
    %179 = vector.shape_cast %178 : vector<2x32x16xf32> to vector<64x16xf32>
    %180 = arith.truncf %179 : vector<64x16xf32> to vector<64x16xbf16>
    %c2 = arith.constant 2 : index
    %c0_64 = arith.constant 0 : index
    %c0_65 = arith.constant 0 : index
    %181 = vector.load %arg10[%c2, %c0_64, %c0_65] : memref<4x16x128xbf16, #tpu.memory_space<vmem>>, vector<1x16x128xbf16>
    %182 = vector.shape_cast %181 : vector<1x16x128xbf16> to vector<16x128xbf16>
    %cst_66 = arith.constant dense<0.000000e+00> : vector<64x128xf32>
    %183 = tpu.matmul %180, %182, %cst_66 {dimension_numbers = #tpu.dot_dimension_numbers<[1], [0], [0], [1], [0, 0, 1, 1], [], []>} : vector<64x16xbf16>, vector<16x128xbf16>, vector<64x128xf32> -> vector<64x128xf32>
    %184 = arith.addf %149, %183 : vector<64x128xf32>
    %185 = vector.extract_strided_slice %68 {offsets = [0, 0, 48], sizes = [2, 32, 16], strides = [1, 1, 1]} : vector<2x32x64xbf16> to vector<2x32x16xbf16>
    %186 = vector.extract_strided_slice %72 {offsets = [0, 0, 48], sizes = [2, 24, 16], strides = [1, 1, 1]} : vector<2x24x64xbf16> to vector<2x24x16xbf16>
    %cst_67 = arith.constant dense<0.000000e+00> : vector<2x32x24xf32>
    %187 = tpu.matmul %185, %186, %cst_67 {dimension_numbers = #tpu.dot_dimension_numbers<[2], [2], [1], [1], [0, 0, 0, 1, 1, 1], [0], [0]>} : vector<2x32x16xbf16>, vector<2x24x16xbf16>, vector<2x32x24xf32> -> vector<2x32x24xf32>
    %188 = vector.extract_strided_slice %187 {offsets = [0, 0, 0], sizes = [2, 32, 16], strides = [1, 1, 1]} : vector<2x32x24xf32> to vector<2x32x16xf32>
    %189 = vector.extract_strided_slice %187 {offsets = [0, 0, 16], sizes = [2, 32, 8], strides = [1, 1, 1]} : vector<2x32x24xf32> to vector<2x32x8xf32>
    %cst_68 = arith.constant dense<0xFF800000> : vector<2x32xf32>
    %190 = vector.multi_reduction <maximumf>, %188, %cst_68 [2] : vector<2x32x16xf32> to vector<2x32xf32>
    %191 = vector.shape_cast %190 : vector<2x32xf32> to vector<2x32x1xf32>
    %192 = vector.broadcast %191 : vector<2x32x1xf32> to vector<2x32x16xf32>
    %193 = arith.subf %188, %192 : vector<2x32x16xf32>
    %194 = math.exp %193 : vector<2x32x16xf32>
    %cst_69 = arith.constant dense<0xFF800000> : vector<2x32xf32>
    %195 = vector.multi_reduction <maximumf>, %189, %cst_69 [2] : vector<2x32x8xf32> to vector<2x32xf32>
    %196 = vector.shape_cast %195 : vector<2x32xf32> to vector<2x32x1xf32>
    %197 = vector.broadcast %196 : vector<2x32x1xf32> to vector<2x32x8xf32>
    %198 = arith.subf %189, %197 : vector<2x32x8xf32>
    %199 = math.exp %198 : vector<2x32x8xf32>
    %cst_70 = arith.constant dense<0.000000e+00> : vector<2x32xf32>
    %200 = vector.multi_reduction <add>, %194, %cst_70 [2] : vector<2x32x16xf32> to vector<2x32xf32>
    %201 = vector.shape_cast %200 : vector<2x32xf32> to vector<2x32x1xf32>
    %202 = tpu.reciprocal %201 {approx = true} : vector<2x32x1xf32> -> vector<2x32x1xf32>
    %cst_71 = arith.constant dense<0.000000e+00> : vector<2x32xf32>
    %203 = vector.multi_reduction <add>, %199, %cst_71 [2] : vector<2x32x8xf32> to vector<2x32xf32>
    %204 = vector.shape_cast %203 : vector<2x32xf32> to vector<2x32x1xf32>
    %205 = tpu.reciprocal %204 {approx = true} : vector<2x32x1xf32> -> vector<2x32x1xf32>
    %206 = vector.broadcast %202 : vector<2x32x1xf32> to vector<2x32x16xf32>
    %207 = arith.mulf %194, %206 : vector<2x32x16xf32>
    %208 = vector.broadcast %205 : vector<2x32x1xf32> to vector<2x32x8xf32>
    %209 = arith.mulf %199, %208 : vector<2x32x8xf32>
    %210 = tpu.concatenate %207, %209 in 2 : vector<2x32x16xf32>, vector<2x32x8xf32> -> vector<2x32x24xf32>
    %211 = arith.truncf %210 : vector<2x32x24xf32> to vector<2x32x24xbf16>
    %212 = vector.extract_strided_slice %76 {offsets = [0, 0, 48], sizes = [2, 24, 16], strides = [1, 1, 1]} : vector<2x24x64xbf16> to vector<2x24x16xbf16>
    %cst_72 = arith.constant dense<0.000000e+00> : vector<2x32x16xf32>
    %213 = tpu.matmul %211, %212, %cst_72 {dimension_numbers = #tpu.dot_dimension_numbers<[2], [1], [1], [2], [0, 0, 0, 1, 1, 2], [0], [0]>} : vector<2x32x24xbf16>, vector<2x24x16xbf16>, vector<2x32x16xf32> -> vector<2x32x16xf32>
    %214 = vector.shape_cast %213 : vector<2x32x16xf32> to vector<64x16xf32>
    %215 = arith.truncf %214 : vector<64x16xf32> to vector<64x16xbf16>
    %c3 = arith.constant 3 : index
    %c0_73 = arith.constant 0 : index
    %c0_74 = arith.constant 0 : index
    %216 = vector.load %arg10[%c3, %c0_73, %c0_74] : memref<4x16x128xbf16, #tpu.memory_space<vmem>>, vector<1x16x128xbf16>
    %217 = vector.shape_cast %216 : vector<1x16x128xbf16> to vector<16x128xbf16>
    %cst_75 = arith.constant dense<0.000000e+00> : vector<64x128xf32>
    %218 = tpu.matmul %215, %217, %cst_75 {dimension_numbers = #tpu.dot_dimension_numbers<[1], [0], [0], [1], [0, 0, 1, 1], [], []>} : vector<64x16xbf16>, vector<16x128xbf16>, vector<64x128xf32> -> vector<64x128xf32>
    %219 = arith.addf %184, %218 : vector<64x128xf32>
    %220 = vector.shape_cast %219 : vector<64x128xf32> to vector<2x32x128xf32>
    %c0_76 = arith.constant 0 : index
    %c0_77 = arith.constant 0 : index
    %c0_78 = arith.constant 0 : index
    %221 = vector.load %arg15[%c0_76, %c0_77, %c0_78] : memref<2x32x128xf32, #tpu.memory_space<vmem>>, vector<2x32x128xf32>
    tpu.vector_store %arg15[%c0_76, %c0_77, %c0_78], %220 {strides = array<i32>} : memref<2x32x128xf32, #tpu.memory_space<vmem>>, vector<2x32x128xf32>,
    return
  }
  func.func @transform_0(%arg0: i32) -> (i32, i32, i32) {
    %c0_i32 = arith.constant 0 : i32
    %c0_i32_0 = arith.constant 0 : i32
    %c0_i32_1 = arith.constant 0 : i32
    return %arg0, %c0_i32, %c0_i32_0 : i32, i32, i32
  }
  func.func @transform_1(%arg0: i32) -> (i32, i32, i32) {
    %c0_i32 = arith.constant 0 : i32
    %c0_i32_0 = arith.constant 0 : i32
    %c0_i32_1 = arith.constant 0 : i32
    return %arg0, %c0_i32, %c0_i32_0 : i32, i32, i32
  }
  func.func @transform_2(%arg0: i32) -> (i32, i32, i32) {
    %c0_i32 = arith.constant 0 : i32
    %c0_i32_0 = arith.constant 0 : i32
    %c0_i32_1 = arith.constant 0 : i32
    return %arg0, %c0_i32, %c0_i32_0 : i32, i32, i32
  }
  func.func @transform_3(%arg0: i32) -> (i32, i32) {
    %c0_i32 = arith.constant 0 : i32
    %c0_i32_0 = arith.constant 0 : i32
    %c0_i32_1 = arith.constant 0 : i32
    return %c0_i32, %c0_i32_0 : i32, i32
  }
  func.func @transform_4(%arg0: i32) -> (i32, i32) {
    %c0_i32 = arith.constant 0 : i32
    %c0_i32_0 = arith.constant 0 : i32
    %c0_i32_1 = arith.constant 0 : i32
    return %c0_i32, %c0_i32_0 : i32, i32
  }
  func.func @transform_5(%arg0: i32) -> (i32, i32) {
    %c0_i32 = arith.constant 0 : i32
    %c0_i32_0 = arith.constant 0 : i32
    %c0_i32_1 = arith.constant 0 : i32
    return %c0_i32, %c0_i32_0 : i32, i32
  }
  func.func @transform_6(%arg0: i32) -> (i32, i32) {
    %c0_i32 = arith.constant 0 : i32
    %c0_i32_0 = arith.constant 0 : i32
    %c0_i32_1 = arith.constant 0 : i32
    return %c0_i32, %c0_i32_0 : i32, i32
  }
  func.func @transform_7(%arg0: i32) -> (i32, i32) {
    %c0_i32 = arith.constant 0 : i32
    %c0_i32_0 = arith.constant 0 : i32
    %c0_i32_1 = arith.constant 0 : i32
    return %c0_i32, %c0_i32_0 : i32, i32
  }
  func.func @transform_8(%arg0: i32) -> (i32, i32) {
    %c0_i32 = arith.constant 0 : i32
    %c0_i32_0 = arith.constant 0 : i32
    %c0_i32_1 = arith.constant 0 : i32
    return %c0_i32, %c0_i32_0 : i32, i32
  }
  func.func @transform_9(%arg0: i32) -> (i32, i32, i32) {
    %c0_i32 = arith.constant 0 : i32
    %c0_i32_0 = arith.constant 0 : i32
    %c0_i32_1 = arith.constant 0 : i32
    %c0_i32_2 = arith.constant 0 : i32
    return %c0_i32, %c0_i32_0, %c0_i32_1 : i32, i32, i32
  }
  func.func @transform_10(%arg0: i32) -> (i32, i32) {
    %c0_i32 = arith.constant 0 : i32
    %c0_i32_0 = arith.constant 0 : i32
    %c0_i32_1 = arith.constant 0 : i32
    return %c0_i32, %c0_i32_0 : i32, i32
  }
  func.func @transform_11(%arg0: i32) -> (i32, i32) {
    %c0_i32 = arith.constant 0 : i32
    %c0_i32_0 = arith.constant 0 : i32
    %c0_i32_1 = arith.constant 0 : i32
    return %c0_i32, %c0_i32_0 : i32, i32
  }
  func.func @transform_12(%arg0: i32) -> (i32, i32) {
    %c0_i32 = arith.constant 0 : i32
    %c0_i32_0 = arith.constant 0 : i32
    %c0_i32_1 = arith.constant 0 : i32
    return %c0_i32, %c0_i32_0 : i32, i32
  }
  func.func @transform_13(%arg0: i32) -> (i32, i32) {
    %c0_i32 = arith.constant 0 : i32
    %c0_i32_0 = arith.constant 0 : i32
    %c0_i32_1 = arith.constant 0 : i32
    return %c0_i32, %c0_i32_0 : i32, i32
  }
  func.func @transform_14(%arg0: i32) -> (i32, i32, i32) {
    %c0_i32 = arith.constant 0 : i32
    %c0_i32_0 = arith.constant 0 : i32
    %c0_i32_1 = arith.constant 0 : i32
    return %arg0, %c0_i32, %c0_i32_0 : i32, i32, i32
  }
}

</mosaic_0001>

<llo_original>
// kernel: wan_i2v_cross_attention.1
$region0: #{wan_i2v_cross_attention.1}
  #allocation0 [shape = 'u32[]', space=smem, size = 0x4, offset = 0x4, fixed_abs, tag = 'smem constant byte address 0x4 - core index']
  #allocation1 [shape = 'u32[144,128]{1,0:T(1,128)}', space=vmem, size = 0x12000, scoped, tag = 'internal scratch']
  %s0 = inlined_call_operand.hbm [shape: f32[2,32,64], index: 0, kind: input, shape index: {}]
  %s1 = inlined_call_operand.vmem [shape: f32[2,16,64], index: 1, kind: input, shape index: {}]
  %s2 = inlined_call_operand.vmem [shape: f32[2,8,64], index: 2, kind: input, shape index: {}]
  %s3 = inlined_call_operand.hbm [shape: bf16[64,64], index: 3, kind: input, shape index: {}]
  %s4 = inlined_call_operand.vmem [shape: f32[1,64], index: 4, kind: input, shape index: {}]
  %s5 = inlined_call_operand.hbm [shape: bf16[64,128], index: 5, kind: input, shape index: {}]
  %s6 = inlined_call_operand.hbm [shape: f32[1,128], index: 6, kind: input, shape index: {}]
  %s7 = inlined_call_operand.hbm [shape: bf16[64,128], index: 7, kind: input, shape index: {}]
  %s8 = inlined_call_operand.hbm [shape: f32[1,128], index: 8, kind: input, shape index: {}]
  %s9 = inlined_call_operand.hbm [shape: bf16[4,16,128], index: 9, kind: input, shape index: {}]
  %s10 = inlined_call_operand.hbm [shape: f32[1,128], index: 10, kind: input, shape index: {}]
  %s11 = inlined_call_operand.hbm [shape: f32[1,64], index: 11, kind: input, shape index: {}]
  %s12 = inlined_call_operand.hbm [shape: f32[1,64], index: 12, kind: input, shape index: {}]
  %s13 = inlined_call_operand.hbm [shape: f32[1,64], index: 13, kind: input, shape index: {}]
  %s14 = inlined_call_operand.hbm [shape: f32[2,32,128], index: 14, kind: output, shape index: {}]
  %s15 = sld [smem:[#allocation0]]
  $region110: #{wan_i2v_cross_attention.1} parent=0
    _
  %s17 = ssub.s32 1, %s15
  %s18 = scalar_select 0, %s17, %s15
  $region1: #{wan_i2v_cross_attention.1} parent=0
    #allocation2 [shape = 'u8[32768]{0}', space=vmem, size = 0x8000, scoped, tag = 'input window, operand 0, single buffered']
    #allocation3 [shape = 's32[1]{0}', space=sflag, size = 0x4, scoped, tag = 'scoped memory for wan_i2v_cross_attention.1']
    #allocation4 [shape = 's32[1]{0}', space=sflag, size = 0x4, scoped, tag = 'scoped memory for wan_i2v_cross_attention.1']
    #allocation5 [shape = 'u8[16384]{0}', space=vmem, size = 0x4000, scoped, tag = 'input window, operand 3, single buffered']
    #allocation6 [shape = 's32[1]{0}', space=sflag, size = 0x4, scoped, tag = 'scoped memory for wan_i2v_cross_attention.1']
    #allocation7 [shape = 'u8[16384]{0}', space=vmem, size = 0x4000, scoped, tag = 'input window, operand 5, single buffered']
    #allocation8 [shape = 'u8[512]{0}', space=vmem, size = 0x400, scoped, tag = 'input window, operand 6, single buffered']
    #allocation9 [shape = 's32[1]{0}', space=sflag, size = 0x4, scoped, tag = 'scoped memory for wan_i2v_cross_attention.1']
    #allocation10 [shape = 'u8[16384]{0}', space=vmem, size = 0x4000, scoped, tag = 'input window, operand 7, single buffered']
    #allocation11 [shape = 'u8[512]{0}', space=vmem, size = 0x400, scoped, tag = 'input window, operand 8, single buffered']
    #allocation12 [shape = 's32[1]{0}', space=sflag, size = 0x4, scoped, tag = 'scoped memory for wan_i2v_cross_attention.1']
    #allocation13 [shape = 'u8[16384]{0}', space=vmem, size = 0x4000, scoped, tag = 'input window, operand 9, single buffered']
    #allocation14 [shape = 'u8[512]{0}', space=vmem, size = 0x400, scoped, tag = 'input window, operand 10, single buffered']
    #allocation15 [shape = 's32[1]{0}', space=sflag, size = 0x4, scoped, tag = 'scoped memory for wan_i2v_cross_attention.1']
    #allocation16 [shape = 'u8[512]{0}', space=vmem, size = 0x400, scoped, tag = 'input window, operand 11, single buffered']
    #allocation17 [shape = 'u8[512]{0}', space=vmem, size = 0x400, scoped, tag = 'input window, operand 12, single buffered']
    #allocation18 [shape = 's32[1]{0}', space=sflag, size = 0x4, scoped, tag = 'scoped memory for wan_i2v_cross_attention.1']
    #allocation19 [shape = 'u8[512]{0}', space=vmem, size = 0x400, scoped, tag = 'input window, operand 13, single buffered']
    #allocation20 [shape = 'u8[32768]{0}', space=vmem, size = 0x8000, scoped, tag = 'output window, operand 0, single buffered']
    %19 = vsyncpa [#allocation3], 0
    %20 = vsyncpa [#allocation6], 0
    %21 = vsyncpa [#allocation9], 0
    %22 = vsyncpa [#allocation12], 0
    %23 = vsyncpa [#allocation15], 0
    %24 = vsyncpa [#allocation18], 0
    %25 = vsyncpa [#allocation4], 0
    // Predicated region
    $region2: #{wan_i2v_cross_attention.1} parent=1 // pred_check
      _
    $region3: #{wan_i2v_cross_attention.1} parent=1 // pred_check_branch
      %27 = sbr.rel (0) target = $region5
    $region4: #{wan_i2v_cross_attention.1} parent=1 // pred_region
      %s29 = ssub.s32 1024, 1024
      %30 = vsyncadd [#allocation3], %s29
      %s31 = sshll.u32 [#allocation2], 4
      %s32 = int_to_ptr.vmem [resolvable:$true] %s31
      %37 = dma.hbm_to_vmem [thread:$0]  %s0, 1024, %s32, [#allocation3], 128, 128, 8
    $region5: #{wan_i2v_cross_attention.1} parent=1 // pred_fallthru
      _
    // Predicated region
    $region6: #{wan_i2v_cross_attention.1} parent=1 // pred_check
      _
    $region7: #{wan_i2v_cross_attention.1} parent=1 // pred_check_branch
      %39 = sbr.rel (0) target = $region9
    $region8: #{wan_i2v_cross_attention.1} parent=1 // pred_region
      _
    $region9: #{wan_i2v_cross_attention.1} parent=1 // pred_fallthru
      _
    // Predicated region
    $region10: #{wan_i2v_cross_attention.1} parent=1 // pred_check
      _
    $region11: #{wan_i2v_cross_attention.1} parent=1 // pred_check_branch
      %41 = sbr.rel (0) target = $region13
    $region12: #{wan_i2v_cross_attention.1} parent=1 // pred_region
      _
    $region13: #{wan_i2v_cross_attention.1} parent=1 // pred_fallthru
      _
    // Predicated region
    $region14: #{wan_i2v_cross_attention.1} parent=1 // pred_check
      _
    $region15: #{wan_i2v_cross_attention.1} parent=1 // pred_check_branch
      %43 = sbr.rel (0) target = $region17
    $region16: #{wan_i2v_cross_attention.1} parent=1 // pred_region
      %s45 = ssub.s32 512, 512
      %46 = vsyncadd [#allocation6], %s45
      %s47 = sshll.u32 [#allocation5], 4
      %s48 = int_to_ptr.vmem [resolvable:$true] %s47
      %53 = dma.hbm_to_vmem [thread:$0]  %s3, 512, %s48, [#allocation6], 64, 64, 4
    $region17: #{wan_i2v_cross_attention.1} parent=1 // pred_fallthru
      _
    // Predicated region
    $region18: #{wan_i2v_cross_attention.1} parent=1 // pred_check
      _
    $region19: #{wan_i2v_cross_attention.1} parent=1 // pred_check_branch
      %55 = sbr.rel (0) target = $region21
    $region20: #{wan_i2v_cross_attention.1} parent=1 // pred_region
      _
    $region21: #{wan_i2v_cross_attention.1} parent=1 // pred_fallthru
      _
    // Predicated region
    $region22: #{wan_i2v_cross_attention.1} parent=1 // pred_check
      _
    $region23: #{wan_i2v_cross_attention.1} parent=1 // pred_check_branch
      %57 = sbr.rel (0) target = $region25
    $region24: #{wan_i2v_cross_attention.1} parent=1 // pred_region
      %s59 = ssub.s32 512, 512
      %60 = vsyncadd [#allocation6], %s59
      %s61 = sshll.u32 [#allocation7], 4
      %s62 = int_to_ptr.vmem [resolvable:$true] %s61
      %67 = dma.hbm_to_vmem [thread:$0]  %s5, 512, %s62, [#allocation6], 64, 64, 4
    $region25: #{wan_i2v_cross_attention.1} parent=1 // pred_fallthru
      _
    // Predicated region
    $region26: #{wan_i2v_cross_attention.1} parent=1 // pred_check
      _
    $region27: #{wan_i2v_cross_attention.1} parent=1 // pred_check_branch
      %69 = sbr.rel (0) target = $region29
    $region28: #{wan_i2v_cross_attention.1} parent=1 // pred_region
      %s71 = ssub.s32 16, 16
      %72 = vsyncadd [#allocation9], %s71
      %s74 = sshll.u32 [#allocation8], 4
      %s75 = int_to_ptr.vmem [resolvable:$true] %s74
      %77 = dma.hbm_to_vmem [thread:$0]  %s6, 16, %s75, [#allocation9]
    $region29: #{wan_i2v_cross_attention.1} parent=1 // pred_fallthru
      _
    // Predicated region
    $region30: #{wan_i2v_cross_attention.1} parent=1 // pred_check
      _
    $region31: #{wan_i2v_cross_attention.1} parent=1 // pred_check_branch
      %79 = sbr.rel (0) target = $region33
    $region32: #{wan_i2v_cross_attention.1} parent=1 // pred_region
      %s81 = ssub.s32 512, 512
      %82 = vsyncadd [#allocation9], %s81
      %s83 = sshll.u32 [#allocation10], 4
      %s84 = int_to_ptr.vmem [resolvable:$true] %s83
      %89 = dma.hbm_to_vmem [thread:$0]  %s7, 512, %s84, [#allocation9], 64, 64, 4
    $region33: #{wan_i2v_cross_attention.1} parent=1 // pred_fallthru
      _
    // Predicated region
    $region34: #{wan_i2v_cross_attention.1} parent=1 // pred_check
      _
    $region35: #{wan_i2v_cross_attention.1} parent=1 // pred_check_branch
      %91 = sbr.rel (0) target = $region37
    $region36: #{wan_i2v_cross_attention.1} parent=1 // pred_region
      %s93 = ssub.s32 16, 16
      %94 = vsyncadd [#allocation12], %s93
      %s96 = sshll.u32 [#allocation11], 4
      %s97 = int_to_ptr.vmem [resolvable:$true] %s96
      %99 = dma.hbm_to_vmem [thread:$0]  %s8, 16, %s97, [#allocation12]
    $region37: #{wan_i2v_cross_attention.1} parent=1 // pred_fallthru
      _
    // Predicated region
    $region38: #{wan_i2v_cross_attention.1} parent=1 // pred_check
      _
    $region39: #{wan_i2v_cross_attention.1} parent=1 // pred_check_branch
      %101 = sbr.rel (0) target = $region41
    $region40: #{wan_i2v_cross_attention.1} parent=1 // pred_region
      %s103 = ssub.s32 512, 512
      %104 = vsyncadd [#allocation12], %s103
      %s105 = sshll.u32 [#allocation13], 4
      %s106 = int_to_ptr.vmem [resolvable:$true] %s105
      %111 = dma.hbm_to_vmem [thread:$0]  %s9, 512, %s106, [#allocation12], 64, 64, 4
    $region41: #{wan_i2v_cross_attention.1} parent=1 // pred_fallthru
      _
    // Predicated region
    $region42: #{wan_i2v_cross_attention.1} parent=1 // pred_check
      _
    $region43: #{wan_i2v_cross_attention.1} parent=1 // pred_check_branch
      %113 = sbr.rel (0) target = $region45
    $region44: #{wan_i2v_cross_attention.1} parent=1 // pred_region
      %s115 = ssub.s32 16, 16
      %116 = vsyncadd [#allocation15], %s115
      %s118 = sshll.u32 [#allocation14], 4
      %s119 = int_to_ptr.vmem [resolvable:$true] %s118
      %121 = dma.hbm_to_vmem [thread:$0]  %s10, 16, %s119, [#allocation15]
    $region45: #{wan_i2v_cross_attention.1} parent=1 // pred_fallthru
      _
    // Predicated region
    $region46: #{wan_i2v_cross_attention.1} parent=1 // pred_check
      _
    $region47: #{wan_i2v_cross_attention.1} parent=1 // pred_check_branch
      %123 = sbr.rel (0) target = $region49
    $region48: #{wan_i2v_cross_attention.1} parent=1 // pred_region
      %s125 = ssub.s32 16, 16
      %126 = vsyncadd [#allocation15], %s125
      %s128 = sshll.u32 [#allocation16], 4
      %s129 = int_to_ptr.vmem [resolvable:$true] %s128
      %131 = dma.hbm_to_vmem [thread:$0]  %s11, 16, %s129, [#allocation15]
    $region49: #{wan_i2v_cross_attention.1} parent=1 // pred_fallthru
      _
    // Predicated region
    $region50: #{wan_i2v_cross_attention.1} parent=1 // pred_check
      _
    $region51: #{wan_i2v_cross_attention.1} parent=1 // pred_check_branch
      %133 = sbr.rel (0) target = $region53
    $region52: #{wan_i2v_cross_attention.1} parent=1 // pred_region
      %s135 = ssub.s32 16, 16
      %136 = vsyncadd [#allocation18], %s135
      %s138 = sshll.u32 [#allocation17], 4
      %s139 = int_to_ptr.vmem [resolvable:$true] %s138
      %141 = dma.hbm_to_vmem [thread:$0]  %s12, 16, %s139, [#allocation18]
    $region53: #{wan_i2v_cross_attention.1} parent=1 // pred_fallthru
      _
    // Predicated region
    $region54: #{wan_i2v_cross_attention.1} parent=1 // pred_check
      _
    $region55: #{wan_i2v_cross_attention.1} parent=1 // pred_check_branch
      %143 = sbr.rel (0) target = $region57
    $region56: #{wan_i2v_cross_attention.1} parent=1 // pred_region
      %s145 = ssub.s32 16, 16
      %146 = vsyncadd [#allocation18], %s145
      %s148 = sshll.u32 [#allocation19], 4
      %s149 = int_to_ptr.vmem [resolvable:$true] %s148
      %151 = dma.hbm_to_vmem [thread:$0]  %s13, 16, %s149, [#allocation18]
    $region57: #{wan_i2v_cross_attention.1} parent=1 // pred_fallthru
      _
    // Predicated region
    $region58: #{wan_i2v_cross_attention.1} parent=1 // pred_check
      _
    $region59: #{wan_i2v_cross_attention.1} parent=1 // pred_check_branch
      %153 = sbr.rel (0) target = $region61
    $region60: #{wan_i2v_cross_attention.1} parent=1 // pred_region
      %154 = dma.done [#allocation3], 1024
    $region61: #{wan_i2v_cross_attention.1} parent=1 // pred_fallthru
      _
    // Predicated region
    $region62: #{wan_i2v_cross_attention.1} parent=1 // pred_check
      _
    $region63: #{wan_i2v_cross_attention.1} parent=1 // pred_check_branch
      %156 = sbr.rel (0) target = $region65
    $region64: #{wan_i2v_cross_attention.1} parent=1 // pred_region
      %157 = dma.done [#allocation6], 512
    $region65: #{wan_i2v_cross_attention.1} parent=1 // pred_fallthru
      _
    // Predicated region
    $region66: #{wan_i2v_cross_attention.1} parent=1 // pred_check
      _
    $region67: #{wan_i2v_cross_attention.1} parent=1 // pred_check_branch
      %159 = sbr.rel (0) target = $region69
    $region68: #{wan_i2v_cross_attention.1} parent=1 // pred_region
      %160 = dma.done [#allocation6], 512
    $region69: #{wan_i2v_cross_attention.1} parent=1 // pred_fallthru
      _
    // Predicated region
    $region70: #{wan_i2v_cross_attention.1} parent=1 // pred_check
      _
    $region71: #{wan_i2v_cross_attention.1} parent=1 // pred_check_branch
      %162 = sbr.rel (0) target = $region73
    $region72: #{wan_i2v_cross_attention.1} parent=1 // pred_region
      %163 = dma.done [#allocation9], 16
    $region73: #{wan_i2v_cross_attention.1} parent=1 // pred_fallthru
      _
    // Predicated region
    $region74: #{wan_i2v_cross_attention.1} parent=1 // pred_check
      _
    $region75: #{wan_i2v_cross_attention.1} parent=1 // pred_check_branch
      %165 = sbr.rel (0) target = $region77
    $region76: #{wan_i2v_cross_attention.1} parent=1 // pred_region
      %166 = dma.done [#allocation9], 512
    $region77: #{wan_i2v_cross_attention.1} parent=1 // pred_fallthru
      _
    // Predicated region
    $region78: #{wan_i2v_cross_attention.1} parent=1 // pred_check
      _
    $region79: #{wan_i2v_cross_attention.1} parent=1 // pred_check_branch
      %168 = sbr.rel (0) target = $region81
    $region80: #{wan_i2v_cross_attention.1} parent=1 // pred_region
      %169 = dma.done [#allocation12], 16
    $region81: #{wan_i2v_cross_attention.1} parent=1 // pred_fallthru
      _
    // Predicated region
    $region82: #{wan_i2v_cross_attention.1} parent=1 // pred_check
      _
    $region83: #{wan_i2v_cross_attention.1} parent=1 // pred_check_branch
      %171 = sbr.rel (0) target = $region85
    $region84: #{wan_i2v_cross_attention.1} parent=1 // pred_region
      %172 = dma.done [#allocation12], 512
    $region85: #{wan_i2v_cross_attention.1} parent=1 // pred_fallthru
      _
    // Predicated region
    $region86: #{wan_i2v_cross_attention.1} parent=1 // pred_check
      _
    $region87: #{wan_i2v_cross_attention.1} parent=1 // pred_check_branch
      %174 = sbr.rel (0) target = $region89
    $region88: #{wan_i2v_cross_attention.1} parent=1 // pred_region
      %175 = dma.done [#allocation15], 16
    $region89: #{wan_i2v_cross_attention.1} parent=1 // pred_fallthru
      _
    // Predicated region
    $region90: #{wan_i2v_cross_attention.1} parent=1 // pred_check
      _
    $region91: #{wan_i2v_cross_attention.1} parent=1 // pred_check_branch
      %177 = sbr.rel (0) target = $region93
    $region92: #{wan_i2v_cross_attention.1} parent=1 // pred_region
      %178 = dma.done [#allocation15], 16
    $region93: #{wan_i2v_cross_attention.1} parent=1 // pred_fallthru
      _
    // Predicated region
    $region94: #{wan_i2v_cross_attention.1} parent=1 // pred_check
      _
    $region95: #{wan_i2v_cross_attention.1} parent=1 // pred_check_branch
      %180 = sbr.rel (0) target = $region97
    $region96: #{wan_i2v_cross_attention.1} parent=1 // pred_region
      %181 = dma.done [#allocation18], 16
    $region97: #{wan_i2v_cross_attention.1} parent=1 // pred_fallthru
      _
    // Predicated region
    $region98: #{wan_i2v_cross_attention.1} parent=1 // pred_check
      _
    $region99: #{wan_i2v_cross_attention.1} parent=1 // pred_check_branch
      %183 = sbr.rel (0) target = $region101
    $region100: #{wan_i2v_cross_attention.1} parent=1 // pred_region
      %184 = dma.done [#allocation18], 16
    $region101: #{wan_i2v_cross_attention.1} parent=1 // pred_fallthru
      _
    %v186 = vld [vmem:[#allocation2] sm:$0xff]
    %v187 = vld [vmem:[#allocation2 + $0x8] sm:$0xff]
    %v188 = vld [vmem:[#allocation2 + $0x10] sm:$0xff]
    %v189 = vld [vmem:[#allocation2 + $0x18] sm:$0xff]
    %v190 = vld [vmem:[#allocation2 + $0x20] sm:$0xff]
    %v191 = vld [vmem:[#allocation2 + $0x28] sm:$0xff]
    %v192 = vld [vmem:[#allocation2 + $0x30] sm:$0xff]
    %v193 = vld [vmem:[#allocation2 + $0x38] sm:$0xff]
    %v194 = vpack.c.bf16 %v187, %v186
    %v195 = vpack.c.bf16 %v189, %v188
    %v196 = vpack.c.bf16 %v191, %v190
    %v197 = vpack.c.bf16 %v193, %v192
    %v198 = vld [vmem:[%s1] sm:$0xff]
    %v199 = vld [vmem:[%s1 + $0x8] sm:$0xff]
    %v200 = vld [vmem:[%s1 + $0x10] sm:$0xff]
    %v201 = vld [vmem:[%s1 + $0x18] sm:$0xff]
    %v202 = vpack.c.bf16 %v199, %v198
    %v203 = vpack.c.bf16 %v201, %v200
    %v204 = vld [vmem:[%s2] sm:$0xff]
    %v205 = vld [vmem:[%s2 + $0x8] sm:$0xff]
    %v206 = vpack.c.bf16 %v205, %v204
    %v207 = vld [vmem:[#allocation5] sm:$0xf]
    %v208 = vld [vmem:[#allocation5 + $0x4] sm:$0xf]
    %v209 = vld [vmem:[#allocation5 + $0x8] sm:$0xf]
    %v210 = vld [vmem:[#allocation5 + $0xc] sm:$0xf]
    %v211 = vld [vmem:[#allocation5 + $0x10] sm:$0xf]
    %v212 = vld [vmem:[#allocation5 + $0x14] sm:$0xf]
    %v213 = vld [vmem:[#allocation5 + $0x18] sm:$0xf]
    %v214 = vld [vmem:[#allocation5 + $0x1c] sm:$0xf]
    %v215 = vld [vmem:[%s4] sm:$0x1]
    %v217 = vlaneseq
    %v218 = vshrl.u32 %v217, 7
    %v219 = vsub.s32 0, %v218
    %v220 = vrot.slane %v215, %v219
    %v230 = vunpack.c.l.b16 %v207
    %v231 = vunpack.c.l.b16 %v208
    %v232 = vunpack.c.l.b16 %v209
    %v233 = vunpack.c.l.b16 %v210
    %v234 = vunpack.c.l.b16 %v211
    %v235 = vunpack.c.l.b16 %v212
    %v236 = vunpack.c.l.b16 %v213
    %v237 = vunpack.c.l.b16 %v214
    %v238 = vpack.c.b16 %v231, %v230
    %v239 = vpack.c.b16 %v233, %v232
    %v240 = vpack.c.b16 %v235, %v234
    %v241 = vpack.c.b16 %v237, %v236
    %vm246 = vcmask 523264
    %v248 = vsel %vm246, %v194, 0
    %v251 = vsel %vm246, %v195, 0
    %v254 = vsel %vm246, %v196, 0
    %v257 = vsel %vm246, %v197, 0
    %259 = vmatprep.subr.bf16.mxu0 0
    %260 = vmatpush1.bf16.msra.mxu0 %v238
    %261 = vmatprep.subr.bf16.mxu0 0
    %262 = vmatpush1.bf16.msra.mxu0 %v239
    %263 = vmatprep.subr.bf16.mxu0 0
    %264 = vmatpush1.bf16.msra.mxu0 %v240
    %265 = vmatprep.subr.bf16.mxu0 0
    %266 = vmatpush1.bf16.msra.mxu0 %v241
    %267 = vmatprep.subr.bf16.mxu0 0
    %268 = vmatpush1.bf16.msra.mxu0 0
    %269 = vmatprep.subr.bf16.mxu0 0
    %270 = vmatpush1.bf16.msra.mxu0 0
    %271 = vmatprep.subr.bf16.mxu0 0
    %272 = vmatpush1.bf16.msra.mxu0 0
    %273 = vmatprep.subr.bf16.mxu0 0
    %274 = vmatpush1.bf16.msra.mxu0 0
    %275 = vmatprep.subr.bf16.mxu0 0
    %276 = vmatpush1.bf16.msra.mxu0 0
    %277 = vmatprep.subr.bf16.mxu0 0
    %278 = vmatpush1.bf16.msra.mxu0 0
    %279 = vmatprep.subr.bf16.mxu0 0
    %280 = vmatpush1.bf16.msra.mxu0 0
    %281 = vmatprep.subr.bf16.mxu0 0
    %282 = vmatpush1.bf16.msra.mxu0 0
    %283 = vmatprep.subr.bf16.mxu0 0
    %284 = vmatpush1.bf16.msra.mxu0 0
    %285 = vmatprep.subr.bf16.mxu0 0
    %286 = vmatpush1.bf16.msra.mxu0 0
    %287 = vmatprep.subr.bf16.mxu0 0
    %288 = vmatpush1.bf16.msra.mxu0 0
    %289 = vmatprep.subr.bf16.mxu0 0
    %290 = vmatpush1.bf16.msra.mxu0 0
    %291 = vmatprep.mubr.bf16.mxu0 0
    %292 = vmatmul.mubr.bf16.gmra.mrb[0].mxu0 %v248
    %v293 = vpop.f32.mrb[0].mxu0
    %v294 = vadd.f32 %v220, %v293
    %v295 = vpop.f32.mrb[0].mxu0
    %v296 = vpop.f32.mrb[0].mxu0
    %v297 = vadd.f32 %v220, %v296
    %v298 = vpop.f32.mrb[0].mxu0
    %299 = vmatprep.mubr.bf16.mxu0 0
    %300 = vmatmul.mubr.bf16.gmra.mrb[0].mxu0 %v251
    %v301 = vpop.f32.mrb[0].mxu0
    %v302 = vadd.f32 %v220, %v301
    %v303 = vpop.f32.mrb[0].mxu0
    %v304 = vpop.f32.mrb[0].mxu0
    %v305 = vadd.f32 %v220, %v304
    %v306 = vpop.f32.mrb[0].mxu0
    %307 = vmatprep.mubr.bf16.mxu0 0
    %308 = vmatmul.mubr.bf16.gmra.mrb[0].mxu0 %v254
    %v309 = vpop.f32.mrb[0].mxu0
    %v310 = vadd.f32 %v220, %v309
    %v311 = vpop.f32.mrb[0].mxu0
    %v312 = vpop.f32.mrb[0].mxu0
    %v313 = vadd.f32 %v220, %v312
    %v314 = vpop.f32.mrb[0].mxu0
    %315 = vmatprep.mubr.bf16.mxu0 0
    %316 = vmatmul.mubr.bf16.gmra.mrb[0].mxu0 %v257
    %v317 = vpop.f32.mrb[0].mxu0
    %v318 = vadd.f32 %v220, %v317
    %v319 = vpop.f32.mrb[0].mxu0
    %v320 = vpop.f32.mrb[0].mxu0
    %v321 = vadd.f32 %v220, %v320
    %v322 = vpop.f32.mrb[0].mxu0
    %323 = vdwg.mxu0
    %v324 = vld [vmem:[#allocation16] sm:$0x1]
    %v325 = vmul.f32 %v294, %v294
    %v326 = vmul.f32 %v297, %v297
    %v327 = vmul.f32 %v302, %v302
    %v328 = vmul.f32 %v305, %v305
    %v329 = vmul.f32 %v310, %v310
    %v330 = vmul.f32 %v313, %v313
    %v331 = vmul.f32 %v318, %v318
    %v332 = vmul.f32 %v321, %v321
    %v333 = vsel %vm246, %v325, 0.0
    %334 = vadd.xlane.f32.xlu0 %v333
    %v335 = vpop.xlane.xlu0 %334
    %v336 = vsel %vm246, %v326, 0.0
    %337 = vadd.xlane.f32.xlu0 %v336
    %v338 = vpop.xlane.xlu0 %337
    %v339 = vsel %vm246, %v327, 0.0
    %340 = vadd.xlane.f32.xlu0 %v339
    %v341 = vpop.xlane.xlu0 %340
    %v342 = vsel %vm246, %v328, 0.0
    %343 = vadd.xlane.f32.xlu0 %v342
    %v344 = vpop.xlane.xlu0 %343
    %v345 = vsel %vm246, %v329, 0.0
    %346 = vadd.xlane.f32.xlu0 %v345
    %v347 = vpop.xlane.xlu0 %346
    %v348 = vsel %vm246, %v330, 0.0
    %349 = vadd.xlane.f32.xlu0 %v348
    %v350 = vpop.xlane.xlu0 %349
    %v351 = vsel %vm246, %v331, 0.0
    %352 = vadd.xlane.f32.xlu0 %v351
    %v353 = vpop.xlane.xlu0 %352
    %v354 = vsel %vm246, %v332, 0.0
    %355 = vadd.xlane.f32.xlu0 %v354
    %v356 = vpop.xlane.xlu0 %355
    %v357 = vrcp.pop 64.0
    %v358 = vmul.f32 %v335, %v357
    %v359 = vmul.f32 %v338, %v357
    %v360 = vmul.f32 %v341, %v357
    %v361 = vmul.f32 %v344, %v357
    %v362 = vmul.f32 %v347, %v357
    %v363 = vmul.f32 %v350, %v357
    %v364 = vmul.f32 %v353, %v357
    %v365 = vmul.f32 %v356, %v357
    %v366 = vadd.f32 %v358, 1e-06
    %v367 = vadd.f32 %v359, 1e-06
    %v368 = vadd.f32 %v360, 1e-06
    %v369 = vadd.f32 %v361, 1e-06
    %v370 = vadd.f32 %v362, 1e-06
    %v371 = vadd.f32 %v363, 1e-06
    %v372 = vadd.f32 %v364, 1e-06
    %v373 = vadd.f32 %v365, 1e-06
    %v374 = vrsqrt.pop %v366
    %v375 = vrsqrt.pop %v367
    %v376 = vrsqrt.pop %v368
    %v377 = vrsqrt.pop %v369
    %v378 = vrsqrt.pop %v370
    %v379 = vrsqrt.pop %v371
    %v380 = vrsqrt.pop %v372
    %v381 = vrsqrt.pop %v373
    %v382 = vmul.f32 %v294, %v374
    %v383 = vmul.f32 %v297, %v375
    %v384 = vmul.f32 %v302, %v376
    %v385 = vmul.f32 %v305, %v377
    %v386 = vmul.f32 %v310, %v378
    %v387 = vmul.f32 %v313, %v379
    %v388 = vmul.f32 %v318, %v380
    %v389 = vmul.f32 %v321, %v381
    %v391 = vlaneseq
    %v392 = vshrl.u32 %v391, 7
    %v393 = vsub.s32 0, %v392
    %v394 = vrot.slane %v324, %v393
    %v396 = vmul.f32 %v382, %v394
    %v397 = vmul.f32 %v383, %v394
    %v398 = vmul.f32 %v384, %v394
    %v399 = vmul.f32 %v385, %v394
    %v400 = vmul.f32 %v386, %v394
    %v401 = vmul.f32 %v387, %v394
    %v402 = vmul.f32 %v388, %v394
    %v403 = vmul.f32 %v389, %v394
    %v404 = vld [vmem:[#allocation7] sm:$0xf]
    %v405 = vld [vmem:[#allocation7 + $0x4] sm:$0xf]
    %v406 = vld [vmem:[#allocation7 + $0x8] sm:$0xf]
    %v407 = vld [vmem:[#allocation7 + $0xc] sm:$0xf]
    %v408 = vld [vmem:[#allocation7 + $0x10] sm:$0xf]
    %v409 = vld [vmem:[#allocation7 + $0x14] sm:$0xf]
    %v410 = vld [vmem:[#allocation7 + $0x18] sm:$0xf]
    %v411 = vld [vmem:[#allocation7 + $0x1c] sm:$0xf]
    %v412 = vld [vmem:[#allocation8] sm:$0x1]
    %v414 = vlaneseq
    %v415 = vshrl.u32 %v414, 7
    %v416 = vsub.s32 0, %v415
    %v417 = vrot.slane %v412, %v416
    %v427 = vunpack.c.l.b16 %v404
    %v428 = vunpack.c.l.b16 %v405
    %v429 = vunpack.c.l.b16 %v406
    %v430 = vunpack.c.l.b16 %v407
    %v431 = vunpack.c.l.b16 %v408
    %v432 = vunpack.c.l.b16 %v409
    %v433 = vunpack.c.l.b16 %v410
    %v434 = vunpack.c.l.b16 %v411
    %v435 = vpack.c.b16 %v428, %v427
    %v436 = vpack.c.b16 %v430, %v429
    %v437 = vpack.c.b16 %v432, %v431
    %v438 = vpack.c.b16 %v434, %v433
    %v444 = vsel %vm246, %v202, 0
    %v447 = vsel %vm246, %v203, 0
    %449 = vmatprep.subr.bf16.mxu0 0
    %450 = vmatpush1.bf16.msra.mxu0 %v435
    %451 = vmatprep.subr.bf16.mxu0 0
    %452 = vmatpush1.bf16.msra.mxu0 %v436
    %453 = vmatprep.subr.bf16.mxu0 0
    %454 = vmatpush1.bf16.msra.mxu0 %v437
    %455 = vmatprep.subr.bf16.mxu0 0
    %456 = vmatpush1.bf16.msra.mxu0 %v438
    %457 = vmatprep.subr.bf16.mxu0 0
    %458 = vmatpush1.bf16.msra.mxu0 0
    %459 = vmatprep.subr.bf16.mxu0 0
    %460 = vmatpush1.bf16.msra.mxu0 0
    %461 = vmatprep.subr.bf16.mxu0 0
    %462 = vmatpush1.bf16.msra.mxu0 0
    %463 = vmatprep.subr.bf16.mxu0 0
    %464 = vmatpush1.bf16.msra.mxu0 0
    %465 = vmatprep.subr.bf16.mxu0 0
    %466 = vmatpush1.bf16.msra.mxu0 0
    %467 = vmatprep.subr.bf16.mxu0 0
    %468 = vmatpush1.bf16.msra.mxu0 0
    %469 = vmatprep.subr.bf16.mxu0 0
    %470 = vmatpush1.bf16.msra.mxu0 0
    %471 = vmatprep.subr.bf16.mxu0 0
    %472 = vmatpush1.bf16.msra.mxu0 0
    %473 = vmatprep.subr.bf16.mxu0 0
    %474 = vmatpush1.bf16.msra.mxu0 0
    %475 = vmatprep.subr.bf16.mxu0 0
    %476 = vmatpush1.bf16.msra.mxu0 0
    %477 = vmatprep.subr.bf16.mxu0 0
    %478 = vmatpush1.bf16.msra.mxu0 0
    %479 = vmatprep.subr.bf16.mxu0 0
    %480 = vmatpush1.bf16.msra.mxu0 0
    %481 = vmatprep.mubr.bf16.mxu0 0
    %482 = vmatmul.mubr.bf16.gmra.mrb[0].mxu0 %v444
    %v483 = vpop.f32.mrb[0].mxu0
    %v484 = vadd.f32 %v417, %v483
    %v485 = vpop.f32.mrb[0].mxu0
    %v486 = vpop.f32.mrb[0].mxu0
    %v487 = vadd.f32 %v417, %v486
    %v488 = vpop.f32.mrb[0].mxu0
    %489 = vmatprep.mubr.bf16.mxu0 0
    %490 = vmatmul.mubr.bf16.gmra.mrb[0].mxu0 %v447
    %v491 = vpop.f32.mrb[0].mxu0
    %v492 = vadd.f32 %v417, %v491
    %v493 = vpop.f32.mrb[0].mxu0
    %v494 = vpop.f32.mrb[0].mxu0
    %v495 = vadd.f32 %v417, %v494
    %v496 = vpop.f32.mrb[0].mxu0
    %497 = vdwg.mxu0
    %v498 = vld [vmem:[#allocation10] sm:$0xf]
    %v499 = vld [vmem:[#allocation10 + $0x4] sm:$0xf]
    %v500 = vld [vmem:[#allocation10 + $0x8] sm:$0xf]
    %v501 = vld [vmem:[#allocation10 + $0xc] sm:$0xf]
    %v502 = vld [vmem:[#allocation10 + $0x10] sm:$0xf]
    %v503 = vld [vmem:[#allocation10 + $0x14] sm:$0xf]
    %v504 = vld [vmem:[#allocation10 + $0x18] sm:$0xf]
    %v505 = vld [vmem:[#allocation10 + $0x1c] sm:$0xf]
    %v506 = vld [vmem:[#allocation11] sm:$0x1]
    %v508 = vlaneseq
    %v509 = vshrl.u32 %v508, 7
    %v510 = vsub.s32 0, %v509
    %v511 = vrot.slane %v506, %v510
    %v521 = vunpack.c.l.b16 %v498
    %v522 = vunpack.c.l.b16 %v499
    %v523 = vunpack.c.l.b16 %v500
    %v524 = vunpack.c.l.b16 %v501
    %v525 = vunpack.c.l.b16 %v502
    %v526 = vunpack.c.l.b16 %v503
    %v527 = vunpack.c.l.b16 %v504
    %v528 = vunpack.c.l.b16 %v505
    %v529 = vpack.c.b16 %v522, %v521
    %v530 = vpack.c.b16 %v524, %v523
    %v531 = vpack.c.b16 %v526, %v525
    %v532 = vpack.c.b16 %v528, %v527
    %v538 = vsel %vm246, %v206, 0
    %540 = vmatprep.subr.bf16.mxu0 0
    %541 = vmatpush1.bf16.msra.mxu0 %v529
    %542 = vmatprep.subr.bf16.mxu0 0
    %543 = vmatpush1.bf16.msra.mxu0 %v530
    %544 = vmatprep.subr.bf16.mxu0 0
    %545 = vmatpush1.bf16.msra.mxu0 %v531
    %546 = vmatprep.subr.bf16.mxu0 0
    %547 = vmatpush1.bf16.msra.mxu0 %v532
    %548 = vmatprep.subr.bf16.mxu0 0
    %549 = vmatpush1.bf16.msra.mxu0 0
    %550 = vmatprep.subr.bf16.mxu0 0
    %551 = vmatpush1.bf16.msra.mxu0 0
    %552 = vmatprep.subr.bf16.mxu0 0
    %553 = vmatpush1.bf16.msra.mxu0 0
    %554 = vmatprep.subr.bf16.mxu0 0
    %555 = vmatpush1.bf16.msra.mxu0 0
    %556 = vmatprep.subr.bf16.mxu0 0
    %557 = vmatpush1.bf16.msra.mxu0 0
    %558 = vmatprep.subr.bf16.mxu0 0
    %559 = vmatpush1.bf16.msra.mxu0 0
    %560 = vmatprep.subr.bf16.mxu0 0
    %561 = vmatpush1.bf16.msra.mxu0 0
    %562 = vmatprep.subr.bf16.mxu0 0
    %563 = vmatpush1.bf16.msra.mxu0 0
    %564 = vmatprep.subr.bf16.mxu0 0
    %565 = vmatpush1.bf16.msra.mxu0 0
    %566 = vmatprep.subr.bf16.mxu0 0
    %567 = vmatpush1.bf16.msra.mxu0 0
    %568 = vmatprep.subr.bf16.mxu0 0
    %569 = vmatpush1.bf16.msra.mxu0 0
    %570 = vmatprep.subr.bf16.mxu0 0
    %571 = vmatpush1.bf16.msra.mxu0 0
    %572 = vmatprep.mubr.bf16.mxu0 0
    %573 = vmatmul.mubr.bf16.gmra.mrb[0].mxu0 %v538
    %v574 = vpop.f32.mrb[0].mxu0
    %v575 = vadd.f32 %v511, %v574
    %v576 = vpop.f32.mrb[0].mxu0
    %v577 = vpop.f32.mrb[0].mxu0
    %v578 = vadd.f32 %v511, %v577
    %v579 = vpop.f32.mrb[0].mxu0
    %580 = vdwg.mxu0
    %v581 = vld [vmem:[#allocation17] sm:$0x1]
    %v582 = vmul.f32 %v484, %v484
    %v583 = vmul.f32 %v487, %v487
    %v584 = vmul.f32 %v492, %v492
    %v585 = vmul.f32 %v495, %v495
    %v586 = vsel %vm246, %v582, 0.0
    %587 = vadd.xlane.f32.xlu0 %v586
    %v588 = vpop.xlane.xlu0 %587
    %v589 = vsel %vm246, %v583, 0.0
    %590 = vadd.xlane.f32.xlu0 %v589
    %v591 = vpop.xlane.xlu0 %590
    %v592 = vsel %vm246, %v584, 0.0
    %593 = vadd.xlane.f32.xlu0 %v592
    %v594 = vpop.xlane.xlu0 %593
    %v595 = vsel %vm246, %v585, 0.0
    %596 = vadd.xlane.f32.xlu0 %v595
    %v597 = vpop.xlane.xlu0 %596
    %v598 = vmul.f32 %v588, %v357
    %v599 = vmul.f32 %v591, %v357
    %v600 = vmul.f32 %v594, %v357
    %v601 = vmul.f32 %v597, %v357
    %v602 = vadd.f32 %v598, 1e-06
    %v603 = vadd.f32 %v599, 1e-06
    %v604 = vadd.f32 %v600, 1e-06
    %v605 = vadd.f32 %v601, 1e-06
    %v606 = vrsqrt.pop %v602
    %v607 = vrsqrt.pop %v603
    %v608 = vrsqrt.pop %v604
    %v609 = vrsqrt.pop %v605
    %v610 = vmul.f32 %v484, %v606
    %v611 = vmul.f32 %v487, %v607
    %v612 = vmul.f32 %v492, %v608
    %v613 = vmul.f32 %v495, %v609
    %v615 = vlaneseq
    %v616 = vshrl.u32 %v615, 7
    %v617 = vsub.s32 0, %v616
    %v618 = vrot.slane %v581, %v617
    %v620 = vmul.f32 %v610, %v618
    %v621 = vmul.f32 %v611, %v618
    %v622 = vmul.f32 %v612, %v618
    %v623 = vmul.f32 %v613, %v618
    %v624 = vld [vmem:[#allocation19] sm:$0x1]
    %v625 = vmul.f32 %v575, %v575
    %v626 = vmul.f32 %v578, %v578
    %v627 = vsel %vm246, %v625, 0.0
    %628 = vadd.xlane.f32.xlu0 %v627
    %v629 = vpop.xlane.xlu0 %628
    %v630 = vsel %vm246, %v626, 0.0
    %631 = vadd.xlane.f32.xlu0 %v630
    %v632 = vpop.xlane.xlu0 %631
    %v633 = vmul.f32 %v629, %v357
    %v634 = vmul.f32 %v632, %v357
    %v635 = vadd.f32 %v633, 1e-06
    %v636 = vadd.f32 %v634, 1e-06
    %v637 = vrsqrt.pop %v635
    %v638 = vrsqrt.pop %v636
    %v639 = vmul.f32 %v575, %v637
    %v640 = vmul.f32 %v578, %v638
    %v642 = vlaneseq
    %v643 = vshrl.u32 %v642, 7
    %v644 = vsub.s32 0, %v643
    %v645 = vrot.slane %v624, %v644
    %v647 = vmul.f32 %v639, %v645
    %v648 = vmul.f32 %v640, %v645
    %v649 = vpack.c.bf16 %v397, %v396
    %v650 = vpack.c.bf16 %v399, %v398
    %v651 = vpack.c.bf16 %v401, %v400
    %v652 = vpack.c.bf16 %v403, %v402
    %v653 = vpack.c.bf16 %v621, %v620
    %v654 = vpack.c.bf16 %v647, %v647
    %v655 = vpack.c.bf16 %v623, %v622
    %v656 = vpack.c.bf16 %v648, %v648
    %v657 = vpack.c.bf16 %v487, %v484
    %v658 = vpack.c.bf16 %v575, %v575
    %v659 = vpack.c.bf16 %v495, %v492
    %v660 = vpack.c.bf16 %v578, %v578
    %v661 = vld [vmem:[#allocation14] sm:$0x1]
    %v663 = vlaneseq
    %v664 = vshrl.u32 %v663, 7
    %v665 = vsub.s32 0, %v664
    %v666 = vrot.slane %v661, %v665
    %vm668 = vcmask 130048
    %v670 = vsel %vm668, %v649, 0
    %v673 = vsel %vm668, %v650, 0
    %v676 = vsel %vm668, %v653, 0
    %v679 = vsel %vm668, %v654, 0
    %681 = vmatprep.subr.bf16.mxu0 0
    %682 = vmatpush1.bf16.xpose.msra.mxu0 %v676
    %683 = vmatprep.subr.bf16.mxu0 0
    %684 = vmatpush1.bf16.xpose.msra.mxu0 %v679
    %685 = vmatprep.subr.bf16.mxu0 0
    %686 = vmatpush1.bf16.xpose.msra.mxu0 0
    %687 = vmatprep.subr.bf16.mxu0 0
    %688 = vmatpush1.bf16.xpose.msra.mxu0 0
    %689 = vmatprep.subr.bf16.mxu0 0
    %690 = vmatpush1.bf16.xpose.msra.mxu0 0
    %691 = vmatprep.subr.bf16.mxu0 0
    %692 = vmatpush1.bf16.xpose.msra.mxu0 0
    %693 = vmatprep.subr.bf16.mxu0 0
    %694 = vmatpush1.bf16.xpose.msra.mxu0 0
    %695 = vmatprep.subr.bf16.mxu0 0
    %696 = vmatpush1.bf16.xpose.msra.mxu0 0
    %697 = vmatprep.subr.bf16.mxu0 0
    %698 = vmatpush1.bf16.xpose.msra.mxu0 0
    %699 = vmatprep.subr.bf16.mxu0 0
    %700 = vmatpush1.bf16.xpose.msra.mxu0 0
    %701 = vmatprep.subr.bf16.mxu0 0
    %702 = vmatpush1.bf16.xpose.msra.mxu0 0
    %703 = vmatprep.subr.bf16.mxu0 0
    %704 = vmatpush1.bf16.xpose.msra.mxu0 0
    %705 = vmatprep.subr.bf16.mxu0 0
    %706 = vmatpush1.bf16.xpose.msra.mxu0 0
    %707 = vmatprep.subr.bf16.mxu0 0
    %708 = vmatpush1.bf16.xpose.msra.mxu0 0
    %709 = vmatprep.subr.bf16.mxu0 0
    %710 = vmatpush1.bf16.xpose.msra.mxu0 0
    %711 = vmatprep.subr.bf16.mxu0 0
    %712 = vmatpush1.bf16.xpose.msra.mxu0 0
    %713 = vmatprep.mubr.bf16.mxu0 0
    %714 = vmatmul.mubr.bf16.gmra.mrb[0].mxu0 %v670
    %v715 = vpop.f32.mrb[0].mxu0
    %v716 = vadd.f32 0.0, %v715
    %v717 = vpop.f32.mrb[0].mxu0
    %v718 = vpop.f32.mrb[0].mxu0
    %v719 = vadd.f32 0.0, %v718
    %v720 = vpop.f32.mrb[0].mxu0
    %721 = vmatprep.mubr.bf16.mxu0 0
    %722 = vmatmul.mubr.bf16.gmra.mrb[0].mxu0 %v673
    %v723 = vpop.f32.mrb[0].mxu0
    %v724 = vadd.f32 0.0, %v723
    %v725 = vpop.f32.mrb[0].mxu0
    %v726 = vpop.f32.mrb[0].mxu0
    %v727 = vadd.f32 0.0, %v726
    %v728 = vpop.f32.mrb[0].mxu0
    %729 = vdwg.mxu0
    %v731 = vsel %vm668, %v651, 0
    %v734 = vsel %vm668, %v652, 0
    %v737 = vsel %vm668, %v655, 0
    %v740 = vsel %vm668, %v656, 0
    %742 = vmatprep.subr.bf16.mxu0 0
    %743 = vmatpush1.bf16.xpose.msra.mxu0 %v737
    %744 = vmatprep.subr.bf16.mxu0 0
    %745 = vmatpush1.bf16.xpose.msra.mxu0 %v740
    %746 = vmatprep.subr.bf16.mxu0 0
    %747 = vmatpush1.bf16.xpose.msra.mxu0 0
    %748 = vmatprep.subr.bf16.mxu0 0
    %749 = vmatpush1.bf16.xpose.msra.mxu0 0
    %750 = vmatprep.subr.bf16.mxu0 0
    %751 = vmatpush1.bf16.xpose.msra.mxu0 0
    %752 = vmatprep.subr.bf16.mxu0 0
    %753 = vmatpush1.bf16.xpose.msra.mxu0 0
    %754 = vmatprep.subr.bf16.mxu0 0
    %755 = vmatpush1.bf16.xpose.msra.mxu0 0
    %756 = vmatprep.subr.bf16.mxu0 0
    %757 = vmatpush1.bf16.xpose.msra.mxu0 0
    %758 = vmatprep.subr.bf16.mxu0 0
    %759 = vmatpush1.bf16.xpose.msra.mxu0 0
    %760 = vmatprep.subr.bf16.mxu0 0
    %761 = vmatpush1.bf16.xpose.msra.mxu0 0
    %762 = vmatprep.subr.bf16.mxu0 0
    %763 = vmatpush1.bf16.xpose.msra.mxu0 0
    %764 = vmatprep.subr.bf16.mxu0 0
    %765 = vmatpush1.bf16.xpose.msra.mxu0 0
    %766 = vmatprep.subr.bf16.mxu0 0
    %767 = vmatpush1.bf16.xpose.msra.mxu0 0
    %768 = vmatprep.subr.bf16.mxu0 0
    %769 = vmatpush1.bf16.xpose.msra.mxu0 0
    %770 = vmatprep.subr.bf16.mxu0 0
    %771 = vmatpush1.bf16.xpose.msra.mxu0 0
    %772 = vmatprep.subr.bf16.mxu0 0
    %773 = vmatpush1.bf16.xpose.msra.mxu0 0
    %774 = vmatprep.mubr.bf16.mxu0 0
    %775 = vmatmul.mubr.bf16.gmra.mrb[0].mxu0 %v731
    %v776 = vpop.f32.mrb[0].mxu0
    %v777 = vadd.f32 0.0, %v776
    %v778 = vpop.f32.mrb[0].mxu0
    %v779 = vpop.f32.mrb[0].mxu0
    %v780 = vadd.f32 0.0, %v779
    %v781 = vpop.f32.mrb[0].mxu0
    %782 = vmatprep.mubr.bf16.mxu0 0
    %783 = vmatmul.mubr.bf16.gmra.mrb[0].mxu0 %v734
    %v784 = vpop.f32.mrb[0].mxu0
    %v785 = vadd.f32 0.0, %v784
    %v786 = vpop.f32.mrb[0].mxu0
    %v787 = vpop.f32.mrb[0].mxu0
    %v788 = vadd.f32 0.0, %v787
    %v789 = vpop.f32.mrb[0].mxu0
    %790 = vdwg.mxu0
    %v791 = vsel %vm668, %v716, -inf
    %792 = vmax.xlane.f32.xlu0 %v791
    %v793 = vpop.xlane.xlu0 %792
    %v794 = vsel %vm668, %v719, -inf
    %795 = vmax.xlane.f32.xlu0 %v794
    %v796 = vpop.xlane.xlu0 %795
    %v797 = vsel %vm668, %v724, -inf
    %798 = vmax.xlane.f32.xlu0 %v797
    %v799 = vpop.xlane.xlu0 %798
    %v800 = vsel %vm668, %v727, -inf
    %801 = vmax.xlane.f32.xlu0 %v800
    %v802 = vpop.xlane.xlu0 %801
    %v803 = vsel %vm668, %v777, -inf
    %804 = vmax.xlane.f32.xlu0 %v803
    %v805 = vpop.xlane.xlu0 %804
    %v806 = vsel %vm668, %v780, -inf
    %807 = vmax.xlane.f32.xlu0 %v806
    %v808 = vpop.xlane.xlu0 %807
    %v809 = vsel %vm668, %v785, -inf
    %810 = vmax.xlane.f32.xlu0 %v809
    %v811 = vpop.xlane.xlu0 %810
    %v812 = vsel %vm668, %v788, -inf
    %813 = vmax.xlane.f32.xlu0 %v812
    %v814 = vpop.xlane.xlu0 %813
    %v815 = vsub.f32 %v716, %v793
    %v816 = vsub.f32 %v719, %v796
    %v817 = vsub.f32 %v724, %v799
    %v818 = vsub.f32 %v727, %v802
    %v819 = vsub.f32 %v777, %v805
    %v820 = vsub.f32 %v780, %v808
    %v821 = vsub.f32 %v785, %v811
    %v822 = vsub.f32 %v788, %v814
    %v823 = vmul.f32 %v815, 1.442695
    %v824 = vpow.pop %v823
    %v825 = vmul.f32 %v816, 1.442695
    %v826 = vpow.pop %v825
    %v827 = vmul.f32 %v817, 1.442695
    %v828 = vpow.pop %v827
    %v829 = vmul.f32 %v818, 1.442695
    %v830 = vpow.pop %v829
    %v831 = vmul.f32 %v819, 1.442695
    %v832 = vpow.pop %v831
    %v833 = vmul.f32 %v820, 1.442695
    %v834 = vpow.pop %v833
    %v835 = vmul.f32 %v821, 1.442695
    %v836 = vpow.pop %v835
    %v837 = vmul.f32 %v822, 1.442695
    %v838 = vpow.pop %v837
    %vm839 = vcmask 195712
    %v840 = vsel %vm839, %v716, -inf
    %841 = vmax.xlane.f32.xlu0 %v840
    %v842 = vpop.xlane.xlu0 %841
    %v843 = vsel %vm839, %v719, -inf
    %844 = vmax.xlane.f32.xlu0 %v843
    %v845 = vpop.xlane.xlu0 %844
    %v846 = vsel %vm839, %v724, -inf
    %847 = vmax.xlane.f32.xlu0 %v846
    %v848 = vpop.xlane.xlu0 %847
    %v849 = vsel %vm839, %v727, -inf
    %850 = vmax.xlane.f32.xlu0 %v849
    %v851 = vpop.xlane.xlu0 %850
    %v852 = vsel %vm839, %v777, -inf
    %853 = vmax.xlane.f32.xlu0 %v852
    %v854 = vpop.xlane.xlu0 %853
    %v855 = vsel %vm839, %v780, -inf
    %856 = vmax.xlane.f32.xlu0 %v855
    %v857 = vpop.xlane.xlu0 %856
    %v858 = vsel %vm839, %v785, -inf
    %859 = vmax.xlane.f32.xlu0 %v858
    %v860 = vpop.xlane.xlu0 %859
    %v861 = vsel %vm839, %v788, -inf
    %862 = vmax.xlane.f32.xlu0 %v861
    %v863 = vpop.xlane.xlu0 %862
    %v864 = vsub.f32 %v716, %v842
    %v865 = vsub.f32 %v719, %v845
    %v866 = vsub.f32 %v724, %v848
    %v867 = vsub.f32 %v727, %v851
    %v868 = vsub.f32 %v777, %v854
    %v869 = vsub.f32 %v780, %v857
    %v870 = vsub.f32 %v785, %v860
    %v871 = vsub.f32 %v788, %v863
    %v872 = vmul.f32 %v864, 1.442695
    %v873 = vpow.pop %v872
    %v874 = vmul.f32 %v865, 1.442695
    %v875 = vpow.pop %v874
    %v876 = vmul.f32 %v866, 1.442695
    %v877 = vpow.pop %v876
    %v878 = vmul.f32 %v867, 1.442695
    %v879 = vpow.pop %v878
    %v880 = vmul.f32 %v868, 1.442695
    %v881 = vpow.pop %v880
    %v882 = vmul.f32 %v869, 1.442695
    %v883 = vpow.pop %v882
    %v884 = vmul.f32 %v870, 1.442695
    %v885 = vpow.pop %v884
    %v886 = vmul.f32 %v871, 1.442695
    %v887 = vpow.pop %v886
    %v888 = vsel %vm668, %v824, 0.0
    %889 = vadd.xlane.f32.xlu0 %v888
    %v890 = vpop.xlane.xlu0 %889
    %v891 = vsel %vm668, %v826, 0.0
    %892 = vadd.xlane.f32.xlu0 %v891
    %v893 = vpop.xlane.xlu0 %892
    %v894 = vsel %vm668, %v828, 0.0
    %895 = vadd.xlane.f32.xlu0 %v894
    %v896 = vpop.xlane.xlu0 %895
    %v897 = vsel %vm668, %v830, 0.0
    %898 = vadd.xlane.f32.xlu0 %v897
    %v899 = vpop.xlane.xlu0 %898
    %v900 = vsel %vm668, %v832, 0.0
    %901 = vadd.xlane.f32.xlu0 %v900
    %v902 = vpop.xlane.xlu0 %901
    %v903 = vsel %vm668, %v834, 0.0
    %904 = vadd.xlane.f32.xlu0 %v903
    %v905 = vpop.xlane.xlu0 %904
    %v906 = vsel %vm668, %v836, 0.0
    %907 = vadd.xlane.f32.xlu0 %v906
    %v908 = vpop.xlane.xlu0 %907
    %v909 = vsel %vm668, %v838, 0.0
    %910 = vadd.xlane.f32.xlu0 %v909
    %v911 = vpop.xlane.xlu0 %910
    %v912 = vrcp.pop %v890
    %v913 = vrcp.pop %v893
    %v914 = vrcp.pop %v896
    %v915 = vrcp.pop %v899
    %v916 = vrcp.pop %v902
    %v917 = vrcp.pop %v905
    %v918 = vrcp.pop %v908
    %v919 = vrcp.pop %v911
    %928 = vrot.lane.b32.xlu0 %v873, 112
    %v929 = vpop.permute.xlu0 %928
    %930 = vrot.lane.b32.xlu0 %v875, 112
    %v931 = vpop.permute.xlu0 %930
    %932 = vrot.lane.b32.xlu0 %v877, 112
    %v933 = vpop.permute.xlu0 %932
    %934 = vrot.lane.b32.xlu0 %v879, 112
    %v935 = vpop.permute.xlu0 %934
    %936 = vrot.lane.b32.xlu0 %v881, 112
    %v937 = vpop.permute.xlu0 %936
    %938 = vrot.lane.b32.xlu0 %v883, 112
    %v939 = vpop.permute.xlu0 %938
    %940 = vrot.lane.b32.xlu0 %v885, 112
    %v941 = vpop.permute.xlu0 %940
    %942 = vrot.lane.b32.xlu0 %v887, 112
    %v943 = vpop.permute.xlu0 %942
    %vm952 = vcmask 64512
    %v953 = vsel %vm952, %v929, 0.0
    %954 = vadd.xlane.f32.xlu0 %v953
    %v955 = vpop.xlane.xlu0 %954
    %v956 = vsel %vm952, %v931, 0.0
    %957 = vadd.xlane.f32.xlu0 %v956
    %v958 = vpop.xlane.xlu0 %957
    %v959 = vsel %vm952, %v933, 0.0
    %960 = vadd.xlane.f32.xlu0 %v959
    %v961 = vpop.xlane.xlu0 %960
    %v962 = vsel %vm952, %v935, 0.0
    %963 = vadd.xlane.f32.xlu0 %v962
    %v964 = vpop.xlane.xlu0 %963
    %v965 = vsel %vm952, %v937, 0.0
    %966 = vadd.xlane.f32.xlu0 %v965
    %v967 = vpop.xlane.xlu0 %966
    %v968 = vsel %vm952, %v939, 0.0
    %969 = vadd.xlane.f32.xlu0 %v968
    %v970 = vpop.xlane.xlu0 %969
    %v971 = vsel %vm952, %v941, 0.0
    %972 = vadd.xlane.f32.xlu0 %v971
    %v973 = vpop.xlane.xlu0 %972
    %v974 = vsel %vm952, %v943, 0.0
    %975 = vadd.xlane.f32.xlu0 %v974
    %v976 = vpop.xlane.xlu0 %975
    %v977 = vrcp.pop %v955
    %v978 = vrcp.pop %v958
    %v979 = vrcp.pop %v961
    %v980 = vrcp.pop %v964
    %v981 = vrcp.pop %v967
    %v982 = vrcp.pop %v970
    %v983 = vrcp.pop %v973
    %v984 = vrcp.pop %v976
    %v985 = vmul.f32 %v824, %v912
    %v986 = vmul.f32 %v826, %v913
    %v987 = vmul.f32 %v828, %v914
    %v988 = vmul.f32 %v830, %v915
    %v989 = vmul.f32 %v832, %v916
    %v990 = vmul.f32 %v834, %v917
    %v991 = vmul.f32 %v836, %v918
    %v992 = vmul.f32 %v838, %v919
    %v993 = vmul.f32 %v873, %v977
    %v994 = vmul.f32 %v875, %v978
    %v995 = vmul.f32 %v877, %v979
    %v996 = vmul.f32 %v879, %v980
    %v997 = vmul.f32 %v881, %v981
    %v998 = vmul.f32 %v883, %v982
    %v999 = vmul.f32 %v885, %v983
    %v1000 = vmul.f32 %v887, %v984
    %v1001 = vsel %vm668, %v985, %v993
    %v1002 = vsel %vm668, %v986, %v994
    %v1003 = vsel %vm668, %v987, %v995
    %v1004 = vsel %vm668, %v988, %v996
    %v1005 = vsel %vm668, %v989, %v997
    %v1006 = vsel %vm668, %v990, %v998
    %v1007 = vsel %vm668, %v991, %v999
    %v1008 = vsel %vm668, %v992, %v1000
    %v1009 = vpack.c.bf16 %v1002, %v1001
    %v1010 = vpack.c.bf16 %v1004, %v1003
    %v1011 = vpack.c.bf16 %v1006, %v1005
    %v1012 = vpack.c.bf16 %v1008, %v1007
    %1015 = vrot.lane.b32.xlu0 %v657, 64
    %v1016 = vpop.permute.xlu0 %1015
    %1017 = vrot.lane.b32.xlu0 %v658, 64
    %v1018 = vpop.permute.xlu0 %1017
    %vm1020 = vcmask 195584
    %v1022 = vsel %vm1020, %v1009, 0
    %v1025 = vsel %vm1020, %v1010, 0
    %vm1027 = vcmask 1043456
    %v1029 = vsel %vm1027, %v1018, 0
    %1031 = vmatprep.subr.bf16.mxu0 0
    %1032 = vmatpush1.bf16.msra.mxu0 %v1016
    %1033 = vmatprep.subr.bf16.mxu0 0
    %1034 = vmatpush1.bf16.msra.mxu0 %v1029
    %1035 = vmatprep.subr.bf16.mxu0 0
    %1036 = vmatpush1.bf16.msra.mxu0 0
    %1037 = vmatprep.subr.bf16.mxu0 0
    %1038 = vmatpush1.bf16.msra.mxu0 0
    %1039 = vmatprep.subr.bf16.mxu0 0
    %1040 = vmatpush1.bf16.msra.mxu0 0
    %1041 = vmatprep.subr.bf16.mxu0 0
    %1042 = vmatpush1.bf16.msra.mxu0 0
    %1043 = vmatprep.subr.bf16.mxu0 0
    %1044 = vmatpush1.bf16.msra.mxu0 0
    %1045 = vmatprep.subr.bf16.mxu0 0
    %1046 = vmatpush1.bf16.msra.mxu0 0
    %1047 = vmatprep.subr.bf16.mxu0 0
    %1048 = vmatpush1.bf16.msra.mxu0 0
    %1049 = vmatprep.subr.bf16.mxu0 0
    %1050 = vmatpush1.bf16.msra.mxu0 0
    %1051 = vmatprep.subr.bf16.mxu0 0
    %1052 = vmatpush1.bf16.msra.mxu0 0
    %1053 = vmatprep.subr.bf16.mxu0 0
    %1054 = vmatpush1.bf16.msra.mxu0 0
    %1055 = vmatprep.subr.bf16.mxu0 0
    %1056 = vmatpush1.bf16.msra.mxu0 0
    %1057 = vmatprep.subr.bf16.mxu0 0
    %1058 = vmatpush1.bf16.msra.mxu0 0
    %1059 = vmatprep.subr.bf16.mxu0 0
    %1060 = vmatpush1.bf16.msra.mxu0 0
    %1061 = vmatprep.subr.bf16.mxu0 0
    %1062 = vmatpush1.bf16.msra.mxu0 0
    %1063 = vmatprep.mubr.bf16.mxu0 0
    %1064 = vmatmul.mubr.bf16.gmra.mrb[0].mxu0 %v1022
    %v1065 = vpop.f32.mrb[0].mxu0
    %v1066 = vadd.f32 0.0, %v1065
    %v1067 = vpop.f32.mrb[0].mxu0
    %v1068 = vpop.f32.mrb[0].mxu0
    %v1069 = vadd.f32 0.0, %v1068
    %v1070 = vpop.f32.mrb[0].mxu0
    %1071 = vmatprep.mubr.bf16.mxu0 0
    %1072 = vmatmul.mubr.bf16.gmra.mrb[0].mxu0 %v1025
    %v1073 = vpop.f32.mrb[0].mxu0
    %v1074 = vadd.f32 0.0, %v1073
    %v1075 = vpop.f32.mrb[0].mxu0
    %v1076 = vpop.f32.mrb[0].mxu0
    %v1077 = vadd.f32 0.0, %v1076
    %v1078 = vpop.f32.mrb[0].mxu0
    %1079 = vdwg.mxu0
    %1082 = vrot.lane.b32.xlu0 %v659, 64
    %v1083 = vpop.permute.xlu0 %1082
    %1084 = vrot.lane.b32.xlu0 %v660, 64
    %v1085 = vpop.permute.xlu0 %1084
    %v1088 = vsel %vm1020, %v1011, 0
    %v1091 = vsel %vm1020, %v1012, 0
    %v1094 = vsel %vm1027, %v1085, 0
    %1096 = vmatprep.subr.bf16.mxu0 0
    %1097 = vmatpush1.bf16.msra.mxu0 %v1083
    %1098 = vmatprep.subr.bf16.mxu0 0
    %1099 = vmatpush1.bf16.msra.mxu0 %v1094
    %1100 = vmatprep.subr.bf16.mxu0 0
    %1101 = vmatpush1.bf16.msra.mxu0 0
    %1102 = vmatprep.subr.bf16.mxu0 0
    %1103 = vmatpush1.bf16.msra.mxu0 0
    %1104 = vmatprep.subr.bf16.mxu0 0
    %1105 = vmatpush1.bf16.msra.mxu0 0
    %1106 = vmatprep.subr.bf16.mxu0 0
    %1107 = vmatpush1.bf16.msra.mxu0 0
    %1108 = vmatprep.subr.bf16.mxu0 0
    %1109 = vmatpush1.bf16.msra.mxu0 0
    %1110 = vmatprep.subr.bf16.mxu0 0
    %1111 = vmatpush1.bf16.msra.mxu0 0
    %1112 = vmatprep.subr.bf16.mxu0 0
    %1113 = vmatpush1.bf16.msra.mxu0 0
    %1114 = vmatprep.subr.bf16.mxu0 0
    %1115 = vmatpush1.bf16.msra.mxu0 0
    %1116 = vmatprep.subr.bf16.mxu0 0
    %1117 = vmatpush1.bf16.msra.mxu0 0
    %1118 = vmatprep.subr.bf16.mxu0 0
    %1119 = vmatpush1.bf16.msra.mxu0 0
    %1120 = vmatprep.subr.bf16.mxu0 0
    %1121 = vmatpush1.bf16.msra.mxu0 0
    %1122 = vmatprep.subr.bf16.mxu0 0
    %1123 = vmatpush1.bf16.msra.mxu0 0
    %1124 = vmatprep.subr.bf16.mxu0 0
    %1125 = vmatpush1.bf16.msra.mxu0 0
    %1126 = vmatprep.subr.bf16.mxu0 0
    %1127 = vmatpush1.bf16.msra.mxu0 0
    %1128 = vmatprep.mubr.bf16.mxu0 0
    %1129 = vmatmul.mubr.bf16.gmra.mrb[0].mxu0 %v1088
    %v1130 = vpop.f32.mrb[0].mxu0
    %v1131 = vadd.f32 0.0, %v1130
    %v1132 = vpop.f32.mrb[0].mxu0
    %v1133 = vpop.f32.mrb[0].mxu0
    %v1134 = vadd.f32 0.0, %v1133
    %v1135 = vpop.f32.mrb[0].mxu0
    %1136 = vmatprep.mubr.bf16.mxu0 0
    %1137 = vmatmul.mubr.bf16.gmra.mrb[0].mxu0 %v1091
    %v1138 = vpop.f32.mrb[0].mxu0
    %v1139 = vadd.f32 0.0, %v1138
    %v1140 = vpop.f32.mrb[0].mxu0
    %v1141 = vpop.f32.mrb[0].mxu0
    %v1142 = vadd.f32 0.0, %v1141
    %v1143 = vpop.f32.mrb[0].mxu0
    %1144 = vdwg.mxu0
    %v1145 = vpack.c.bf16 %v1069, %v1066
    %v1146 = vpack.c.bf16 %v1077, %v1074
    %v1147 = vpack.c.bf16 %v1134, %v1131
    %v1148 = vpack.c.bf16 %v1142, %v1139
    %v1149 = vld [vmem:[#allocation13] sm:$0xf]
    %v1150 = vld [vmem:[#allocation13 + $0x4] sm:$0xf]
    %v1153 = vunpack.c.l.b16 %v1149
    %v1154 = vunpack.c.l.b16 %v1150
    %v1155 = vpack.c.b16 %v1154, %v1153
    %v1158 = vsel %vm668, %v1145, 0
    %v1161 = vsel %vm668, %v1146, 0
    %v1164 = vsel %vm668, %v1147, 0
    %v1167 = vsel %vm668, %v1148, 0
    %1169 = vmatprep.subr.bf16.mxu0 0
    %1170 = vmatpush1.bf16.msra.mxu0 %v1155
    %1171 = vmatprep.subr.bf16.mxu0 0
    %1172 = vmatpush1.bf16.msra.mxu0 0
    %1173 = vmatprep.subr.bf16.mxu0 0
    %1174 = vmatpush1.bf16.msra.mxu0 0
    %1175 = vmatprep.subr.bf16.mxu0 0
    %1176 = vmatpush1.bf16.msra.mxu0 0
    %1177 = vmatprep.subr.bf16.mxu0 0
    %1178 = vmatpush1.bf16.msra.mxu0 0
    %1179 = vmatprep.subr.bf16.mxu0 0
    %1180 = vmatpush1.bf16.msra.mxu0 0
    %1181 = vmatprep.subr.bf16.mxu0 0
    %1182 = vmatpush1.bf16.msra.mxu0 0
    %1183 = vmatprep.subr.bf16.mxu0 0
    %1184 = vmatpush1.bf16.msra.mxu0 0
    %1185 = vmatprep.subr.bf16.mxu0 0
    %1186 = vmatpush1.bf16.msra.mxu0 0
    %1187 = vmatprep.subr.bf16.mxu0 0
    %1188 = vmatpush1.bf16.msra.mxu0 0
    %1189 = vmatprep.subr.bf16.mxu0 0
    %1190 = vmatpush1.bf16.msra.mxu0 0
    %1191 = vmatprep.subr.bf16.mxu0 0
    %1192 = vmatpush1.bf16.msra.mxu0 0
    %1193 = vmatprep.subr.bf16.mxu0 0
    %1194 = vmatpush1.bf16.msra.mxu0 0
    %1195 = vmatprep.subr.bf16.mxu0 0
    %1196 = vmatpush1.bf16.msra.mxu0 0
    %1197 = vmatprep.subr.bf16.mxu0 0
    %1198 = vmatpush1.bf16.msra.mxu0 0
    %1199 = vmatprep.subr.bf16.mxu0 0
    %1200 = vmatpush1.bf16.msra.mxu0 0
    %1201 = vmatprep.mubr.bf16.mxu0 0
    %1202 = vmatmul.mubr.bf16.gmra.mrb[0].mxu0 %v1158
    %v1203 = vpop.f32.mrb[0].mxu0
    %v1204 = vadd.f32 0.0, %v1203
    %v1205 = vpop.f32.mrb[0].mxu0
    %v1206 = vpop.f32.mrb[0].mxu0
    %v1207 = vadd.f32 0.0, %v1206
    %v1208 = vpop.f32.mrb[0].mxu0
    %1209 = vmatprep.mubr.bf16.mxu0 0
    %1210 = vmatmul.mubr.bf16.gmra.mrb[0].mxu0 %v1161
    %v1211 = vpop.f32.mrb[0].mxu0
    %v1212 = vadd.f32 0.0, %v1211
    %v1213 = vpop.f32.mrb[0].mxu0
    %v1214 = vpop.f32.mrb[0].mxu0
    %v1215 = vadd.f32 0.0, %v1214
    %v1216 = vpop.f32.mrb[0].mxu0
    %1217 = vmatprep.mubr.bf16.mxu0 0
    %1218 = vmatmul.mubr.bf16.gmra.mrb[0].mxu0 %v1164
    %v1219 = vpop.f32.mrb[0].mxu0
    %v1220 = vadd.f32 0.0, %v1219
    %v1221 = vpop.f32.mrb[0].mxu0
    %v1222 = vpop.f32.mrb[0].mxu0
    %v1223 = vadd.f32 0.0, %v1222
    %v1224 = vpop.f32.mrb[0].mxu0
    %1225 = vmatprep.mubr.bf16.mxu0 0
    %1226 = vmatmul.mubr.bf16.gmra.mrb[0].mxu0 %v1167
    %v1227 = vpop.f32.mrb[0].mxu0
    %v1228 = vadd.f32 0.0, %v1227
    %v1229 = vpop.f32.mrb[0].mxu0
    %v1230 = vpop.f32.mrb[0].mxu0
    %v1231 = vadd.f32 0.0, %v1230
    %v1232 = vpop.f32.mrb[0].mxu0
    %1233 = vdwg.mxu0
    %v1234 = vadd.f32 %v666, %v1204
    %v1235 = vadd.f32 %v666, %v1207
    %v1236 = vadd.f32 %v666, %v1212
    %v1237 = vadd.f32 %v666, %v1215
    %v1238 = vadd.f32 %v666, %v1220
    %v1239 = vadd.f32 %v666, %v1223
    %v1240 = vadd.f32 %v666, %v1228
    %v1241 = vadd.f32 %v666, %v1231
    %1244 = vrot.lane.b32.xlu0 %v649, 112
    %v1245 = vpop.permute.xlu0 %1244
    %1246 = vrot.lane.b32.xlu0 %v650, 112
    %v1247 = vpop.permute.xlu0 %1246
    %1250 = vrot.lane.b32.xlu0 %v653, 112
    %v1251 = vpop.permute.xlu0 %1250
    %1252 = vrot.lane.b32.xlu0 %v654, 112
    %v1253 = vpop.permute.xlu0 %1252
    %v1255 = vsel %vm668, %v1245, 0
    %v1258 = vsel %vm668, %v1247, 0
    %v1261 = vsel %vm668, %v1251, 0
    %v1264 = vsel %vm668, %v1253, 0
    %1266 = vmatprep.subr.bf16.mxu0 0
    %1267 = vmatpush1.bf16.xpose.msra.mxu0 %v1261
    %1268 = vmatprep.subr.bf16.mxu0 0
    %1269 = vmatpush1.bf16.xpose.msra.mxu0 %v1264
    %1270 = vmatprep.subr.bf16.mxu0 0
    %1271 = vmatpush1.bf16.xpose.msra.mxu0 0
    %1272 = vmatprep.subr.bf16.mxu0 0
    %1273 = vmatpush1.bf16.xpose.msra.mxu0 0
    %1274 = vmatprep.subr.bf16.mxu0 0
    %1275 = vmatpush1.bf16.xpose.msra.mxu0 0
    %1276 = vmatprep.subr.bf16.mxu0 0
    %1277 = vmatpush1.bf16.xpose.msra.mxu0 0
    %1278 = vmatprep.subr.bf16.mxu0 0
    %1279 = vmatpush1.bf16.xpose.msra.mxu0 0
    %1280 = vmatprep.subr.bf16.mxu0 0
    %1281 = vmatpush1.bf16.xpose.msra.mxu0 0
    %1282 = vmatprep.subr.bf16.mxu0 0
    %1283 = vmatpush1.bf16.xpose.msra.mxu0 0
    %1284 = vmatprep.subr.bf16.mxu0 0
    %1285 = vmatpush1.bf16.xpose.msra.mxu0 0
    %1286 = vmatprep.subr.bf16.mxu0 0
    %1287 = vmatpush1.bf16.xpose.msra.mxu0 0
    %1288 = vmatprep.subr.bf16.mxu0 0
    %1289 = vmatpush1.bf16.xpose.msra.mxu0 0
    %1290 = vmatprep.subr.bf16.mxu0 0
    %1291 = vmatpush1.bf16.xpose.msra.mxu0 0
    %1292 = vmatprep.subr.bf16.mxu0 0
    %1293 = vmatpush1.bf16.xpose.msra.mxu0 0
    %1294 = vmatprep.subr.bf16.mxu0 0
    %1295 = vmatpush1.bf16.xpose.msra.mxu0 0
    %1296 = vmatprep.subr.bf16.mxu0 0
    %1297 = vmatpush1.bf16.xpose.msra.mxu0 0
    %1298 = vmatprep.mubr.bf16.mxu0 0
    %1299 = vmatmul.mubr.bf16.gmra.mrb[0].mxu0 %v1255
    %v1300 = vpop.f32.mrb[0].mxu0
    %v1301 = vadd.f32 0.0, %v1300
    %v1302 = vpop.f32.mrb[0].mxu0
    %v1303 = vpop.f32.mrb[0].mxu0
    %v1304 = vadd.f32 0.0, %v1303
    %v1305 = vpop.f32.mrb[0].mxu0
    %1306 = vmatprep.mubr.bf16.mxu0 0
    %1307 = vmatmul.mubr.bf16.gmra.mrb[0].mxu0 %v1258
    %v1308 = vpop.f32.mrb[0].mxu0
    %v1309 = vadd.f32 0.0, %v1308
    %v1310 = vpop.f32.mrb[0].mxu0
    %v1311 = vpop.f32.mrb[0].mxu0
    %v1312 = vadd.f32 0.0, %v1311
    %v1313 = vpop.f32.mrb[0].mxu0
    %1314 = vdwg.mxu0
    %1317 = vrot.lane.b32.xlu0 %v651, 112
    %v1318 = vpop.permute.xlu0 %1317
    %1319 = vrot.lane.b32.xlu0 %v652, 112
    %v1320 = vpop.permute.xlu0 %1319
    %1323 = vrot.lane.b32.xlu0 %v655, 112
    %v1324 = vpop.permute.xlu0 %1323
    %1325 = vrot.lane.b32.xlu0 %v656, 112
    %v1326 = vpop.permute.xlu0 %1325
    %v1328 = vsel %vm668, %v1318, 0
    %v1331 = vsel %vm668, %v1320, 0
    %v1334 = vsel %vm668, %v1324, 0
    %v1337 = vsel %vm668, %v1326, 0
    %1339 = vmatprep.subr.bf16.mxu0 0
    %1340 = vmatpush1.bf16.xpose.msra.mxu0 %v1334
    %1341 = vmatprep.subr.bf16.mxu0 0
    %1342 = vmatpush1.bf16.xpose.msra.mxu0 %v1337
    %1343 = vmatprep.subr.bf16.mxu0 0
    %1344 = vmatpush1.bf16.xpose.msra.mxu0 0
    %1345 = vmatprep.subr.bf16.mxu0 0
    %1346 = vmatpush1.bf16.xpose.msra.mxu0 0
    %1347 = vmatprep.subr.bf16.mxu0 0
    %1348 = vmatpush1.bf16.xpose.msra.mxu0 0
    %1349 = vmatprep.subr.bf16.mxu0 0
    %1350 = vmatpush1.bf16.xpose.msra.mxu0 0
    %1351 = vmatprep.subr.bf16.mxu0 0
    %1352 = vmatpush1.bf16.xpose.msra.mxu0 0
    %1353 = vmatprep.subr.bf16.mxu0 0
    %1354 = vmatpush1.bf16.xpose.msra.mxu0 0
    %1355 = vmatprep.subr.bf16.mxu0 0
    %1356 = vmatpush1.bf16.xpose.msra.mxu0 0
    %1357 = vmatprep.subr.bf16.mxu0 0
    %1358 = vmatpush1.bf16.xpose.msra.mxu0 0
    %1359 = vmatprep.subr.bf16.mxu0 0
    %1360 = vmatpush1.bf16.xpose.msra.mxu0 0
    %1361 = vmatprep.subr.bf16.mxu0 0
    %1362 = vmatpush1.bf16.xpose.msra.mxu0 0
    %1363 = vmatprep.subr.bf16.mxu0 0
    %1364 = vmatpush1.bf16.xpose.msra.mxu0 0
    %1365 = vmatprep.subr.bf16.mxu0 0
    %1366 = vmatpush1.bf16.xpose.msra.mxu0 0
    %1367 = vmatprep.subr.bf16.mxu0 0
    %1368 = vmatpush1.bf16.xpose.msra.mxu0 0
    %1369 = vmatprep.subr.bf16.mxu0 0
    %1370 = vmatpush1.bf16.xpose.msra.mxu0 0
    %1371 = vmatprep.mubr.bf16.mxu0 0
    %1372 = vmatmul.mubr.bf16.gmra.mrb[0].mxu0 %v1328
    %v1373 = vpop.f32.mrb[0].mxu0
    %v1374 = vadd.f32 0.0, %v1373
    %v1375 = vpop.f32.mrb[0].mxu0
    %v1376 = vpop.f32.mrb[0].mxu0
    %v1377 = vadd.f32 0.0, %v1376
    %v1378 = vpop.f32.mrb[0].mxu0
    %1379 = vmatprep.mubr.bf16.mxu0 0
    %1380 = vmatmul.mubr.bf16.gmra.mrb[0].mxu0 %v1331
    %v1381 = vpop.f32.mrb[0].mxu0
    %v1382 = vadd.f32 0.0, %v1381
    %v1383 = vpop.f32.mrb[0].mxu0
    %v1384 = vpop.f32.mrb[0].mxu0
    %v1385 = vadd.f32 0.0, %v1384
    %v1386 = vpop.f32.mrb[0].mxu0
    %1387 = vdwg.mxu0
    %v1388 = vsel %vm668, %v1301, -inf
    %1389 = vmax.xlane.f32.xlu0 %v1388
    %v1390 = vpop.xlane.xlu0 %1389
    %v1391 = vsel %vm668, %v1304, -inf
    %1392 = vmax.xlane.f32.xlu0 %v1391
    %v1393 = vpop.xlane.xlu0 %1392
    %v1394 = vsel %vm668, %v1309, -inf
    %1395 = vmax.xlane.f32.xlu0 %v1394
    %v1396 = vpop.xlane.xlu0 %1395
    %v1397 = vsel %vm668, %v1312, -inf
    %1398 = vmax.xlane.f32.xlu0 %v1397
    %v1399 = vpop.xlane.xlu0 %1398
    %v1400 = vsel %vm668, %v1374, -inf
    %1401 = vmax.xlane.f32.xlu0 %v1400
    %v1402 = vpop.xlane.xlu0 %1401
    %v1403 = vsel %vm668, %v1377, -inf
    %1404 = vmax.xlane.f32.xlu0 %v1403
    %v1405 = vpop.xlane.xlu0 %1404
    %v1406 = vsel %vm668, %v1382, -inf
    %1407 = vmax.xlane.f32.xlu0 %v1406
    %v1408 = vpop.xlane.xlu0 %1407
    %v1409 = vsel %vm668, %v1385, -inf
    %1410 = vmax.xlane.f32.xlu0 %v1409
    %v1411 = vpop.xlane.xlu0 %1410
    %v1412 = vsub.f32 %v1301, %v1390
    %v1413 = vsub.f32 %v1304, %v1393
    %v1414 = vsub.f32 %v1309, %v1396
    %v1415 = vsub.f32 %v1312, %v1399
    %v1416 = vsub.f32 %v1374, %v1402
    %v1417 = vsub.f32 %v1377, %v1405
    %v1418 = vsub.f32 %v1382, %v1408
    %v1419 = vsub.f32 %v1385, %v1411
    %v1420 = vmul.f32 %v1412, 1.442695
    %v1421 = vpow.pop %v1420
    %v1422 = vmul.f32 %v1413, 1.442695
    %v1423 = vpow.pop %v1422
    %v1424 = vmul.f32 %v1414, 1.442695
    %v1425 = vpow.pop %v1424
    %v1426 = vmul.f32 %v1415, 1.442695
    %v1427 = vpow.pop %v1426
    %v1428 = vmul.f32 %v1416, 1.442695
    %v1429 = vpow.pop %v1428
    %v1430 = vmul.f32 %v1417, 1.442695
    %v1431 = vpow.pop %v1430
    %v1432 = vmul.f32 %v1418, 1.442695
    %v1433 = vpow.pop %v1432
    %v1434 = vmul.f32 %v1419, 1.442695
    %v1435 = vpow.pop %v1434
    %v1436 = vsel %vm839, %v1301, -inf
    %1437 = vmax.xlane.f32.xlu0 %v1436
    %v1438 = vpop.xlane.xlu0 %1437
    %v1439 = vsel %vm839, %v1304, -inf
    %1440 = vmax.xlane.f32.xlu0 %v1439
    %v1441 = vpop.xlane.xlu0 %1440
    %v1442 = vsel %vm839, %v1309, -inf
    %1443 = vmax.xlane.f32.xlu0 %v1442
    %v1444 = vpop.xlane.xlu0 %1443
    %v1445 = vsel %vm839, %v1312, -inf
    %1446 = vmax.xlane.f32.xlu0 %v1445
    %v1447 = vpop.xlane.xlu0 %1446
    %v1448 = vsel %vm839, %v1374, -inf
    %1449 = vmax.xlane.f32.xlu0 %v1448
    %v1450 = vpop.xlane.xlu0 %1449
    %v1451 = vsel %vm839, %v1377, -inf
    %1452 = vmax.xlane.f32.xlu0 %v1451
    %v1453 = vpop.xlane.xlu0 %1452
    %v1454 = vsel %vm839, %v1382, -inf
    %1455 = vmax.xlane.f32.xlu0 %v1454
    %v1456 = vpop.xlane.xlu0 %1455
    %v1457 = vsel %vm839, %v1385, -inf
    %1458 = vmax.xlane.f32.xlu0 %v1457
    %v1459 = vpop.xlane.xlu0 %1458
    %v1460 = vsub.f32 %v1301, %v1438
    %v1461 = vsub.f32 %v1304, %v1441
    %v1462 = vsub.f32 %v1309, %v1444
    %v1463 = vsub.f32 %v1312, %v1447
    %v1464 = vsub.f32 %v1374, %v1450
    %v1465 = vsub.f32 %v1377, %v1453
    %v1466 = vsub.f32 %v1382, %v1456
    %v1467 = vsub.f32 %v1385, %v1459
    %v1468 = vmul.f32 %v1460, 1.442695
    %v1469 = vpow.pop %v1468
    %v1470 = vmul.f32 %v1461, 1.442695
    %v1471 = vpow.pop %v1470
    %v1472 = vmul.f32 %v1462, 1.442695
    %v1473 = vpow.pop %v1472
    %v1474 = vmul.f32 %v1463, 1.442695
    %v1475 = vpow.pop %v1474
    %v1476 = vmul.f32 %v1464, 1.442695
    %v1477 = vpow.pop %v1476
    %v1478 = vmul.f32 %v1465, 1.442695
    %v1479 = vpow.pop %v1478
    %v1480 = vmul.f32 %v1466, 1.442695
    %v1481 = vpow.pop %v1480
    %v1482 = vmul.f32 %v1467, 1.442695
    %v1483 = vpow.pop %v1482
    %v1484 = vsel %vm668, %v1421, 0.0
    %1485 = vadd.xlane.f32.xlu0 %v1484
    %v1486 = vpop.xlane.xlu0 %1485
    %v1487 = vsel %vm668, %v1423, 0.0
    %1488 = vadd.xlane.f32.xlu0 %v1487
    %v1489 = vpop.xlane.xlu0 %1488
    %v1490 = vsel %vm668, %v1425, 0.0
    %1491 = vadd.xlane.f32.xlu0 %v1490
    %v1492 = vpop.xlane.xlu0 %1491
    %v1493 = vsel %vm668, %v1427, 0.0
    %1494 = vadd.xlane.f32.xlu0 %v1493
    %v1495 = vpop.xlane.xlu0 %1494
    %v1496 = vsel %vm668, %v1429, 0.0
    %1497 = vadd.xlane.f32.xlu0 %v1496
    %v1498 = vpop.xlane.xlu0 %1497
    %v1499 = vsel %vm668, %v1431, 0.0
    %1500 = vadd.xlane.f32.xlu0 %v1499
    %v1501 = vpop.xlane.xlu0 %1500
    %v1502 = vsel %vm668, %v1433, 0.0
    %1503 = vadd.xlane.f32.xlu0 %v1502
    %v1504 = vpop.xlane.xlu0 %1503
    %v1505 = vsel %vm668, %v1435, 0.0
    %1506 = vadd.xlane.f32.xlu0 %v1505
    %v1507 = vpop.xlane.xlu0 %1506
    %v1508 = vrcp.pop %v1486
    %v1509 = vrcp.pop %v1489
    %v1510 = vrcp.pop %v1492
    %v1511 = vrcp.pop %v1495
    %v1512 = vrcp.pop %v1498
    %v1513 = vrcp.pop %v1501
    %v1514 = vrcp.pop %v1504
    %v1515 = vrcp.pop %v1507
    %1524 = vrot.lane.b32.xlu0 %v1469, 112
    %v1525 = vpop.permute.xlu0 %1524
    %1526 = vrot.lane.b32.xlu0 %v1471, 112
    %v1527 = vpop.permute.xlu0 %1526
    %1528 = vrot.lane.b32.xlu0 %v1473, 112
    %v1529 = vpop.permute.xlu0 %1528
    %1530 = vrot.lane.b32.xlu0 %v1475, 112
    %v1531 = vpop.permute.xlu0 %1530
    %1532 = vrot.lane.b32.xlu0 %v1477, 112
    %v1533 = vpop.permute.xlu0 %1532
    %1534 = vrot.lane.b32.xlu0 %v1479, 112
    %v1535 = vpop.permute.xlu0 %1534
    %1536 = vrot.lane.b32.xlu0 %v1481, 112
    %v1537 = vpop.permute.xlu0 %1536
    %1538 = vrot.lane.b32.xlu0 %v1483, 112
    %v1539 = vpop.permute.xlu0 %1538
    %v1548 = vsel %vm952, %v1525, 0.0
    %1549 = vadd.xlane.f32.xlu0 %v1548
    %v1550 = vpop.xlane.xlu0 %1549
    %v1551 = vsel %vm952, %v1527, 0.0
    %1552 = vadd.xlane.f32.xlu0 %v1551
    %v1553 = vpop.xlane.xlu0 %1552
    %v1554 = vsel %vm952, %v1529, 0.0
    %1555 = vadd.xlane.f32.xlu0 %v1554
    %v1556 = vpop.xlane.xlu0 %1555
    %v1557 = vsel %vm952, %v1531, 0.0
    %1558 = vadd.xlane.f32.xlu0 %v1557
    %v1559 = vpop.xlane.xlu0 %1558
    %v1560 = vsel %vm952, %v1533, 0.0
    %1561 = vadd.xlane.f32.xlu0 %v1560
    %v1562 = vpop.xlane.xlu0 %1561
    %v1563 = vsel %vm952, %v1535, 0.0
    %1564 = vadd.xlane.f32.xlu0 %v1563
    %v1565 = vpop.xlane.xlu0 %1564
    %v1566 = vsel %vm952, %v1537, 0.0
    %1567 = vadd.xlane.f32.xlu0 %v1566
    %v1568 = vpop.xlane.xlu0 %1567
    %v1569 = vsel %vm952, %v1539, 0.0
    %1570 = vadd.xlane.f32.xlu0 %v1569
    %v1571 = vpop.xlane.xlu0 %1570
    %v1572 = vrcp.pop %v1550
    %v1573 = vrcp.pop %v1553
    %v1574 = vrcp.pop %v1556
    %v1575 = vrcp.pop %v1559
    %v1576 = vrcp.pop %v1562
    %v1577 = vrcp.pop %v1565
    %v1578 = vrcp.pop %v1568
    %v1579 = vrcp.pop %v1571
    %v1580 = vmul.f32 %v1421, %v1508
    %v1581 = vmul.f32 %v1423, %v1509
    %v1582 = vmul.f32 %v1425, %v1510
    %v1583 = vmul.f32 %v1427, %v1511
    %v1584 = vmul.f32 %v1429, %v1512
    %v1585 = vmul.f32 %v1431, %v1513
    %v1586 = vmul.f32 %v1433, %v1514
    %v1587 = vmul.f32 %v1435, %v1515
    %v1588 = vmul.f32 %v1469, %v1572
    %v1589 = vmul.f32 %v1471, %v1573
    %v1590 = vmul.f32 %v1473, %v1574
    %v1591 = vmul.f32 %v1475, %v1575
    %v1592 = vmul.f32 %v1477, %v1576
    %v1593 = vmul.f32 %v1479, %v1577
    %v1594 = vmul.f32 %v1481, %v1578
    %v1595 = vmul.f32 %v1483, %v1579
    %v1596 = vsel %vm668, %v1580, %v1588
    %v1597 = vsel %vm668, %v1581, %v1589
    %v1598 = vsel %vm668, %v1582, %v1590
    %v1599 = vsel %vm668, %v1583, %v1591
    %v1600 = vsel %vm668, %v1584, %v1592
    %v1601 = vsel %vm668, %v1585, %v1593
    %v1602 = vsel %vm668, %v1586, %v1594
    %v1603 = vsel %vm668, %v1587, %v1595
    %v1604 = vpack.c.bf16 %v1597, %v1596
    %v1605 = vpack.c.bf16 %v1599, %v1598
    %v1606 = vpack.c.bf16 %v1601, %v1600
    %v1607 = vpack.c.bf16 %v1603, %v1602
    %1608 = vrot.lane.b32.xlu0 %v657, 48
    %v1609 = vpop.permute.xlu0 %1608
    %1610 = vrot.lane.b32.xlu0 %v658, 48
    %v1611 = vpop.permute.xlu0 %1610
    %v1614 = vsel %vm1020, %v1604, 0
    %v1617 = vsel %vm1020, %v1605, 0
    %v1620 = vsel %vm1027, %v1611, 0
    %1622 = vmatprep.subr.bf16.mxu0 0
    %1623 = vmatpush1.bf16.msra.mxu0 %v1609
    %1624 = vmatprep.subr.bf16.mxu0 0
    %1625 = vmatpush1.bf16.msra.mxu0 %v1620
    %1626 = vmatprep.subr.bf16.mxu0 0
    %1627 = vmatpush1.bf16.msra.mxu0 0
    %1628 = vmatprep.subr.bf16.mxu0 0
    %1629 = vmatpush1.bf16.msra.mxu0 0
    %1630 = vmatprep.subr.bf16.mxu0 0
    %1631 = vmatpush1.bf16.msra.mxu0 0
    %1632 = vmatprep.subr.bf16.mxu0 0
    %1633 = vmatpush1.bf16.msra.mxu0 0
    %1634 = vmatprep.subr.bf16.mxu0 0
    %1635 = vmatpush1.bf16.msra.mxu0 0
    %1636 = vmatprep.subr.bf16.mxu0 0
    %1637 = vmatpush1.bf16.msra.mxu0 0
    %1638 = vmatprep.subr.bf16.mxu0 0
    %1639 = vmatpush1.bf16.msra.mxu0 0
    %1640 = vmatprep.subr.bf16.mxu0 0
    %1641 = vmatpush1.bf16.msra.mxu0 0
    %1642 = vmatprep.subr.bf16.mxu0 0
    %1643 = vmatpush1.bf16.msra.mxu0 0
    %1644 = vmatprep.subr.bf16.mxu0 0
    %1645 = vmatpush1.bf16.msra.mxu0 0
    %1646 = vmatprep.subr.bf16.mxu0 0
    %1647 = vmatpush1.bf16.msra.mxu0 0
    %1648 = vmatprep.subr.bf16.mxu0 0
    %1649 = vmatpush1.bf16.msra.mxu0 0
    %1650 = vmatprep.subr.bf16.mxu0 0
    %1651 = vmatpush1.bf16.msra.mxu0 0
    %1652 = vmatprep.subr.bf16.mxu0 0
    %1653 = vmatpush1.bf16.msra.mxu0 0
    %1654 = vmatprep.mubr.bf16.mxu0 0
    %1655 = vmatmul.mubr.bf16.gmra.mrb[0].mxu0 %v1614
    %v1656 = vpop.f32.mrb[0].mxu0
    %v1657 = vadd.f32 0.0, %v1656
    %v1658 = vpop.f32.mrb[0].mxu0
    %v1659 = vpop.f32.mrb[0].mxu0
    %v1660 = vadd.f32 0.0, %v1659
    %v1661 = vpop.f32.mrb[0].mxu0
    %1662 = vmatprep.mubr.bf16.mxu0 0
    %1663 = vmatmul.mubr.bf16.gmra.mrb[0].mxu0 %v1617
    %v1664 = vpop.f32.mrb[0].mxu0
    %v1665 = vadd.f32 0.0, %v1664
    %v1666 = vpop.f32.mrb[0].mxu0
    %v1667 = vpop.f32.mrb[0].mxu0
    %v1668 = vadd.f32 0.0, %v1667
    %v1669 = vpop.f32.mrb[0].mxu0
    %1670 = vdwg.mxu0
    %1671 = vrot.lane.b32.xlu0 %v659, 48
    %v1672 = vpop.permute.xlu0 %1671
    %1673 = vrot.lane.b32.xlu0 %v660, 48
    %v1674 = vpop.permute.xlu0 %1673
    %v1677 = vsel %vm1020, %v1606, 0
    %v1680 = vsel %vm1020, %v1607, 0
    %v1683 = vsel %vm1027, %v1674, 0
    %1685 = vmatprep.subr.bf16.mxu0 0
    %1686 = vmatpush1.bf16.msra.mxu0 %v1672
    %1687 = vmatprep.subr.bf16.mxu0 0
    %1688 = vmatpush1.bf16.msra.mxu0 %v1683
    %1689 = vmatprep.subr.bf16.mxu0 0
    %1690 = vmatpush1.bf16.msra.mxu0 0
    %1691 = vmatprep.subr.bf16.mxu0 0
    %1692 = vmatpush1.bf16.msra.mxu0 0
    %1693 = vmatprep.subr.bf16.mxu0 0
    %1694 = vmatpush1.bf16.msra.mxu0 0
    %1695 = vmatprep.subr.bf16.mxu0 0
    %1696 = vmatpush1.bf16.msra.mxu0 0
    %1697 = vmatprep.subr.bf16.mxu0 0
    %1698 = vmatpush1.bf16.msra.mxu0 0
    %1699 = vmatprep.subr.bf16.mxu0 0
    %1700 = vmatpush1.bf16.msra.mxu0 0
    %1701 = vmatprep.subr.bf16.mxu0 0
    %1702 = vmatpush1.bf16.msra.mxu0 0
    %1703 = vmatprep.subr.bf16.mxu0 0
    %1704 = vmatpush1.bf16.msra.mxu0 0
    %1705 = vmatprep.subr.bf16.mxu0 0
    %1706 = vmatpush1.bf16.msra.mxu0 0
    %1707 = vmatprep.subr.bf16.mxu0 0
    %1708 = vmatpush1.bf16.msra.mxu0 0
    %1709 = vmatprep.subr.bf16.mxu0 0
    %1710 = vmatpush1.bf16.msra.mxu0 0
    %1711 = vmatprep.subr.bf16.mxu0 0
    %1712 = vmatpush1.bf16.msra.mxu0 0
    %1713 = vmatprep.subr.bf16.mxu0 0
    %1714 = vmatpush1.bf16.msra.mxu0 0
    %1715 = vmatprep.subr.bf16.mxu0 0
    %1716 = vmatpush1.bf16.msra.mxu0 0
    %1717 = vmatprep.mubr.bf16.mxu0 0
    %1718 = vmatmul.mubr.bf16.gmra.mrb[0].mxu0 %v1677
    %v1719 = vpop.f32.mrb[0].mxu0
    %v1720 = vadd.f32 0.0, %v1719
    %v1721 = vpop.f32.mrb[0].mxu0
    %v1722 = vpop.f32.mrb[0].mxu0
    %v1723 = vadd.f32 0.0, %v1722
    %v1724 = vpop.f32.mrb[0].mxu0
    %1725 = vmatprep.mubr.bf16.mxu0 0
    %1726 = vmatmul.mubr.bf16.gmra.mrb[0].mxu0 %v1680
    %v1727 = vpop.f32.mrb[0].mxu0
    %v1728 = vadd.f32 0.0, %v1727
    %v1729 = vpop.f32.mrb[0].mxu0
    %v1730 = vpop.f32.mrb[0].mxu0
    %v1731 = vadd.f32 0.0, %v1730
    %v1732 = vpop.f32.mrb[0].mxu0
    %1733 = vdwg.mxu0
    %v1734 = vpack.c.bf16 %v1660, %v1657
    %v1735 = vpack.c.bf16 %v1668, %v1665
    %v1736 = vpack.c.bf16 %v1723, %v1720
    %v1737 = vpack.c.bf16 %v1731, %v1728
    %s1738 = scalar_lea.vmem [#allocation13], 8
    %v1739 = vld [vmem:[%s1738] sm:$0xf]
    %v1740 = vld [vmem:[%s1738 + $0x4] sm:$0xf]
    %v1743 = vunpack.c.l.b16 %v1739
    %v1744 = vunpack.c.l.b16 %v1740
    %v1745 = vpack.c.b16 %v1744, %v1743
    %v1748 = vsel %vm668, %v1734, 0
    %v1751 = vsel %vm668, %v1735, 0
    %v1754 = vsel %vm668, %v1736, 0
    %v1757 = vsel %vm668, %v1737, 0
    %1759 = vmatprep.subr.bf16.mxu0 0
    %1760 = vmatpush1.bf16.msra.mxu0 %v1745
    %1761 = vmatprep.subr.bf16.mxu0 0
    %1762 = vmatpush1.bf16.msra.mxu0 0
    %1763 = vmatprep.subr.bf16.mxu0 0
    %1764 = vmatpush1.bf16.msra.mxu0 0
    %1765 = vmatprep.subr.bf16.mxu0 0
    %1766 = vmatpush1.bf16.msra.mxu0 0
    %1767 = vmatprep.subr.bf16.mxu0 0
    %1768 = vmatpush1.bf16.msra.mxu0 0
    %1769 = vmatprep.subr.bf16.mxu0 0
    %1770 = vmatpush1.bf16.msra.mxu0 0
    %1771 = vmatprep.subr.bf16.mxu0 0
    %1772 = vmatpush1.bf16.msra.mxu0 0
    %1773 = vmatprep.subr.bf16.mxu0 0
    %1774 = vmatpush1.bf16.msra.mxu0 0
    %1775 = vmatprep.subr.bf16.mxu0 0
    %1776 = vmatpush1.bf16.msra.mxu0 0
    %1777 = vmatprep.subr.bf16.mxu0 0
    %1778 = vmatpush1.bf16.msra.mxu0 0
    %1779 = vmatprep.subr.bf16.mxu0 0
    %1780 = vmatpush1.bf16.msra.mxu0 0
    %1781 = vmatprep.subr.bf16.mxu0 0
    %1782 = vmatpush1.bf16.msra.mxu0 0
    %1783 = vmatprep.subr.bf16.mxu0 0
    %1784 = vmatpush1.bf16.msra.mxu0 0
    %1785 = vmatprep.subr.bf16.mxu0 0
    %1786 = vmatpush1.bf16.msra.mxu0 0
    %1787 = vmatprep.subr.bf16.mxu0 0
    %1788 = vmatpush1.bf16.msra.mxu0 0
    %1789 = vmatprep.subr.bf16.mxu0 0
    %1790 = vmatpush1.bf16.msra.mxu0 0
    %1791 = vmatprep.mubr.bf16.mxu0 0
    %1792 = vmatmul.mubr.bf16.gmra.mrb[0].mxu0 %v1748
    %v1793 = vpop.f32.mrb[0].mxu0
    %v1794 = vadd.f32 0.0, %v1793
    %v1795 = vpop.f32.mrb[0].mxu0
    %v1796 = vpop.f32.mrb[0].mxu0
    %v1797 = vadd.f32 0.0, %v1796
    %v1798 = vpop.f32.mrb[0].mxu0
    %1799 = vmatprep.mubr.bf16.mxu0 0
    %1800 = vmatmul.mubr.bf16.gmra.mrb[0].mxu0 %v1751
    %v1801 = vpop.f32.mrb[0].mxu0
    %v1802 = vadd.f32 0.0, %v1801
    %v1803 = vpop.f32.mrb[0].mxu0
    %v1804 = vpop.f32.mrb[0].mxu0
    %v1805 = vadd.f32 0.0, %v1804
    %v1806 = vpop.f32.mrb[0].mxu0
    %1807 = vmatprep.mubr.bf16.mxu0 0
    %1808 = vmatmul.mubr.bf16.gmra.mrb[0].mxu0 %v1754
    %v1809 = vpop.f32.mrb[0].mxu0
    %v1810 = vadd.f32 0.0, %v1809
    %v1811 = vpop.f32.mrb[0].mxu0
    %v1812 = vpop.f32.mrb[0].mxu0
    %v1813 = vadd.f32 0.0, %v1812
    %v1814 = vpop.f32.mrb[0].mxu0
    %1815 = vmatprep.mubr.bf16.mxu0 0
    %1816 = vmatmul.mubr.bf16.gmra.mrb[0].mxu0 %v1757
    %v1817 = vpop.f32.mrb[0].mxu0
    %v1818 = vadd.f32 0.0, %v1817
    %v1819 = vpop.f32.mrb[0].mxu0
    %v1820 = vpop.f32.mrb[0].mxu0
    %v1821 = vadd.f32 0.0, %v1820
    %v1822 = vpop.f32.mrb[0].mxu0
    %1823 = vdwg.mxu0
    %v1824 = vadd.f32 %v1234, %v1794
    %v1825 = vadd.f32 %v1235, %v1797
    %v1826 = vadd.f32 %v1236, %v1802
    %v1827 = vadd.f32 %v1237, %v1805
    %v1828 = vadd.f32 %v1238, %v1810
    %v1829 = vadd.f32 %v1239, %v1813
    %v1830 = vadd.f32 %v1240, %v1818
    %v1831 = vadd.f32 %v1241, %v1821
    %1832 = vrot.lane.b32.xlu0 %v649, 96
    %v1833 = vpop.permute.xlu0 %1832
    %1834 = vrot.lane.b32.xlu0 %v650, 96
    %v1835 = vpop.permute.xlu0 %1834
    %1836 = vrot.lane.b32.xlu0 %v653, 96
    %v1837 = vpop.permute.xlu0 %1836
    %1838 = vrot.lane.b32.xlu0 %v654, 96
    %v1839 = vpop.permute.xlu0 %1838
    %v1841 = vsel %vm668, %v1833, 0
    %v1844 = vsel %vm668, %v1835, 0
    %v1847 = vsel %vm668, %v1837, 0
    %v1850 = vsel %vm668, %v1839, 0
    %1852 = vmatprep.subr.bf16.mxu0 0
    %1853 = vmatpush1.bf16.xpose.msra.mxu0 %v1847
    %1854 = vmatprep.subr.bf16.mxu0 0
    %1855 = vmatpush1.bf16.xpose.msra.mxu0 %v1850
    %1856 = vmatprep.subr.bf16.mxu0 0
    %1857 = vmatpush1.bf16.xpose.msra.mxu0 0
    %1858 = vmatprep.subr.bf16.mxu0 0
    %1859 = vmatpush1.bf16.xpose.msra.mxu0 0
    %1860 = vmatprep.subr.bf16.mxu0 0
    %1861 = vmatpush1.bf16.xpose.msra.mxu0 0
    %1862 = vmatprep.subr.bf16.mxu0 0
    %1863 = vmatpush1.bf16.xpose.msra.mxu0 0
    %1864 = vmatprep.subr.bf16.mxu0 0
    %1865 = vmatpush1.bf16.xpose.msra.mxu0 0
    %1866 = vmatprep.subr.bf16.mxu0 0
    %1867 = vmatpush1.bf16.xpose.msra.mxu0 0
    %1868 = vmatprep.subr.bf16.mxu0 0
    %1869 = vmatpush1.bf16.xpose.msra.mxu0 0
    %1870 = vmatprep.subr.bf16.mxu0 0
    %1871 = vmatpush1.bf16.xpose.msra.mxu0 0
    %1872 = vmatprep.subr.bf16.mxu0 0
    %1873 = vmatpush1.bf16.xpose.msra.mxu0 0
    %1874 = vmatprep.subr.bf16.mxu0 0
    %1875 = vmatpush1.bf16.xpose.msra.mxu0 0
    %1876 = vmatprep.subr.bf16.mxu0 0
    %1877 = vmatpush1.bf16.xpose.msra.mxu0 0
    %1878 = vmatprep.subr.bf16.mxu0 0
    %1879 = vmatpush1.bf16.xpose.msra.mxu0 0
    %1880 = vmatprep.subr.bf16.mxu0 0
    %1881 = vmatpush1.bf16.xpose.msra.mxu0 0
    %1882 = vmatprep.subr.bf16.mxu0 0
    %1883 = vmatpush1.bf16.xpose.msra.mxu0 0
    %1884 = vmatprep.mubr.bf16.mxu0 0
    %1885 = vmatmul.mubr.bf16.gmra.mrb[0].mxu0 %v1841
    %v1886 = vpop.f32.mrb[0].mxu0
    %v1887 = vadd.f32 0.0, %v1886
    %v1888 = vpop.f32.mrb[0].mxu0
    %v1889 = vpop.f32.mrb[0].mxu0
    %v1890 = vadd.f32 0.0, %v1889
    %v1891 = vpop.f32.mrb[0].mxu0
    %1892 = vmatprep.mubr.bf16.mxu0 0
    %1893 = vmatmul.mubr.bf16.gmra.mrb[0].mxu0 %v1844
    %v1894 = vpop.f32.mrb[0].mxu0
    %v1895 = vadd.f32 0.0, %v1894
    %v1896 = vpop.f32.mrb[0].mxu0
    %v1897 = vpop.f32.mrb[0].mxu0
    %v1898 = vadd.f32 0.0, %v1897
    %v1899 = vpop.f32.mrb[0].mxu0
    %1900 = vdwg.mxu0
    %1901 = vrot.lane.b32.xlu0 %v651, 96
    %v1902 = vpop.permute.xlu0 %1901
    %1903 = vrot.lane.b32.xlu0 %v652, 96
    %v1904 = vpop.permute.xlu0 %1903
    %1905 = vrot.lane.b32.xlu0 %v655, 96
    %v1906 = vpop.permute.xlu0 %1905
    %1907 = vrot.lane.b32.xlu0 %v656, 96
    %v1908 = vpop.permute.xlu0 %1907
    %v1910 = vsel %vm668, %v1902, 0
    %v1913 = vsel %vm668, %v1904, 0
    %v1916 = vsel %vm668, %v1906, 0
    %v1919 = vsel %vm668, %v1908, 0
    %1921 = vmatprep.subr.bf16.mxu0 0
    %1922 = vmatpush1.bf16.xpose.msra.mxu0 %v1916
    %1923 = vmatprep.subr.bf16.mxu0 0
    %1924 = vmatpush1.bf16.xpose.msra.mxu0 %v1919
    %1925 = vmatprep.subr.bf16.mxu0 0
    %1926 = vmatpush1.bf16.xpose.msra.mxu0 0
    %1927 = vmatprep.subr.bf16.mxu0 0
    %1928 = vmatpush1.bf16.xpose.msra.mxu0 0
    %1929 = vmatprep.subr.bf16.mxu0 0
    %1930 = vmatpush1.bf16.xpose.msra.mxu0 0
    %1931 = vmatprep.subr.bf16.mxu0 0
    %1932 = vmatpush1.bf16.xpose.msra.mxu0 0
    %1933 = vmatprep.subr.bf16.mxu0 0
    %1934 = vmatpush1.bf16.xpose.msra.mxu0 0
    %1935 = vmatprep.subr.bf16.mxu0 0
    %1936 = vmatpush1.bf16.xpose.msra.mxu0 0
    %1937 = vmatprep.subr.bf16.mxu0 0
    %1938 = vmatpush1.bf16.xpose.msra.mxu0 0
    %1939 = vmatprep.subr.bf16.mxu0 0
    %1940 = vmatpush1.bf16.xpose.msra.mxu0 0
    %1941 = vmatprep.subr.bf16.mxu0 0
    %1942 = vmatpush1.bf16.xpose.msra.mxu0 0
    %1943 = vmatprep.subr.bf16.mxu0 0
    %1944 = vmatpush1.bf16.xpose.msra.mxu0 0
    %1945 = vmatprep.subr.bf16.mxu0 0
    %1946 = vmatpush1.bf16.xpose.msra.mxu0 0
    %1947 = vmatprep.subr.bf16.mxu0 0
    %1948 = vmatpush1.bf16.xpose.msra.mxu0 0
    %1949 = vmatprep.subr.bf16.mxu0 0
    %1950 = vmatpush1.bf16.xpose.msra.mxu0 0
    %1951 = vmatprep.subr.bf16.mxu0 0
    %1952 = vmatpush1.bf16.xpose.msra.mxu0 0
    %1953 = vmatprep.mubr.bf16.mxu0 0
    %1954 = vmatmul.mubr.bf16.gmra.mrb[0].mxu0 %v1910
    %v1955 = vpop.f32.mrb[0].mxu0
    %v1956 = vadd.f32 0.0, %v1955
    %v1957 = vpop.f32.mrb[0].mxu0
    %v1958 = vpop.f32.mrb[0].mxu0
    %v1959 = vadd.f32 0.0, %v1958
    %v1960 = vpop.f32.mrb[0].mxu0
    %1961 = vmatprep.mubr.bf16.mxu0 0
    %1962 = vmatmul.mubr.bf16.gmra.mrb[0].mxu0 %v1913
    %v1963 = vpop.f32.mrb[0].mxu0
    %v1964 = vadd.f32 0.0, %v1963
    %v1965 = vpop.f32.mrb[0].mxu0
    %v1966 = vpop.f32.mrb[0].mxu0
    %v1967 = vadd.f32 0.0, %v1966
    %v1968 = vpop.f32.mrb[0].mxu0
    %1969 = vdwg.mxu0
    %v1970 = vsel %vm668, %v1887, -inf
    %1971 = vmax.xlane.f32.xlu0 %v1970
    %v1972 = vpop.xlane.xlu0 %1971
    %v1973 = vsel %vm668, %v1890, -inf
    %1974 = vmax.xlane.f32.xlu0 %v1973
    %v1975 = vpop.xlane.xlu0 %1974
    %v1976 = vsel %vm668, %v1895, -inf
    %1977 = vmax.xlane.f32.xlu0 %v1976
    %v1978 = vpop.xlane.xlu0 %1977
    %v1979 = vsel %vm668, %v1898, -inf
    %1980 = vmax.xlane.f32.xlu0 %v1979
    %v1981 = vpop.xlane.xlu0 %1980
    %v1982 = vsel %vm668, %v1956, -inf
    %1983 = vmax.xlane.f32.xlu0 %v1982
    %v1984 = vpop.xlane.xlu0 %1983
    %v1985 = vsel %vm668, %v1959, -inf
    %1986 = vmax.xlane.f32.xlu0 %v1985
    %v1987 = vpop.xlane.xlu0 %1986
    %v1988 = vsel %vm668, %v1964, -inf
    %1989 = vmax.xlane.f32.xlu0 %v1988
    %v1990 = vpop.xlane.xlu0 %1989
    %v1991 = vsel %vm668, %v1967, -inf
    %1992 = vmax.xlane.f32.xlu0 %v1991
    %v1993 = vpop.xlane.xlu0 %1992
    %v1994 = vsub.f32 %v1887, %v1972
    %v1995 = vsub.f32 %v1890, %v1975
    %v1996 = vsub.f32 %v1895, %v1978
    %v1997 = vsub.f32 %v1898, %v1981
    %v1998 = vsub.f32 %v1956, %v1984
    %v1999 = vsub.f32 %v1959, %v1987
    %v2000 = vsub.f32 %v1964, %v1990
    %v2001 = vsub.f32 %v1967, %v1993
    %v2002 = vmul.f32 %v1994, 1.442695
    %v2003 = vpow.pop %v2002
    %v2004 = vmul.f32 %v1995, 1.442695
    %v2005 = vpow.pop %v2004
    %v2006 = vmul.f32 %v1996, 1.442695
    %v2007 = vpow.pop %v2006
    %v2008 = vmul.f32 %v1997, 1.442695
    %v2009 = vpow.pop %v2008
    %v2010 = vmul.f32 %v1998, 1.442695
    %v2011 = vpow.pop %v2010
    %v2012 = vmul.f32 %v1999, 1.442695
    %v2013 = vpow.pop %v2012
    %v2014 = vmul.f32 %v2000, 1.442695
    %v2015 = vpow.pop %v2014
    %v2016 = vmul.f32 %v2001, 1.442695
    %v2017 = vpow.pop %v2016
    %v2018 = vsel %vm839, %v1887, -inf
    %2019 = vmax.xlane.f32.xlu0 %v2018
    %v2020 = vpop.xlane.xlu0 %2019
    %v2021 = vsel %vm839, %v1890, -inf
    %2022 = vmax.xlane.f32.xlu0 %v2021
    %v2023 = vpop.xlane.xlu0 %2022
    %v2024 = vsel %vm839, %v1895, -inf
    %2025 = vmax.xlane.f32.xlu0 %v2024
    %v2026 = vpop.xlane.xlu0 %2025
    %v2027 = vsel %vm839, %v1898, -inf
    %2028 = vmax.xlane.f32.xlu0 %v2027
    %v2029 = vpop.xlane.xlu0 %2028
    %v2030 = vsel %vm839, %v1956, -inf
    %2031 = vmax.xlane.f32.xlu0 %v2030
    %v2032 = vpop.xlane.xlu0 %2031
    %v2033 = vsel %vm839, %v1959, -inf
    %2034 = vmax.xlane.f32.xlu0 %v2033
    %v2035 = vpop.xlane.xlu0 %2034
    %v2036 = vsel %vm839, %v1964, -inf
    %2037 = vmax.xlane.f32.xlu0 %v2036
    %v2038 = vpop.xlane.xlu0 %2037
    %v2039 = vsel %vm839, %v1967, -inf
    %2040 = vmax.xlane.f32.xlu0 %v2039
    %v2041 = vpop.xlane.xlu0 %2040
    %v2042 = vsub.f32 %v1887, %v2020
    %v2043 = vsub.f32 %v1890, %v2023
    %v2044 = vsub.f32 %v1895, %v2026
    %v2045 = vsub.f32 %v1898, %v2029
    %v2046 = vsub.f32 %v1956, %v2032
    %v2047 = vsub.f32 %v1959, %v2035
    %v2048 = vsub.f32 %v1964, %v2038
    %v2049 = vsub.f32 %v1967, %v2041
    %v2050 = vmul.f32 %v2042, 1.442695
    %v2051 = vpow.pop %v2050
    %v2052 = vmul.f32 %v2043, 1.442695
    %v2053 = vpow.pop %v2052
    %v2054 = vmul.f32 %v2044, 1.442695
    %v2055 = vpow.pop %v2054
    %v2056 = vmul.f32 %v2045, 1.442695
    %v2057 = vpow.pop %v2056
    %v2058 = vmul.f32 %v2046, 1.442695
    %v2059 = vpow.pop %v2058
    %v2060 = vmul.f32 %v2047, 1.442695
    %v2061 = vpow.pop %v2060
    %v2062 = vmul.f32 %v2048, 1.442695
    %v2063 = vpow.pop %v2062
    %v2064 = vmul.f32 %v2049, 1.442695
    %v2065 = vpow.pop %v2064
    %v2066 = vsel %vm668, %v2003, 0.0
    %2067 = vadd.xlane.f32.xlu0 %v2066
    %v2068 = vpop.xlane.xlu0 %2067
    %v2069 = vsel %vm668, %v2005, 0.0
    %2070 = vadd.xlane.f32.xlu0 %v2069
    %v2071 = vpop.xlane.xlu0 %2070
    %v2072 = vsel %vm668, %v2007, 0.0
    %2073 = vadd.xlane.f32.xlu0 %v2072
    %v2074 = vpop.xlane.xlu0 %2073
    %v2075 = vsel %vm668, %v2009, 0.0
    %2076 = vadd.xlane.f32.xlu0 %v2075
    %v2077 = vpop.xlane.xlu0 %2076
    %v2078 = vsel %vm668, %v2011, 0.0
    %2079 = vadd.xlane.f32.xlu0 %v2078
    %v2080 = vpop.xlane.xlu0 %2079
    %v2081 = vsel %vm668, %v2013, 0.0
    %2082 = vadd.xlane.f32.xlu0 %v2081
    %v2083 = vpop.xlane.xlu0 %2082
    %v2084 = vsel %vm668, %v2015, 0.0
    %2085 = vadd.xlane.f32.xlu0 %v2084
    %v2086 = vpop.xlane.xlu0 %2085
    %v2087 = vsel %vm668, %v2017, 0.0
    %2088 = vadd.xlane.f32.xlu0 %v2087
    %v2089 = vpop.xlane.xlu0 %2088
    %v2090 = vrcp.pop %v2068
    %v2091 = vrcp.pop %v2071
    %v2092 = vrcp.pop %v2074
    %v2093 = vrcp.pop %v2077
    %v2094 = vrcp.pop %v2080
    %v2095 = vrcp.pop %v2083
    %v2096 = vrcp.pop %v2086
    %v2097 = vrcp.pop %v2089
    %2106 = vrot.lane.b32.xlu0 %v2051, 112
    %v2107 = vpop.permute.xlu0 %2106
    %2108 = vrot.lane.b32.xlu0 %v2053, 112
    %v2109 = vpop.permute.xlu0 %2108
    %2110 = vrot.lane.b32.xlu0 %v2055, 112
    %v2111 = vpop.permute.xlu0 %2110
    %2112 = vrot.lane.b32.xlu0 %v2057, 112
    %v2113 = vpop.permute.xlu0 %2112
    %2114 = vrot.lane.b32.xlu0 %v2059, 112
    %v2115 = vpop.permute.xlu0 %2114
    %2116 = vrot.lane.b32.xlu0 %v2061, 112
    %v2117 = vpop.permute.xlu0 %2116
    %2118 = vrot.lane.b32.xlu0 %v2063, 112
    %v2119 = vpop.permute.xlu0 %2118
    %2120 = vrot.lane.b32.xlu0 %v2065, 112
    %v2121 = vpop.permute.xlu0 %2120
    %v2130 = vsel %vm952, %v2107, 0.0
    %2131 = vadd.xlane.f32.xlu0 %v2130
    %v2132 = vpop.xlane.xlu0 %2131
    %v2133 = vsel %vm952, %v2109, 0.0
    %2134 = vadd.xlane.f32.xlu0 %v2133
    %v2135 = vpop.xlane.xlu0 %2134
    %v2136 = vsel %vm952, %v2111, 0.0
    %2137 = vadd.xlane.f32.xlu0 %v2136
    %v2138 = vpop.xlane.xlu0 %2137
    %v2139 = vsel %vm952, %v2113, 0.0
    %2140 = vadd.xlane.f32.xlu0 %v2139
    %v2141 = vpop.xlane.xlu0 %2140
    %v2142 = vsel %vm952, %v2115, 0.0
    %2143 = vadd.xlane.f32.xlu0 %v2142
    %v2144 = vpop.xlane.xlu0 %2143
    %v2145 = vsel %vm952, %v2117, 0.0
    %2146 = vadd.xlane.f32.xlu0 %v2145
    %v2147 = vpop.xlane.xlu0 %2146
    %v2148 = vsel %vm952, %v2119, 0.0
    %2149 = vadd.xlane.f32.xlu0 %v2148
    %v2150 = vpop.xlane.xlu0 %2149
    %v2151 = vsel %vm952, %v2121, 0.0
    %2152 = vadd.xlane.f32.xlu0 %v2151
    %v2153 = vpop.xlane.xlu0 %2152
    %v2154 = vrcp.pop %v2132
    %v2155 = vrcp.pop %v2135
    %v2156 = vrcp.pop %v2138
    %v2157 = vrcp.pop %v2141
    %v2158 = vrcp.pop %v2144
    %v2159 = vrcp.pop %v2147
    %v2160 = vrcp.pop %v2150
    %v2161 = vrcp.pop %v2153
    %v2162 = vmul.f32 %v2003, %v2090
    %v2163 = vmul.f32 %v2005, %v2091
    %v2164 = vmul.f32 %v2007, %v2092
    %v2165 = vmul.f32 %v2009, %v2093
    %v2166 = vmul.f32 %v2011, %v2094
    %v2167 = vmul.f32 %v2013, %v2095
    %v2168 = vmul.f32 %v2015, %v2096
    %v2169 = vmul.f32 %v2017, %v2097
    %v2170 = vmul.f32 %v2051, %v2154
    %v2171 = vmul.f32 %v2053, %v2155
    %v2172 = vmul.f32 %v2055, %v2156
    %v2173 = vmul.f32 %v2057, %v2157
    %v2174 = vmul.f32 %v2059, %v2158
    %v2175 = vmul.f32 %v2061, %v2159
    %v2176 = vmul.f32 %v2063, %v2160
    %v2177 = vmul.f32 %v2065, %v2161
    %v2178 = vsel %vm668, %v2162, %v2170
    %v2179 = vsel %vm668, %v2163, %v2171
    %v2180 = vsel %vm668, %v2164, %v2172
    %v2181 = vsel %vm668, %v2165, %v2173
    %v2182 = vsel %vm668, %v2166, %v2174
    %v2183 = vsel %vm668, %v2167, %v2175
    %v2184 = vsel %vm668, %v2168, %v2176
    %v2185 = vsel %vm668, %v2169, %v2177
    %v2186 = vpack.c.bf16 %v2179, %v2178
    %v2187 = vpack.c.bf16 %v2181, %v2180
    %v2188 = vpack.c.bf16 %v2183, %v2182
    %v2189 = vpack.c.bf16 %v2185, %v2184
    %2190 = vrot.lane.b32.xlu0 %v657, 32
    %v2191 = vpop.permute.xlu0 %2190
    %2192 = vrot.lane.b32.xlu0 %v658, 32
    %v2193 = vpop.permute.xlu0 %2192
    %v2196 = vsel %vm1020, %v2186, 0
    %v2199 = vsel %vm1020, %v2187, 0
    %v2202 = vsel %vm1027, %v2193, 0
    %2204 = vmatprep.subr.bf16.mxu0 0
    %2205 = vmatpush1.bf16.msra.mxu0 %v2191
    %2206 = vmatprep.subr.bf16.mxu0 0
    %2207 = vmatpush1.bf16.msra.mxu0 %v2202
    %2208 = vmatprep.subr.bf16.mxu0 0
    %2209 = vmatpush1.bf16.msra.mxu0 0
    %2210 = vmatprep.subr.bf16.mxu0 0
    %2211 = vmatpush1.bf16.msra.mxu0 0
    %2212 = vmatprep.subr.bf16.mxu0 0
    %2213 = vmatpush1.bf16.msra.mxu0 0
    %2214 = vmatprep.subr.bf16.mxu0 0
    %2215 = vmatpush1.bf16.msra.mxu0 0
    %2216 = vmatprep.subr.bf16.mxu0 0
    %2217 = vmatpush1.bf16.msra.mxu0 0
    %2218 = vmatprep.subr.bf16.mxu0 0
    %2219 = vmatpush1.bf16.msra.mxu0 0
    %2220 = vmatprep.subr.bf16.mxu0 0
    %2221 = vmatpush1.bf16.msra.mxu0 0
    %2222 = vmatprep.subr.bf16.mxu0 0
    %2223 = vmatpush1.bf16.msra.mxu0 0
    %2224 = vmatprep.subr.bf16.mxu0 0
    %2225 = vmatpush1.bf16.msra.mxu0 0
    %2226 = vmatprep.subr.bf16.mxu0 0
    %2227 = vmatpush1.bf16.msra.mxu0 0
    %2228 = vmatprep.subr.bf16.mxu0 0
    %2229 = vmatpush1.bf16.msra.mxu0 0
    %2230 = vmatprep.subr.bf16.mxu0 0
    %2231 = vmatpush1.bf16.msra.mxu0 0
    %2232 = vmatprep.subr.bf16.mxu0 0
    %2233 = vmatpush1.bf16.msra.mxu0 0
    %2234 = vmatprep.subr.bf16.mxu0 0
    %2235 = vmatpush1.bf16.msra.mxu0 0
    %2236 = vmatprep.mubr.bf16.mxu0 0
    %2237 = vmatmul.mubr.bf16.gmra.mrb[0].mxu0 %v2196
    %v2238 = vpop.f32.mrb[0].mxu0
    %v2239 = vadd.f32 0.0, %v2238
    %v2240 = vpop.f32.mrb[0].mxu0
    %v2241 = vpop.f32.mrb[0].mxu0
    %v2242 = vadd.f32 0.0, %v2241
    %v2243 = vpop.f32.mrb[0].mxu0
    %2244 = vmatprep.mubr.bf16.mxu0 0
    %2245 = vmatmul.mubr.bf16.gmra.mrb[0].mxu0 %v2199
    %v2246 = vpop.f32.mrb[0].mxu0
    %v2247 = vadd.f32 0.0, %v2246
    %v2248 = vpop.f32.mrb[0].mxu0
    %v2249 = vpop.f32.mrb[0].mxu0
    %v2250 = vadd.f32 0.0, %v2249
    %v2251 = vpop.f32.mrb[0].mxu0
    %2252 = vdwg.mxu0
    %2253 = vrot.lane.b32.xlu0 %v659, 32
    %v2254 = vpop.permute.xlu0 %2253
    %2255 = vrot.lane.b32.xlu0 %v660, 32
    %v2256 = vpop.permute.xlu0 %2255
    %v2259 = vsel %vm1020, %v2188, 0
    %v2262 = vsel %vm1020, %v2189, 0
    %v2265 = vsel %vm1027, %v2256, 0
    %2267 = vmatprep.subr.bf16.mxu0 0
    %2268 = vmatpush1.bf16.msra.mxu0 %v2254
    %2269 = vmatprep.subr.bf16.mxu0 0
    %2270 = vmatpush1.bf16.msra.mxu0 %v2265
    %2271 = vmatprep.subr.bf16.mxu0 0
    %2272 = vmatpush1.bf16.msra.mxu0 0
    %2273 = vmatprep.subr.bf16.mxu0 0
    %2274 = vmatpush1.bf16.msra.mxu0 0
    %2275 = vmatprep.subr.bf16.mxu0 0
    %2276 = vmatpush1.bf16.msra.mxu0 0
    %2277 = vmatprep.subr.bf16.mxu0 0
    %2278 = vmatpush1.bf16.msra.mxu0 0
    %2279 = vmatprep.subr.bf16.mxu0 0
    %2280 = vmatpush1.bf16.msra.mxu0 0
    %2281 = vmatprep.subr.bf16.mxu0 0
    %2282 = vmatpush1.bf16.msra.mxu0 0
    %2283 = vmatprep.subr.bf16.mxu0 0
    %2284 = vmatpush1.bf16.msra.mxu0 0
    %2285 = vmatprep.subr.bf16.mxu0 0
    %2286 = vmatpush1.bf16.msra.mxu0 0
    %2287 = vmatprep.subr.bf16.mxu0 0
    %2288 = vmatpush1.bf16.msra.mxu0 0
    %2289 = vmatprep.subr.bf16.mxu0 0
    %2290 = vmatpush1.bf16.msra.mxu0 0
    %2291 = vmatprep.subr.bf16.mxu0 0
    %2292 = vmatpush1.bf16.msra.mxu0 0
    %2293 = vmatprep.subr.bf16.mxu0 0
    %2294 = vmatpush1.bf16.msra.mxu0 0
    %2295 = vmatprep.subr.bf16.mxu0 0
    %2296 = vmatpush1.bf16.msra.mxu0 0
    %2297 = vmatprep.subr.bf16.mxu0 0
    %2298 = vmatpush1.bf16.msra.mxu0 0
    %2299 = vmatprep.mubr.bf16.mxu0 0
    %2300 = vmatmul.mubr.bf16.gmra.mrb[0].mxu0 %v2259
    %v2301 = vpop.f32.mrb[0].mxu0
    %v2302 = vadd.f32 0.0, %v2301
    %v2303 = vpop.f32.mrb[0].mxu0
    %v2304 = vpop.f32.mrb[0].mxu0
    %v2305 = vadd.f32 0.0, %v2304
    %v2306 = vpop.f32.mrb[0].mxu0
    %2307 = vmatprep.mubr.bf16.mxu0 0
    %2308 = vmatmul.mubr.bf16.gmra.mrb[0].mxu0 %v2262
    %v2309 = vpop.f32.mrb[0].mxu0
    %v2310 = vadd.f32 0.0, %v2309
    %v2311 = vpop.f32.mrb[0].mxu0
    %v2312 = vpop.f32.mrb[0].mxu0
    %v2313 = vadd.f32 0.0, %v2312
    %v2314 = vpop.f32.mrb[0].mxu0
    %2315 = vdwg.mxu0
    %v2316 = vpack.c.bf16 %v2242, %v2239
    %v2317 = vpack.c.bf16 %v2250, %v2247
    %v2318 = vpack.c.bf16 %v2305, %v2302
    %v2319 = vpack.c.bf16 %v2313, %v2310
    %s2320 = scalar_lea.vmem [#allocation13], 16
    %v2321 = vld [vmem:[%s2320] sm:$0xf]
    %v2322 = vld [vmem:[%s2320 + $0x4] sm:$0xf]
    %v2325 = vunpack.c.l.b16 %v2321
    %v2326 = vunpack.c.l.b16 %v2322
    %v2327 = vpack.c.b16 %v2326, %v2325
    %v2330 = vsel %vm668, %v2316, 0
    %v2333 = vsel %vm668, %v2317, 0
    %v2336 = vsel %vm668, %v2318, 0
    %v2339 = vsel %vm668, %v2319, 0
    %2341 = vmatprep.subr.bf16.mxu0 0
    %2342 = vmatpush1.bf16.msra.mxu0 %v2327
    %2343 = vmatprep.subr.bf16.mxu0 0
    %2344 = vmatpush1.bf16.msra.mxu0 0
    %2345 = vmatprep.subr.bf16.mxu0 0
    %2346 = vmatpush1.bf16.msra.mxu0 0
    %2347 = vmatprep.subr.bf16.mxu0 0
    %2348 = vmatpush1.bf16.msra.mxu0 0
    %2349 = vmatprep.subr.bf16.mxu0 0
    %2350 = vmatpush1.bf16.msra.mxu0 0
    %2351 = vmatprep.subr.bf16.mxu0 0
    %2352 = vmatpush1.bf16.msra.mxu0 0
    %2353 = vmatprep.subr.bf16.mxu0 0
    %2354 = vmatpush1.bf16.msra.mxu0 0
    %2355 = vmatprep.subr.bf16.mxu0 0
    %2356 = vmatpush1.bf16.msra.mxu0 0
    %2357 = vmatprep.subr.bf16.mxu0 0
    %2358 = vmatpush1.bf16.msra.mxu0 0
    %2359 = vmatprep.subr.bf16.mxu0 0
    %2360 = vmatpush1.bf16.msra.mxu0 0
    %2361 = vmatprep.subr.bf16.mxu0 0
    %2362 = vmatpush1.bf16.msra.mxu0 0
    %2363 = vmatprep.subr.bf16.mxu0 0
    %2364 = vmatpush1.bf16.msra.mxu0 0
    %2365 = vmatprep.subr.bf16.mxu0 0
    %2366 = vmatpush1.bf16.msra.mxu0 0
    %2367 = vmatprep.subr.bf16.mxu0 0
    %2368 = vmatpush1.bf16.msra.mxu0 0
    %2369 = vmatprep.subr.bf16.mxu0 0
    %2370 = vmatpush1.bf16.msra.mxu0 0
    %2371 = vmatprep.subr.bf16.mxu0 0
    %2372 = vmatpush1.bf16.msra.mxu0 0
    %2373 = vmatprep.mubr.bf16.mxu0 0
    %2374 = vmatmul.mubr.bf16.gmra.mrb[0].mxu0 %v2330
    %v2375 = vpop.f32.mrb[0].mxu0
    %v2376 = vadd.f32 0.0, %v2375
    %v2377 = vpop.f32.mrb[0].mxu0
    %v2378 = vpop.f32.mrb[0].mxu0
    %v2379 = vadd.f32 0.0, %v2378
    %v2380 = vpop.f32.mrb[0].mxu0
    %2381 = vmatprep.mubr.bf16.mxu0 0
    %2382 = vmatmul.mubr.bf16.gmra.mrb[0].mxu0 %v2333
    %v2383 = vpop.f32.mrb[0].mxu0
    %v2384 = vadd.f32 0.0, %v2383
    %v2385 = vpop.f32.mrb[0].mxu0
    %v2386 = vpop.f32.mrb[0].mxu0
    %v2387 = vadd.f32 0.0, %v2386
    %v2388 = vpop.f32.mrb[0].mxu0
    %2389 = vmatprep.mubr.bf16.mxu0 0
    %2390 = vmatmul.mubr.bf16.gmra.mrb[0].mxu0 %v2336
    %v2391 = vpop.f32.mrb[0].mxu0
    %v2392 = vadd.f32 0.0, %v2391
    %v2393 = vpop.f32.mrb[0].mxu0
    %v2394 = vpop.f32.mrb[0].mxu0
    %v2395 = vadd.f32 0.0, %v2394
    %v2396 = vpop.f32.mrb[0].mxu0
    %2397 = vmatprep.mubr.bf16.mxu0 0
    %2398 = vmatmul.mubr.bf16.gmra.mrb[0].mxu0 %v2339
    %v2399 = vpop.f32.mrb[0].mxu0
    %v2400 = vadd.f32 0.0, %v2399
    %v2401 = vpop.f32.mrb[0].mxu0
    %v2402 = vpop.f32.mrb[0].mxu0
    %v2403 = vadd.f32 0.0, %v2402
    %v2404 = vpop.f32.mrb[0].mxu0
    %2405 = vdwg.mxu0
    %v2406 = vadd.f32 %v1824, %v2376
    %v2407 = vadd.f32 %v1825, %v2379
    %v2408 = vadd.f32 %v1826, %v2384
    %v2409 = vadd.f32 %v1827, %v2387
    %v2410 = vadd.f32 %v1828, %v2392
    %v2411 = vadd.f32 %v1829, %v2395
    %v2412 = vadd.f32 %v1830, %v2400
    %v2413 = vadd.f32 %v1831, %v2403
    %2414 = vrot.lane.b32.xlu0 %v649, 80
    %v2415 = vpop.permute.xlu0 %2414
    %2416 = vrot.lane.b32.xlu0 %v650, 80
    %v2417 = vpop.permute.xlu0 %2416
    %2418 = vrot.lane.b32.xlu0 %v653, 80
    %v2419 = vpop.permute.xlu0 %2418
    %2420 = vrot.lane.b32.xlu0 %v654, 80
    %v2421 = vpop.permute.xlu0 %2420
    %v2423 = vsel %vm668, %v2415, 0
    %v2426 = vsel %vm668, %v2417, 0
    %v2429 = vsel %vm668, %v2419, 0
    %v2432 = vsel %vm668, %v2421, 0
    %2434 = vmatprep.subr.bf16.mxu0 0
    %2435 = vmatpush1.bf16.xpose.msra.mxu0 %v2429
    %2436 = vmatprep.subr.bf16.mxu0 0
    %2437 = vmatpush1.bf16.xpose.msra.mxu0 %v2432
    %2438 = vmatprep.subr.bf16.mxu0 0
    %2439 = vmatpush1.bf16.xpose.msra.mxu0 0
    %2440 = vmatprep.subr.bf16.mxu0 0
    %2441 = vmatpush1.bf16.xpose.msra.mxu0 0
    %2442 = vmatprep.subr.bf16.mxu0 0
    %2443 = vmatpush1.bf16.xpose.msra.mxu0 0
    %2444 = vmatprep.subr.bf16.mxu0 0
    %2445 = vmatpush1.bf16.xpose.msra.mxu0 0
    %2446 = vmatprep.subr.bf16.mxu0 0
    %2447 = vmatpush1.bf16.xpose.msra.mxu0 0
    %2448 = vmatprep.subr.bf16.mxu0 0
    %2449 = vmatpush1.bf16.xpose.msra.mxu0 0
    %2450 = vmatprep.subr.bf16.mxu0 0
    %2451 = vmatpush1.bf16.xpose.msra.mxu0 0
    %2452 = vmatprep.subr.bf16.mxu0 0
    %2453 = vmatpush1.bf16.xpose.msra.mxu0 0
    %2454 = vmatprep.subr.bf16.mxu0 0
    %2455 = vmatpush1.bf16.xpose.msra.mxu0 0
    %2456 = vmatprep.subr.bf16.mxu0 0
    %2457 = vmatpush1.bf16.xpose.msra.mxu0 0
    %2458 = vmatprep.subr.bf16.mxu0 0
    %2459 = vmatpush1.bf16.xpose.msra.mxu0 0
    %2460 = vmatprep.subr.bf16.mxu0 0
    %2461 = vmatpush1.bf16.xpose.msra.mxu0 0
    %2462 = vmatprep.subr.bf16.mxu0 0
    %2463 = vmatpush1.bf16.xpose.msra.mxu0 0
    %2464 = vmatprep.subr.bf16.mxu0 0
    %2465 = vmatpush1.bf16.xpose.msra.mxu0 0
    %2466 = vmatprep.mubr.bf16.mxu0 0
    %2467 = vmatmul.mubr.bf16.gmra.mrb[0].mxu0 %v2423
    %v2468 = vpop.f32.mrb[0].mxu0
    %v2469 = vadd.f32 0.0, %v2468
    %v2470 = vpop.f32.mrb[0].mxu0
    %v2471 = vpop.f32.mrb[0].mxu0
    %v2472 = vadd.f32 0.0, %v2471
    %v2473 = vpop.f32.mrb[0].mxu0
    %2474 = vmatprep.mubr.bf16.mxu0 0
    %2475 = vmatmul.mubr.bf16.gmra.mrb[0].mxu0 %v2426
    %v2476 = vpop.f32.mrb[0].mxu0
    %v2477 = vadd.f32 0.0, %v2476
    %v2478 = vpop.f32.mrb[0].mxu0
    %v2479 = vpop.f32.mrb[0].mxu0
    %v2480 = vadd.f32 0.0, %v2479
    %v2481 = vpop.f32.mrb[0].mxu0
    %2482 = vdwg.mxu0
    %2483 = vrot.lane.b32.xlu0 %v651, 80
    %v2484 = vpop.permute.xlu0 %2483
    %2485 = vrot.lane.b32.xlu0 %v652, 80
    %v2486 = vpop.permute.xlu0 %2485
    %2487 = vrot.lane.b32.xlu0 %v655, 80
    %v2488 = vpop.permute.xlu0 %2487
    %2489 = vrot.lane.b32.xlu0 %v656, 80
    %v2490 = vpop.permute.xlu0 %2489
    %v2492 = vsel %vm668, %v2484, 0
    %v2495 = vsel %vm668, %v2486, 0
    %v2498 = vsel %vm668, %v2488, 0
    %v2501 = vsel %vm668, %v2490, 0
    %2503 = vmatprep.subr.bf16.mxu0 0
    %2504 = vmatpush1.bf16.xpose.msra.mxu0 %v2498
    %2505 = vmatprep.subr.bf16.mxu0 0
    %2506 = vmatpush1.bf16.xpose.msra.mxu0 %v2501
    %2507 = vmatprep.subr.bf16.mxu0 0
    %2508 = vmatpush1.bf16.xpose.msra.mxu0 0
    %2509 = vmatprep.subr.bf16.mxu0 0
    %2510 = vmatpush1.bf16.xpose.msra.mxu0 0
    %2511 = vmatprep.subr.bf16.mxu0 0
    %2512 = vmatpush1.bf16.xpose.msra.mxu0 0
    %2513 = vmatprep.subr.bf16.mxu0 0
    %2514 = vmatpush1.bf16.xpose.msra.mxu0 0
    %2515 = vmatprep.subr.bf16.mxu0 0
    %2516 = vmatpush1.bf16.xpose.msra.mxu0 0
    %2517 = vmatprep.subr.bf16.mxu0 0
    %2518 = vmatpush1.bf16.xpose.msra.mxu0 0
    %2519 = vmatprep.subr.bf16.mxu0 0
    %2520 = vmatpush1.bf16.xpose.msra.mxu0 0
    %2521 = vmatprep.subr.bf16.mxu0 0
    %2522 = vmatpush1.bf16.xpose.msra.mxu0 0
    %2523 = vmatprep.subr.bf16.mxu0 0
    %2524 = vmatpush1.bf16.xpose.msra.mxu0 0
    %2525 = vmatprep.subr.bf16.mxu0 0
    %2526 = vmatpush1.bf16.xpose.msra.mxu0 0
    %2527 = vmatprep.subr.bf16.mxu0 0
    %2528 = vmatpush1.bf16.xpose.msra.mxu0 0
    %2529 = vmatprep.subr.bf16.mxu0 0
    %2530 = vmatpush1.bf16.xpose.msra.mxu0 0
    %2531 = vmatprep.subr.bf16.mxu0 0
    %2532 = vmatpush1.bf16.xpose.msra.mxu0 0
    %2533 = vmatprep.subr.bf16.mxu0 0
    %2534 = vmatpush1.bf16.xpose.msra.mxu0 0
    %2535 = vmatprep.mubr.bf16.mxu0 0
    %2536 = vmatmul.mubr.bf16.gmra.mrb[0].mxu0 %v2492
    %v2537 = vpop.f32.mrb[0].mxu0
    %v2538 = vadd.f32 0.0, %v2537
    %v2539 = vpop.f32.mrb[0].mxu0
    %v2540 = vpop.f32.mrb[0].mxu0
    %v2541 = vadd.f32 0.0, %v2540
    %v2542 = vpop.f32.mrb[0].mxu0
    %2543 = vmatprep.mubr.bf16.mxu0 0
    %2544 = vmatmul.mubr.bf16.gmra.mrb[0].mxu0 %v2495
    %v2545 = vpop.f32.mrb[0].mxu0
    %v2546 = vadd.f32 0.0, %v2545
    %v2547 = vpop.f32.mrb[0].mxu0
    %v2548 = vpop.f32.mrb[0].mxu0
    %v2549 = vadd.f32 0.0, %v2548
    %v2550 = vpop.f32.mrb[0].mxu0
    %2551 = vdwg.mxu0
    %v2552 = vsel %vm668, %v2469, -inf
    %2553 = vmax.xlane.f32.xlu0 %v2552
    %v2554 = vpop.xlane.xlu0 %2553
    %v2555 = vsel %vm668, %v2472, -inf
    %2556 = vmax.xlane.f32.xlu0 %v2555
    %v2557 = vpop.xlane.xlu0 %2556
    %v2558 = vsel %vm668, %v2477, -inf
    %2559 = vmax.xlane.f32.xlu0 %v2558
    %v2560 = vpop.xlane.xlu0 %2559
    %v2561 = vsel %vm668, %v2480, -inf
    %2562 = vmax.xlane.f32.xlu0 %v2561
    %v2563 = vpop.xlane.xlu0 %2562
    %v2564 = vsel %vm668, %v2538, -inf
    %2565 = vmax.xlane.f32.xlu0 %v2564
    %v2566 = vpop.xlane.xlu0 %2565
    %v2567 = vsel %vm668, %v2541, -inf
    %2568 = vmax.xlane.f32.xlu0 %v2567
    %v2569 = vpop.xlane.xlu0 %2568
    %v2570 = vsel %vm668, %v2546, -inf
    %2571 = vmax.xlane.f32.xlu0 %v2570
    %v2572 = vpop.xlane.xlu0 %2571
    %v2573 = vsel %vm668, %v2549, -inf
    %2574 = vmax.xlane.f32.xlu0 %v2573
    %v2575 = vpop.xlane.xlu0 %2574
    %v2576 = vsub.f32 %v2469, %v2554
    %v2577 = vsub.f32 %v2472, %v2557
    %v2578 = vsub.f32 %v2477, %v2560
    %v2579 = vsub.f32 %v2480, %v2563
    %v2580 = vsub.f32 %v2538, %v2566
    %v2581 = vsub.f32 %v2541, %v2569
    %v2582 = vsub.f32 %v2546, %v2572
    %v2583 = vsub.f32 %v2549, %v2575
    %v2584 = vmul.f32 %v2576, 1.442695
    %v2585 = vpow.pop %v2584
    %v2586 = vmul.f32 %v2577, 1.442695
    %v2587 = vpow.pop %v2586
    %v2588 = vmul.f32 %v2578, 1.442695
    %v2589 = vpow.pop %v2588
    %v2590 = vmul.f32 %v2579, 1.442695
    %v2591 = vpow.pop %v2590
    %v2592 = vmul.f32 %v2580, 1.442695
    %v2593 = vpow.pop %v2592
    %v2594 = vmul.f32 %v2581, 1.442695
    %v2595 = vpow.pop %v2594
    %v2596 = vmul.f32 %v2582, 1.442695
    %v2597 = vpow.pop %v2596
    %v2598 = vmul.f32 %v2583, 1.442695
    %v2599 = vpow.pop %v2598
    %v2600 = vsel %vm839, %v2469, -inf
    %2601 = vmax.xlane.f32.xlu0 %v2600
    %v2602 = vpop.xlane.xlu0 %2601
    %v2603 = vsel %vm839, %v2472, -inf
    %2604 = vmax.xlane.f32.xlu0 %v2603
    %v2605 = vpop.xlane.xlu0 %2604
    %v2606 = vsel %vm839, %v2477, -inf
    %2607 = vmax.xlane.f32.xlu0 %v2606
    %v2608 = vpop.xlane.xlu0 %2607
    %v2609 = vsel %vm839, %v2480, -inf
    %2610 = vmax.xlane.f32.xlu0 %v2609
    %v2611 = vpop.xlane.xlu0 %2610
    %v2612 = vsel %vm839, %v2538, -inf
    %2613 = vmax.xlane.f32.xlu0 %v2612
    %v2614 = vpop.xlane.xlu0 %2613
    %v2615 = vsel %vm839, %v2541, -inf
    %2616 = vmax.xlane.f32.xlu0 %v2615
    %v2617 = vpop.xlane.xlu0 %2616
    %v2618 = vsel %vm839, %v2546, -inf
    %2619 = vmax.xlane.f32.xlu0 %v2618
    %v2620 = vpop.xlane.xlu0 %2619
    %v2621 = vsel %vm839, %v2549, -inf
    %2622 = vmax.xlane.f32.xlu0 %v2621
    %v2623 = vpop.xlane.xlu0 %2622
    %v2624 = vsub.f32 %v2469, %v2602
    %v2625 = vsub.f32 %v2472, %v2605
    %v2626 = vsub.f32 %v2477, %v2608
    %v2627 = vsub.f32 %v2480, %v2611
    %v2628 = vsub.f32 %v2538, %v2614
    %v2629 = vsub.f32 %v2541, %v2617
    %v2630 = vsub.f32 %v2546, %v2620
    %v2631 = vsub.f32 %v2549, %v2623
    %v2632 = vmul.f32 %v2624, 1.442695
    %v2633 = vpow.pop %v2632
    %v2634 = vmul.f32 %v2625, 1.442695
    %v2635 = vpow.pop %v2634
    %v2636 = vmul.f32 %v2626, 1.442695
    %v2637 = vpow.pop %v2636
    %v2638 = vmul.f32 %v2627, 1.442695
    %v2639 = vpow.pop %v2638
    %v2640 = vmul.f32 %v2628, 1.442695
    %v2641 = vpow.pop %v2640
    %v2642 = vmul.f32 %v2629, 1.442695
    %v2643 = vpow.pop %v2642
    %v2644 = vmul.f32 %v2630, 1.442695
    %v2645 = vpow.pop %v2644
    %v2646 = vmul.f32 %v2631, 1.442695
    %v2647 = vpow.pop %v2646
    %v2648 = vsel %vm668, %v2585, 0.0
    %2649 = vadd.xlane.f32.xlu0 %v2648
    %v2650 = vpop.xlane.xlu0 %2649
    %v2651 = vsel %vm668, %v2587, 0.0
    %2652 = vadd.xlane.f32.xlu0 %v2651
    %v2653 = vpop.xlane.xlu0 %2652
    %v2654 = vsel %vm668, %v2589, 0.0
    %2655 = vadd.xlane.f32.xlu0 %v2654
    %v2656 = vpop.xlane.xlu0 %2655
    %v2657 = vsel %vm668, %v2591, 0.0
    %2658 = vadd.xlane.f32.xlu0 %v2657
    %v2659 = vpop.xlane.xlu0 %2658
    %v2660 = vsel %vm668, %v2593, 0.0
    %2661 = vadd.xlane.f32.xlu0 %v2660
    %v2662 = vpop.xlane.xlu0 %2661
    %v2663 = vsel %vm668, %v2595, 0.0
    %2664 = vadd.xlane.f32.xlu0 %v2663
    %v2665 = vpop.xlane.xlu0 %2664
    %v2666 = vsel %vm668, %v2597, 0.0
    %2667 = vadd.xlane.f32.xlu0 %v2666
    %v2668 = vpop.xlane.xlu0 %2667
    %v2669 = vsel %vm668, %v2599, 0.0
    %2670 = vadd.xlane.f32.xlu0 %v2669
    %v2671 = vpop.xlane.xlu0 %2670
    %v2672 = vrcp.pop %v2650
    %v2673 = vrcp.pop %v2653
    %v2674 = vrcp.pop %v2656
    %v2675 = vrcp.pop %v2659
    %v2676 = vrcp.pop %v2662
    %v2677 = vrcp.pop %v2665
    %v2678 = vrcp.pop %v2668
    %v2679 = vrcp.pop %v2671
    %2688 = vrot.lane.b32.xlu0 %v2633, 112
    %v2689 = vpop.permute.xlu0 %2688
    %2690 = vrot.lane.b32.xlu0 %v2635, 112
    %v2691 = vpop.permute.xlu0 %2690
    %2692 = vrot.lane.b32.xlu0 %v2637, 112
    %v2693 = vpop.permute.xlu0 %2692
    %2694 = vrot.lane.b32.xlu0 %v2639, 112
    %v2695 = vpop.permute.xlu0 %2694
    %2696 = vrot.lane.b32.xlu0 %v2641, 112
    %v2697 = vpop.permute.xlu0 %2696
    %2698 = vrot.lane.b32.xlu0 %v2643, 112
    %v2699 = vpop.permute.xlu0 %2698
    %2700 = vrot.lane.b32.xlu0 %v2645, 112
    %v2701 = vpop.permute.xlu0 %2700
    %2702 = vrot.lane.b32.xlu0 %v2647, 112
    %v2703 = vpop.permute.xlu0 %2702
    %v2712 = vsel %vm952, %v2689, 0.0
    %2713 = vadd.xlane.f32.xlu0 %v2712
    %v2714 = vpop.xlane.xlu0 %2713
    %v2715 = vsel %vm952, %v2691, 0.0
    %2716 = vadd.xlane.f32.xlu0 %v2715
    %v2717 = vpop.xlane.xlu0 %2716
    %v2718 = vsel %vm952, %v2693, 0.0
    %2719 = vadd.xlane.f32.xlu0 %v2718
    %v2720 = vpop.xlane.xlu0 %2719
    %v2721 = vsel %vm952, %v2695, 0.0
    %2722 = vadd.xlane.f32.xlu0 %v2721
    %v2723 = vpop.xlane.xlu0 %2722
    %v2724 = vsel %vm952, %v2697, 0.0
    %2725 = vadd.xlane.f32.xlu0 %v2724
    %v2726 = vpop.xlane.xlu0 %2725
    %v2727 = vsel %vm952, %v2699, 0.0
    %2728 = vadd.xlane.f32.xlu0 %v2727
    %v2729 = vpop.xlane.xlu0 %2728
    %v2730 = vsel %vm952, %v2701, 0.0
    %2731 = vadd.xlane.f32.xlu0 %v2730
    %v2732 = vpop.xlane.xlu0 %2731
    %v2733 = vsel %vm952, %v2703, 0.0
    %2734 = vadd.xlane.f32.xlu0 %v2733
    %v2735 = vpop.xlane.xlu0 %2734
    %v2736 = vrcp.pop %v2714
    %v2737 = vrcp.pop %v2717
    %v2738 = vrcp.pop %v2720
    %v2739 = vrcp.pop %v2723
    %v2740 = vrcp.pop %v2726
    %v2741 = vrcp.pop %v2729
    %v2742 = vrcp.pop %v2732
    %v2743 = vrcp.pop %v2735
    %v2744 = vmul.f32 %v2585, %v2672
    %v2745 = vmul.f32 %v2587, %v2673
    %v2746 = vmul.f32 %v2589, %v2674
    %v2747 = vmul.f32 %v2591, %v2675
    %v2748 = vmul.f32 %v2593, %v2676
    %v2749 = vmul.f32 %v2595, %v2677
    %v2750 = vmul.f32 %v2597, %v2678
    %v2751 = vmul.f32 %v2599, %v2679
    %v2752 = vmul.f32 %v2633, %v2736
    %v2753 = vmul.f32 %v2635, %v2737
    %v2754 = vmul.f32 %v2637, %v2738
    %v2755 = vmul.f32 %v2639, %v2739
    %v2756 = vmul.f32 %v2641, %v2740
    %v2757 = vmul.f32 %v2643, %v2741
    %v2758 = vmul.f32 %v2645, %v2742
    %v2759 = vmul.f32 %v2647, %v2743
    %v2760 = vsel %vm668, %v2744, %v2752
    %v2761 = vsel %vm668, %v2745, %v2753
    %v2762 = vsel %vm668, %v2746, %v2754
    %v2763 = vsel %vm668, %v2747, %v2755
    %v2764 = vsel %vm668, %v2748, %v2756
    %v2765 = vsel %vm668, %v2749, %v2757
    %v2766 = vsel %vm668, %v2750, %v2758
    %v2767 = vsel %vm668, %v2751, %v2759
    %v2768 = vpack.c.bf16 %v2761, %v2760
    %v2769 = vpack.c.bf16 %v2763, %v2762
    %v2770 = vpack.c.bf16 %v2765, %v2764
    %v2771 = vpack.c.bf16 %v2767, %v2766
    %2772 = vrot.lane.b32.xlu0 %v657, 16
    %v2773 = vpop.permute.xlu0 %2772
    %2774 = vrot.lane.b32.xlu0 %v658, 16
    %v2775 = vpop.permute.xlu0 %2774
    %v2778 = vsel %vm1020, %v2768, 0
    %v2781 = vsel %vm1020, %v2769, 0
    %v2784 = vsel %vm1027, %v2775, 0
    %2786 = vmatprep.subr.bf16.mxu0 0
    %2787 = vmatpush1.bf16.msra.mxu0 %v2773
    %2788 = vmatprep.subr.bf16.mxu0 0
    %2789 = vmatpush1.bf16.msra.mxu0 %v2784
    %2790 = vmatprep.subr.bf16.mxu0 0
    %2791 = vmatpush1.bf16.msra.mxu0 0
    %2792 = vmatprep.subr.bf16.mxu0 0
    %2793 = vmatpush1.bf16.msra.mxu0 0
    %2794 = vmatprep.subr.bf16.mxu0 0
    %2795 = vmatpush1.bf16.msra.mxu0 0
    %2796 = vmatprep.subr.bf16.mxu0 0
    %2797 = vmatpush1.bf16.msra.mxu0 0
    %2798 = vmatprep.subr.bf16.mxu0 0
    %2799 = vmatpush1.bf16.msra.mxu0 0
    %2800 = vmatprep.subr.bf16.mxu0 0
    %2801 = vmatpush1.bf16.msra.mxu0 0
    %2802 = vmatprep.subr.bf16.mxu0 0
    %2803 = vmatpush1.bf16.msra.mxu0 0
    %2804 = vmatprep.subr.bf16.mxu0 0
    %2805 = vmatpush1.bf16.msra.mxu0 0
    %2806 = vmatprep.subr.bf16.mxu0 0
    %2807 = vmatpush1.bf16.msra.mxu0 0
    %2808 = vmatprep.subr.bf16.mxu0 0
    %2809 = vmatpush1.bf16.msra.mxu0 0
    %2810 = vmatprep.subr.bf16.mxu0 0
    %2811 = vmatpush1.bf16.msra.mxu0 0
    %2812 = vmatprep.subr.bf16.mxu0 0
    %2813 = vmatpush1.bf16.msra.mxu0 0
    %2814 = vmatprep.subr.bf16.mxu0 0
    %2815 = vmatpush1.bf16.msra.mxu0 0
    %2816 = vmatprep.subr.bf16.mxu0 0
    %2817 = vmatpush1.bf16.msra.mxu0 0
    %2818 = vmatprep.mubr.bf16.mxu0 0
    %2819 = vmatmul.mubr.bf16.gmra.mrb[0].mxu0 %v2778
    %v2820 = vpop.f32.mrb[0].mxu0
    %v2821 = vadd.f32 0.0, %v2820
    %v2822 = vpop.f32.mrb[0].mxu0
    %v2823 = vpop.f32.mrb[0].mxu0
    %v2824 = vadd.f32 0.0, %v2823
    %v2825 = vpop.f32.mrb[0].mxu0
    %2826 = vmatprep.mubr.bf16.mxu0 0
    %2827 = vmatmul.mubr.bf16.gmra.mrb[0].mxu0 %v2781
    %v2828 = vpop.f32.mrb[0].mxu0
    %v2829 = vadd.f32 0.0, %v2828
    %v2830 = vpop.f32.mrb[0].mxu0
    %v2831 = vpop.f32.mrb[0].mxu0
    %v2832 = vadd.f32 0.0, %v2831
    %v2833 = vpop.f32.mrb[0].mxu0
    %2834 = vdwg.mxu0
    %2835 = vrot.lane.b32.xlu0 %v659, 16
    %v2836 = vpop.permute.xlu0 %2835
    %2837 = vrot.lane.b32.xlu0 %v660, 16
    %v2838 = vpop.permute.xlu0 %2837
    %v2841 = vsel %vm1020, %v2770, 0
    %v2844 = vsel %vm1020, %v2771, 0
    %v2847 = vsel %vm1027, %v2838, 0
    %2849 = vmatprep.subr.bf16.mxu0 0
    %2850 = vmatpush1.bf16.msra.mxu0 %v2836
    %2851 = vmatprep.subr.bf16.mxu0 0
    %2852 = vmatpush1.bf16.msra.mxu0 %v2847
    %2853 = vmatprep.subr.bf16.mxu0 0
    %2854 = vmatpush1.bf16.msra.mxu0 0
    %2855 = vmatprep.subr.bf16.mxu0 0
    %2856 = vmatpush1.bf16.msra.mxu0 0
    %2857 = vmatprep.subr.bf16.mxu0 0
    %2858 = vmatpush1.bf16.msra.mxu0 0
    %2859 = vmatprep.subr.bf16.mxu0 0
    %2860 = vmatpush1.bf16.msra.mxu0 0
    %2861 = vmatprep.subr.bf16.mxu0 0
    %2862 = vmatpush1.bf16.msra.mxu0 0
    %2863 = vmatprep.subr.bf16.mxu0 0
    %2864 = vmatpush1.bf16.msra.mxu0 0
    %2865 = vmatprep.subr.bf16.mxu0 0
    %2866 = vmatpush1.bf16.msra.mxu0 0
    %2867 = vmatprep.subr.bf16.mxu0 0
    %2868 = vmatpush1.bf16.msra.mxu0 0
    %2869 = vmatprep.subr.bf16.mxu0 0
    %2870 = vmatpush1.bf16.msra.mxu0 0
    %2871 = vmatprep.subr.bf16.mxu0 0
    %2872 = vmatpush1.bf16.msra.mxu0 0
    %2873 = vmatprep.subr.bf16.mxu0 0
    %2874 = vmatpush1.bf16.msra.mxu0 0
    %2875 = vmatprep.subr.bf16.mxu0 0
    %2876 = vmatpush1.bf16.msra.mxu0 0
    %2877 = vmatprep.subr.bf16.mxu0 0
    %2878 = vmatpush1.bf16.msra.mxu0 0
    %2879 = vmatprep.subr.bf16.mxu0 0
    %2880 = vmatpush1.bf16.msra.mxu0 0
    %2881 = vmatprep.mubr.bf16.mxu0 0
    %2882 = vmatmul.mubr.bf16.gmra.mrb[0].mxu0 %v2841
    %v2883 = vpop.f32.mrb[0].mxu0
    %v2884 = vadd.f32 0.0, %v2883
    %v2885 = vpop.f32.mrb[0].mxu0
    %v2886 = vpop.f32.mrb[0].mxu0
    %v2887 = vadd.f32 0.0, %v2886
    %v2888 = vpop.f32.mrb[0].mxu0
    %2889 = vmatprep.mubr.bf16.mxu0 0
    %2890 = vmatmul.mubr.bf16.gmra.mrb[0].mxu0 %v2844
    %v2891 = vpop.f32.mrb[0].mxu0
    %v2892 = vadd.f32 0.0, %v2891
    %v2893 = vpop.f32.mrb[0].mxu0
    %v2894 = vpop.f32.mrb[0].mxu0
    %v2895 = vadd.f32 0.0, %v2894
    %v2896 = vpop.f32.mrb[0].mxu0
    %2897 = vdwg.mxu0
    %v2898 = vpack.c.bf16 %v2824, %v2821
    %v2899 = vpack.c.bf16 %v2832, %v2829
    %v2900 = vpack.c.bf16 %v2887, %v2884
    %v2901 = vpack.c.bf16 %v2895, %v2892
    %s2902 = scalar_lea.vmem [#allocation13], 24
    %v2903 = vld [vmem:[%s2902] sm:$0xf]
    %v2904 = vld [vmem:[%s2902 + $0x4] sm:$0xf]
    %v2907 = vunpack.c.l.b16 %v2903
    %v2908 = vunpack.c.l.b16 %v2904
    %v2909 = vpack.c.b16 %v2908, %v2907
    %v2912 = vsel %vm668, %v2898, 0
    %v2915 = vsel %vm668, %v2899, 0
    %v2918 = vsel %vm668, %v2900, 0
    %v2921 = vsel %vm668, %v2901, 0
    %2923 = vmatprep.subr.bf16.mxu0 0
    %2924 = vmatpush1.bf16.msra.mxu0 %v2909
    %2925 = vmatprep.subr.bf16.mxu0 0
    %2926 = vmatpush1.bf16.msra.mxu0 0
    %2927 = vmatprep.subr.bf16.mxu0 0
    %2928 = vmatpush1.bf16.msra.mxu0 0
    %2929 = vmatprep.subr.bf16.mxu0 0
    %2930 = vmatpush1.bf16.msra.mxu0 0
    %2931 = vmatprep.subr.bf16.mxu0 0
    %2932 = vmatpush1.bf16.msra.mxu0 0
    %2933 = vmatprep.subr.bf16.mxu0 0
    %2934 = vmatpush1.bf16.msra.mxu0 0
    %2935 = vmatprep.subr.bf16.mxu0 0
    %2936 = vmatpush1.bf16.msra.mxu0 0
    %2937 = vmatprep.subr.bf16.mxu0 0
    %2938 = vmatpush1.bf16.msra.mxu0 0
    %2939 = vmatprep.subr.bf16.mxu0 0
    %2940 = vmatpush1.bf16.msra.mxu0 0
    %2941 = vmatprep.subr.bf16.mxu0 0
    %2942 = vmatpush1.bf16.msra.mxu0 0
    %2943 = vmatprep.subr.bf16.mxu0 0
    %2944 = vmatpush1.bf16.msra.mxu0 0
    %2945 = vmatprep.subr.bf16.mxu0 0
    %2946 = vmatpush1.bf16.msra.mxu0 0
    %2947 = vmatprep.subr.bf16.mxu0 0
    %2948 = vmatpush1.bf16.msra.mxu0 0
    %2949 = vmatprep.subr.bf16.mxu0 0
    %2950 = vmatpush1.bf16.msra.mxu0 0
    %2951 = vmatprep.subr.bf16.mxu0 0
    %2952 = vmatpush1.bf16.msra.mxu0 0
    %2953 = vmatprep.subr.bf16.mxu0 0
    %2954 = vmatpush1.bf16.msra.mxu0 0
    %2955 = vmatprep.mubr.bf16.mxu0 0
    %2956 = vmatmul.mubr.bf16.gmra.mrb[0].mxu0 %v2912
    %v2957 = vpop.f32.mrb[0].mxu0
    %v2958 = vadd.f32 0.0, %v2957
    %v2959 = vpop.f32.mrb[0].mxu0
    %v2960 = vpop.f32.mrb[0].mxu0
    %v2961 = vadd.f32 0.0, %v2960
    %v2962 = vpop.f32.mrb[0].mxu0
    %2963 = vmatprep.mubr.bf16.mxu0 0
    %2964 = vmatmul.mubr.bf16.gmra.mrb[0].mxu0 %v2915
    %v2965 = vpop.f32.mrb[0].mxu0
    %v2966 = vadd.f32 0.0, %v2965
    %v2967 = vpop.f32.mrb[0].mxu0
    %v2968 = vpop.f32.mrb[0].mxu0
    %v2969 = vadd.f32 0.0, %v2968
    %v2970 = vpop.f32.mrb[0].mxu0
    %2971 = vmatprep.mubr.bf16.mxu0 0
    %2972 = vmatmul.mubr.bf16.gmra.mrb[0].mxu0 %v2918
    %v2973 = vpop.f32.mrb[0].mxu0
    %v2974 = vadd.f32 0.0, %v2973
    %v2975 = vpop.f32.mrb[0].mxu0
    %v2976 = vpop.f32.mrb[0].mxu0
    %v2977 = vadd.f32 0.0, %v2976
    %v2978 = vpop.f32.mrb[0].mxu0
    %2979 = vmatprep.mubr.bf16.mxu0 0
    %2980 = vmatmul.mubr.bf16.gmra.mrb[0].mxu0 %v2921
    %v2981 = vpop.f32.mrb[0].mxu0
    %v2982 = vadd.f32 0.0, %v2981
    %v2983 = vpop.f32.mrb[0].mxu0
    %v2984 = vpop.f32.mrb[0].mxu0
    %v2985 = vadd.f32 0.0, %v2984
    %v2986 = vpop.f32.mrb[0].mxu0
    %2987 = vdwg.mxu0
    %v2988 = vadd.f32 %v2406, %v2958
    %v2989 = vadd.f32 %v2407, %v2961
    %v2990 = vadd.f32 %v2408, %v2966
    %v2991 = vadd.f32 %v2409, %v2969
    %v2992 = vadd.f32 %v2410, %v2974
    %v2993 = vadd.f32 %v2411, %v2977
    %v2994 = vadd.f32 %v2412, %v2982
    %v2995 = vadd.f32 %v2413, %v2985
    %2996 = vst [vmem:[#allocation20] sm:$0xff] %v2988
    %2997 = vst [vmem:[#allocation20 + $0x8] sm:$0xff] %v2989
    %2998 = vst [vmem:[#allocation20 + $0x10] sm:$0xff] %v2990
    %2999 = vst [vmem:[#allocation20 + $0x18] sm:$0xff] %v2991
    %3000 = vst [vmem:[#allocation20 + $0x20] sm:$0xff] %v2992
    %3001 = vst [vmem:[#allocation20 + $0x28] sm:$0xff] %v2993
    %3002 = vst [vmem:[#allocation20 + $0x30] sm:$0xff] %v2994
    %3003 = vst [vmem:[#allocation20 + $0x38] sm:$0xff] %v2995
    // Predicated region
    $region102: #{wan_i2v_cross_attention.1} parent=1 // pred_check
      _
    $region103: #{wan_i2v_cross_attention.1} parent=1 // pred_check_branch
      %3005 = sbr.rel (0) target = $region105
    $region104: #{wan_i2v_cross_attention.1} parent=1 // pred_region
      %s3007 = ssub.s32 1024, 1024
      %3008 = vsyncadd [#allocation4], %s3007
      %s3009 = sshll.u32 [#allocation20], 4
      %s3010 = int_to_ptr.vmem [resolvable:$true] %s3009
      %3015 = dma.vmem_to_hbm [thread:$0]  %s3010, 1024, %s14, [#allocation4], 128, 128, 8
    $region105: #{wan_i2v_cross_attention.1} parent=1 // pred_fallthru
      _
    // Predicated region
    $region106: #{wan_i2v_cross_attention.1} parent=1 // pred_check
      _
    $region107: #{wan_i2v_cross_attention.1} parent=1 // pred_check_branch
      %3017 = sbr.rel (0) target = $region109
    $region108: #{wan_i2v_cross_attention.1} parent=1 // pred_region
      %3018 = dma.done [#allocation4], 1024
    $region109: #{wan_i2v_cross_attention.1} parent=1 // pred_fallthru
      _
    %3019 = vsyncpa [#allocation3], 1
    %3020 = vsyncpa [#allocation6], 1
    %3021 = vsyncpa [#allocation9], 1
    %3022 = vsyncpa [#allocation12], 1
    %3023 = vsyncpa [#allocation15], 1
    %3024 = vsyncpa [#allocation18], 1
    %3025 = vsyncpa [#allocation4], 1

</llo_original>
